<compile_context>
chip_gen: v7x
topology: tpu7x:2x2x1
jax: 0.10.0
libtpu: 0.0.40
codegen_flags: <defaults>
</compile_context>

<pallas_src>
import functools
import math

import jax
import jax.numpy as jnp
from jax.experimental import pallas as pl
from jax.experimental.pallas import tpu as pltpu


def _factorize_patches(n):
    for i in range(int(math.sqrt(n)), 0, -1):
        if n % i == 0:
            return i, n // i
    return 1, n


def _image_patch_nam_kernel(x_ref, pool_ref, w1_ref, b1_ref, w2_ref, b2_ref,
                            contribs_t_ref, *, hidden):
    # x_ref:    (tb, D)  lane-dense flattened image rows
    # pool_ref: (D, P)   patch-membership * 1/(C*ph*pw)
    # w1/b1/w2: (hidden, P, 1);  b2: (P, 1)
    # contribs_t_ref: (P, tb)  (batch on lanes -> unmasked, lane-dense stores)

    # ---- patch mean pooling on the MXU --------------------------------------
    feats = jnp.dot(x_ref[...], pool_ref[...],
                    preferred_element_type=jnp.float32)          # (tb, P)
    feats_t = feats.T                                            # (P, tb), XLU

    # ---- per-patch FeatureNet MLPs, batch on the lane axis (VPU) ------------
    # acc starts from the (hoisted) output bias; w*_ref[j] is a (P, 1) column
    # broadcasting along the tb lanes.
    acc = jnp.broadcast_to(b2_ref[...], feats_t.shape)
    # Static unroll over the 32 hidden units (identical codegen to
    # fori_loop(unroll=True); switch to lax.fori_loop with dynamic ref indexing
    # only if a bundle dump shows vreg spill traffic at large tb).
    for j in range(hidden):
        h = jnp.maximum(feats_t * w1_ref[j] + b1_ref[j], 0.0)    # (P, tb)
        acc = acc + h * w2_ref[j]

    contribs_t_ref[...] = acc.astype(contribs_t_ref.dtype)


def image_patch_nam_forward(x, w1, b1, w2, b2, *, num_patches=20):
    """x: (B, C, H, W).  Per-patch FeatureNet weights stacked on the last axis:
         w1, b1, w2: (hidden, num_patches);  b2: (1, num_patches).
       Returns (score (B, 1), contribs (B, num_patches)), float32."""
    B, C, H, W = x.shape
    rows, cols = _factorize_patches(num_patches)
    ph, pw = H // rows, W // cols
    hidden = w1.shape[0]
    D = C * H * W

    # Lane-dense view of the image (free reshape of a contiguous array).
    x_flat = x.astype(jnp.float32).reshape(B, D)

    # Pooling matrix: pool[d, p] = 1/(C*ph*pw) iff flat pixel d lies in patch p.
    # Remainder rows/cols (H % rows, W % cols) map to a sentinel id -> dropped,
    # exactly like the PyTorch slicing in the reference module.
    h_band = jnp.arange(H) // max(ph, 1)
    w_band = jnp.arange(W) // max(pw, 1)
    valid = (h_band[:, None] < rows) & (w_band[None, :] < cols)
    pid_hw = jnp.where(valid, h_band[:, None] * cols + w_band[None, :],
                       num_patches)                               # (H, W)
    pid = jnp.broadcast_to(pid_hw[None], (C, H, W)).reshape(D)
    pool_mat = (pid[:, None] == jnp.arange(num_patches)[None, :]
                ).astype(jnp.float32) / float(C * ph * pw)        # (D, P)

    # Weights laid out so that w*_k[j] is a (P, 1) column inside the kernel.
    w1_k = w1.astype(jnp.float32)[:, :, None]                     # (hidden, P, 1)
    b1_k = b1.astype(jnp.float32)[:, :, None]
    w2_k = w2.astype(jnp.float32)[:, :, None]
    b2_k = b2.astype(jnp.float32).reshape(num_patches, 1)         # (P, 1)

    # ---- per-generation tiling / VMEM budget --------------------------------
    try:
        vmem_cap = int(pltpu.get_tpu_info().vmem_capacity_bytes)
    except Exception:
        vmem_cap = 64 * 1024 * 1024
    block_target = min(16 * 1024 * 1024, max(4 * 1024 * 1024, vmem_cap // 6))
    vmem_limit = int(min(64 * 1024 * 1024, (3 * vmem_cap) // 4))

    row_bytes = D * 4
    tb = max(1, block_target // row_bytes)
    if tb >= B:
        tb = B                                # full-dim block is always legal
    else:
        # Lane-aligned batch tile: contribs are stored with batch on lanes.
        tb = min(B, max(128, (tb // 128) * 128))
    grid = (pl.cdiv(B, tb),)
    # NOTE: when B % tb != 0 the last (padded) block computes garbage feats for
    # the out-of-bounds rows; those output columns are masked on writeback and
    # must never be trusted.
    # TODO(synk): for very large images (C*H*W beyond ~32K f32 elements) the
    # resident pooling matrix / 128-row tile no longer fit VMEM; that regime
    # needs a K-tiled pooling matmul (extra grid axis) which is not implemented.

    kernel = functools.partial(_image_patch_nam_kernel, hidden=hidden)

    contribs_t = pl.pallas_call(
        kernel,
        out_shape=jax.ShapeDtypeStruct((num_patches, B), jnp.float32),
        grid=grid,
        in_specs=[
            pl.BlockSpec((tb, D), lambda i: (i, 0)),                    # x rows
            pl.BlockSpec((D, num_patches), lambda i: (0, 0)),           # pooling
            pl.BlockSpec((hidden, num_patches, 1), lambda i: (0, 0, 0)),  # W1
            pl.BlockSpec((hidden, num_patches, 1), lambda i: (0, 0, 0)),  # b1
            pl.BlockSpec((hidden, num_patches, 1), lambda i: (0, 0, 0)),  # W2
            pl.BlockSpec((num_patches, 1), lambda i: (0, 0)),           # b2
        ],
        out_specs=pl.BlockSpec((num_patches, tb), lambda i: (0, i)),
        compiler_params=pltpu.CompilerParams(
            # TODO(synk): on v7x verify both TensorCores engage under
            # "parallel"; if a profile shows one idle, switch to CORE_PARALLEL.
            dimension_semantics=("parallel",),
            vmem_limit_bytes=vmem_limit),
    )(x_flat, pool_mat, w1_k, b1_k, w2_k, b2_k)

    contribs = contribs_t.T                                   # (B, P), tiny
    score = jnp.sum(contribs, axis=1, keepdims=True)          # (B, 1)
    return score, contribs


if __name__ == "__main__":
    key = jax.random.PRNGKey(0)
    k_x, k_w1, k_b1, k_w2, k_b2 = jax.random.split(key, 5)

    num_patches = 20
    hidden = 32
    rows, cols = _factorize_patches(num_patches)          # (4, 5)

    # Small shapes consistent with the module: H divisible by rows, W by cols.
    B, C, H, W = 16, 4, 16, 20
    x = jax.random.normal(k_x, (B, C, H, W), jnp.float32)

    # nn.Linear-style init, stacked over the 20 per-patch FeatureNets:
    #   layer 1 fan_in=1 -> U(-1, 1); layer 2 fan_in=hidden -> U(-1/sqrt(h), 1/sqrt(h))
    w1 = jax.random.uniform(k_w1, (hidden, num_patches), jnp.float32, -1.0, 1.0)
    b1 = jax.random.uniform(k_b1, (hidden, num_patches), jnp.float32, -1.0, 1.0)
    bound2 = 1.0 / math.sqrt(hidden)
    w2 = jax.random.uniform(k_w2, (hidden, num_patches), jnp.float32,
                            -bound2, bound2)
    b2 = jax.random.uniform(k_b2, (1, num_patches), jnp.float32,
                            -bound2, bound2)

    score, contribs = image_patch_nam_forward(x, w1, b1, w2, b2,
                                              num_patches=num_patches)
    score = jax.block_until_ready(score)
    contribs = jax.block_until_ready(contribs)

    # ---- pure-JAX reference -------------------------------------------------
    ph, pw = H // rows, W // cols
    feats_list = []
    for i in range(rows):
        for j in range(cols):
            patch = x[:, :, i * ph:(i + 1) * ph, j * pw:(j + 1) * pw]
            feats_list.append(patch.reshape(B, -1).mean(axis=1, keepdims=True))
    feats = jnp.concatenate(feats_list, axis=1)                    # (B, P)
    h_ref = jnp.maximum(feats[:, None, :] * w1[None] + b1[None], 0.0)
    contribs_ref = jnp.sum(h_ref * w2[None], axis=1) + b2          # (B, P)
    score_ref = jnp.sum(contribs_ref, axis=1, keepdims=True)       # (B, 1)

    assert score.shape == (B, 1) and contribs.shape == (B, num_patches)
    assert jnp.allclose(contribs, contribs_ref, atol=1e-4, rtol=1e-4), \
        "contribs mismatch vs reference"
    assert jnp.allclose(score, score_ref, atol=1e-4, rtol=1e-4), \
        "score mismatch vs reference"

    print("KERNEL_OK")
</pallas_src>

<mosaic_0001>
module attributes {stable_mosaic.version = 11 : i64} {
  func.func @_image_patch_nam_kernel(%arg0: i32, %arg1: memref<16x1280xf32, #tpu.memory_space<vmem>>, %arg2: memref<1280x20xf32, #tpu.memory_space<vmem>>, %arg3: memref<32x20x1xf32, #tpu.memory_space<vmem>>, %arg4: memref<32x20x1xf32, #tpu.memory_space<vmem>>, %arg5: memref<32x20x1xf32, #tpu.memory_space<vmem>>, %arg6: memref<20x1xf32, #tpu.memory_space<vmem>>, %arg7: memref<20x16xf32, #tpu.memory_space<vmem>>) attributes {dimension_semantics = [#tpu.dimension_semantics<parallel>], iteration_bounds = array<i64: 1>, scalar_prefetch = 0 : i64, scratch_operands = 0 : i64, tpu.core_type = #tpu.core_type<tc>, window_params = [{transform_indices = @transform_0, window_bounds = array<i64: 16, 1280>}, {pipeline_mode = #tpu.pipeline_mode<synchronous>, transform_indices = @transform_1, window_bounds = array<i64: 1280, 20>}, {pipeline_mode = #tpu.pipeline_mode<synchronous>, transform_indices = @transform_2, window_bounds = array<i64: 32, 20, 1>}, {pipeline_mode = #tpu.pipeline_mode<synchronous>, transform_indices = @transform_3, window_bounds = array<i64: 32, 20, 1>}, {pipeline_mode = #tpu.pipeline_mode<synchronous>, transform_indices = @transform_4, window_bounds = array<i64: 32, 20, 1>}, {pipeline_mode = #tpu.pipeline_mode<synchronous>, transform_indices = @transform_5, window_bounds = array<i64: 20, 1>}, {transform_indices = @transform_6, window_bounds = array<i64: 20, 16>}]} {
    %c0 = arith.constant 0 : index
    %c0_0 = arith.constant 0 : index
    %0 = vector.load %arg1[%c0, %c0_0] : memref<16x1280xf32, #tpu.memory_space<vmem>>, vector<16x1280xf32>
    %c0_1 = arith.constant 0 : index
    %c0_2 = arith.constant 0 : index
    %1 = vector.load %arg2[%c0_1, %c0_2] : memref<1280x20xf32, #tpu.memory_space<vmem>>, vector<1280x20xf32>
    %cst = arith.constant dense<0.000000e+00> : vector<16x20xf32>
    %2 = tpu.matmul %0, %1, %cst {dimension_numbers = #tpu.dot_dimension_numbers<[1], [0], [0], [1], [0, 0, 1, 1], [], []>} : vector<16x1280xf32>, vector<1280x20xf32>, vector<16x20xf32> -> vector<16x20xf32>
    %3 = tpu.transpose %2, [1, 0] : vector<16x20xf32> -> vector<20x16xf32>
    %c0_3 = arith.constant 0 : index
    %c0_4 = arith.constant 0 : index
    %4 = vector.load %arg6[%c0_3, %c0_4] : memref<20x1xf32, #tpu.memory_space<vmem>>, vector<20x1xf32>
    %5 = vector.shape_cast %4 : vector<20x1xf32> to vector<20x1xf32>
    %6 = vector.broadcast %5 : vector<20x1xf32> to vector<20x16xf32>
    %c0_5 = arith.constant 0 : index
    %c0_6 = arith.constant 0 : index
    %c0_7 = arith.constant 0 : index
    %7 = vector.load %arg3[%c0_5, %c0_6, %c0_7] : memref<32x20x1xf32, #tpu.memory_space<vmem>>, vector<1x20x1xf32>
    %8 = vector.shape_cast %7 : vector<1x20x1xf32> to vector<20x1xf32>
    %9 = vector.broadcast %8 : vector<20x1xf32> to vector<20x16xf32>
    %10 = arith.mulf %3, %9 : vector<20x16xf32>
    %c0_8 = arith.constant 0 : index
    %c0_9 = arith.constant 0 : index
    %c0_10 = arith.constant 0 : index
    %11 = vector.load %arg4[%c0_8, %c0_9, %c0_10] : memref<32x20x1xf32, #tpu.memory_space<vmem>>, vector<1x20x1xf32>
    %12 = vector.shape_cast %11 : vector<1x20x1xf32> to vector<20x1xf32>
    %13 = vector.broadcast %12 : vector<20x1xf32> to vector<20x16xf32>
    %14 = arith.addf %10, %13 : vector<20x16xf32>
    %cst_11 = arith.constant 0.000000e+00 : f32
    %15 = vector.broadcast %cst_11 : f32 to vector<20x16xf32>
    %16 = arith.maximumf %14, %15 : vector<20x16xf32>
    %c0_12 = arith.constant 0 : index
    %c0_13 = arith.constant 0 : index
    %c0_14 = arith.constant 0 : index
    %17 = vector.load %arg5[%c0_12, %c0_13, %c0_14] : memref<32x20x1xf32, #tpu.memory_space<vmem>>, vector<1x20x1xf32>
    %18 = vector.shape_cast %17 : vector<1x20x1xf32> to vector<20x1xf32>
    %19 = vector.broadcast %18 : vector<20x1xf32> to vector<20x16xf32>
    %20 = arith.mulf %16, %19 : vector<20x16xf32>
    %21 = arith.addf %6, %20 : vector<20x16xf32>
    %c1 = arith.constant 1 : index
    %c0_15 = arith.constant 0 : index
    %c0_16 = arith.constant 0 : index
    %22 = vector.load %arg3[%c1, %c0_15, %c0_16] : memref<32x20x1xf32, #tpu.memory_space<vmem>>, vector<1x20x1xf32>
    %23 = vector.shape_cast %22 : vector<1x20x1xf32> to vector<20x1xf32>
    %24 = vector.broadcast %23 : vector<20x1xf32> to vector<20x16xf32>
    %25 = arith.mulf %3, %24 : vector<20x16xf32>
    %c1_17 = arith.constant 1 : index
    %c0_18 = arith.constant 0 : index
    %c0_19 = arith.constant 0 : index
    %26 = vector.load %arg4[%c1_17, %c0_18, %c0_19] : memref<32x20x1xf32, #tpu.memory_space<vmem>>, vector<1x20x1xf32>
    %27 = vector.shape_cast %26 : vector<1x20x1xf32> to vector<20x1xf32>
    %28 = vector.broadcast %27 : vector<20x1xf32> to vector<20x16xf32>
    %29 = arith.addf %25, %28 : vector<20x16xf32>
    %cst_20 = arith.constant 0.000000e+00 : f32
    %30 = vector.broadcast %cst_20 : f32 to vector<20x16xf32>
    %31 = arith.maximumf %29, %30 : vector<20x16xf32>
    %c1_21 = arith.constant 1 : index
    %c0_22 = arith.constant 0 : index
    %c0_23 = arith.constant 0 : index
    %32 = vector.load %arg5[%c1_21, %c0_22, %c0_23] : memref<32x20x1xf32, #tpu.memory_space<vmem>>, vector<1x20x1xf32>
    %33 = vector.shape_cast %32 : vector<1x20x1xf32> to vector<20x1xf32>
    %34 = vector.broadcast %33 : vector<20x1xf32> to vector<20x16xf32>
    %35 = arith.mulf %31, %34 : vector<20x16xf32>
    %36 = arith.addf %21, %35 : vector<20x16xf32>
    %c2 = arith.constant 2 : index
    %c0_24 = arith.constant 0 : index
    %c0_25 = arith.constant 0 : index
    %37 = vector.load %arg3[%c2, %c0_24, %c0_25] : memref<32x20x1xf32, #tpu.memory_space<vmem>>, vector<1x20x1xf32>
    %38 = vector.shape_cast %37 : vector<1x20x1xf32> to vector<20x1xf32>
    %39 = vector.broadcast %38 : vector<20x1xf32> to vector<20x16xf32>
    %40 = arith.mulf %3, %39 : vector<20x16xf32>
    %c2_26 = arith.constant 2 : index
    %c0_27 = arith.constant 0 : index
    %c0_28 = arith.constant 0 : index
    %41 = vector.load %arg4[%c2_26, %c0_27, %c0_28] : memref<32x20x1xf32, #tpu.memory_space<vmem>>, vector<1x20x1xf32>
    %42 = vector.shape_cast %41 : vector<1x20x1xf32> to vector<20x1xf32>
    %43 = vector.broadcast %42 : vector<20x1xf32> to vector<20x16xf32>
    %44 = arith.addf %40, %43 : vector<20x16xf32>
    %cst_29 = arith.constant 0.000000e+00 : f32
    %45 = vector.broadcast %cst_29 : f32 to vector<20x16xf32>
    %46 = arith.maximumf %44, %45 : vector<20x16xf32>
    %c2_30 = arith.constant 2 : index
    %c0_31 = arith.constant 0 : index
    %c0_32 = arith.constant 0 : index
    %47 = vector.load %arg5[%c2_30, %c0_31, %c0_32] : memref<32x20x1xf32, #tpu.memory_space<vmem>>, vector<1x20x1xf32>
    %48 = vector.shape_cast %47 : vector<1x20x1xf32> to vector<20x1xf32>
    %49 = vector.broadcast %48 : vector<20x1xf32> to vector<20x16xf32>
    %50 = arith.mulf %46, %49 : vector<20x16xf32>
    %51 = arith.addf %36, %50 : vector<20x16xf32>
    %c3 = arith.constant 3 : index
    %c0_33 = arith.constant 0 : index
    %c0_34 = arith.constant 0 : index
    %52 = vector.load %arg3[%c3, %c0_33, %c0_34] : memref<32x20x1xf32, #tpu.memory_space<vmem>>, vector<1x20x1xf32>
    %53 = vector.shape_cast %52 : vector<1x20x1xf32> to vector<20x1xf32>
    %54 = vector.broadcast %53 : vector<20x1xf32> to vector<20x16xf32>
    %55 = arith.mulf %3, %54 : vector<20x16xf32>
    %c3_35 = arith.constant 3 : index
    %c0_36 = arith.constant 0 : index
    %c0_37 = arith.constant 0 : index
    %56 = vector.load %arg4[%c3_35, %c0_36, %c0_37] : memref<32x20x1xf32, #tpu.memory_space<vmem>>, vector<1x20x1xf32>
    %57 = vector.shape_cast %56 : vector<1x20x1xf32> to vector<20x1xf32>
    %58 = vector.broadcast %57 : vector<20x1xf32> to vector<20x16xf32>
    %59 = arith.addf %55, %58 : vector<20x16xf32>
    %cst_38 = arith.constant 0.000000e+00 : f32
    %60 = vector.broadcast %cst_38 : f32 to vector<20x16xf32>
    %61 = arith.maximumf %59, %60 : vector<20x16xf32>
    %c3_39 = arith.constant 3 : index
    %c0_40 = arith.constant 0 : index
    %c0_41 = arith.constant 0 : index
    %62 = vector.load %arg5[%c3_39, %c0_40, %c0_41] : memref<32x20x1xf32, #tpu.memory_space<vmem>>, vector<1x20x1xf32>
    %63 = vector.shape_cast %62 : vector<1x20x1xf32> to vector<20x1xf32>
    %64 = vector.broadcast %63 : vector<20x1xf32> to vector<20x16xf32>
    %65 = arith.mulf %61, %64 : vector<20x16xf32>
    %66 = arith.addf %51, %65 : vector<20x16xf32>
    %c4 = arith.constant 4 : index
    %c0_42 = arith.constant 0 : index
    %c0_43 = arith.constant 0 : index
    %67 = vector.load %arg3[%c4, %c0_42, %c0_43] : memref<32x20x1xf32, #tpu.memory_space<vmem>>, vector<1x20x1xf32>
    %68 = vector.shape_cast %67 : vector<1x20x1xf32> to vector<20x1xf32>
    %69 = vector.broadcast %68 : vector<20x1xf32> to vector<20x16xf32>
    %70 = arith.mulf %3, %69 : vector<20x16xf32>
    %c4_44 = arith.constant 4 : index
    %c0_45 = arith.constant 0 : index
    %c0_46 = arith.constant 0 : index
    %71 = vector.load %arg4[%c4_44, %c0_45, %c0_46] : memref<32x20x1xf32, #tpu.memory_space<vmem>>, vector<1x20x1xf32>
    %72 = vector.shape_cast %71 : vector<1x20x1xf32> to vector<20x1xf32>
    %73 = vector.broadcast %72 : vector<20x1xf32> to vector<20x16xf32>
    %74 = arith.addf %70, %73 : vector<20x16xf32>
    %cst_47 = arith.constant 0.000000e+00 : f32
    %75 = vector.broadcast %cst_47 : f32 to vector<20x16xf32>
    %76 = arith.maximumf %74, %75 : vector<20x16xf32>
    %c4_48 = arith.constant 4 : index
    %c0_49 = arith.constant 0 : index
    %c0_50 = arith.constant 0 : index
    %77 = vector.load %arg5[%c4_48, %c0_49, %c0_50] : memref<32x20x1xf32, #tpu.memory_space<vmem>>, vector<1x20x1xf32>
    %78 = vector.shape_cast %77 : vector<1x20x1xf32> to vector<20x1xf32>
    %79 = vector.broadcast %78 : vector<20x1xf32> to vector<20x16xf32>
    %80 = arith.mulf %76, %79 : vector<20x16xf32>
    %81 = arith.addf %66, %80 : vector<20x16xf32>
    %c5 = arith.constant 5 : index
    %c0_51 = arith.constant 0 : index
    %c0_52 = arith.constant 0 : index
    %82 = vector.load %arg3[%c5, %c0_51, %c0_52] : memref<32x20x1xf32, #tpu.memory_space<vmem>>, vector<1x20x1xf32>
    %83 = vector.shape_cast %82 : vector<1x20x1xf32> to vector<20x1xf32>
    %84 = vector.broadcast %83 : vector<20x1xf32> to vector<20x16xf32>
    %85 = arith.mulf %3, %84 : vector<20x16xf32>
    %c5_53 = arith.constant 5 : index
    %c0_54 = arith.constant 0 : index
    %c0_55 = arith.constant 0 : index
    %86 = vector.load %arg4[%c5_53, %c0_54, %c0_55] : memref<32x20x1xf32, #tpu.memory_space<vmem>>, vector<1x20x1xf32>
    %87 = vector.shape_cast %86 : vector<1x20x1xf32> to vector<20x1xf32>
    %88 = vector.broadcast %87 : vector<20x1xf32> to vector<20x16xf32>
    %89 = arith.addf %85, %88 : vector<20x16xf32>
    %cst_56 = arith.constant 0.000000e+00 : f32
    %90 = vector.broadcast %cst_56 : f32 to vector<20x16xf32>
    %91 = arith.maximumf %89, %90 : vector<20x16xf32>
    %c5_57 = arith.constant 5 : index
    %c0_58 = arith.constant 0 : index
    %c0_59 = arith.constant 0 : index
    %92 = vector.load %arg5[%c5_57, %c0_58, %c0_59] : memref<32x20x1xf32, #tpu.memory_space<vmem>>, vector<1x20x1xf32>
    %93 = vector.shape_cast %92 : vector<1x20x1xf32> to vector<20x1xf32>
    %94 = vector.broadcast %93 : vector<20x1xf32> to vector<20x16xf32>
    %95 = arith.mulf %91, %94 : vector<20x16xf32>
    %96 = arith.addf %81, %95 : vector<20x16xf32>
    %c6 = arith.constant 6 : index
    %c0_60 = arith.constant 0 : index
    %c0_61 = arith.constant 0 : index
    %97 = vector.load %arg3[%c6, %c0_60, %c0_61] : memref<32x20x1xf32, #tpu.memory_space<vmem>>, vector<1x20x1xf32>
    %98 = vector.shape_cast %97 : vector<1x20x1xf32> to vector<20x1xf32>
    %99 = vector.broadcast %98 : vector<20x1xf32> to vector<20x16xf32>
    %100 = arith.mulf %3, %99 : vector<20x16xf32>
    %c6_62 = arith.constant 6 : index
    %c0_63 = arith.constant 0 : index
    %c0_64 = arith.constant 0 : index
    %101 = vector.load %arg4[%c6_62, %c0_63, %c0_64] : memref<32x20x1xf32, #tpu.memory_space<vmem>>, vector<1x20x1xf32>
    %102 = vector.shape_cast %101 : vector<1x20x1xf32> to vector<20x1xf32>
    %103 = vector.broadcast %102 : vector<20x1xf32> to vector<20x16xf32>
    %104 = arith.addf %100, %103 : vector<20x16xf32>
    %cst_65 = arith.constant 0.000000e+00 : f32
    %105 = vector.broadcast %cst_65 : f32 to vector<20x16xf32>
    %106 = arith.maximumf %104, %105 : vector<20x16xf32>
    %c6_66 = arith.constant 6 : index
    %c0_67 = arith.constant 0 : index
    %c0_68 = arith.constant 0 : index
    %107 = vector.load %arg5[%c6_66, %c0_67, %c0_68] : memref<32x20x1xf32, #tpu.memory_space<vmem>>, vector<1x20x1xf32>
    %108 = vector.shape_cast %107 : vector<1x20x1xf32> to vector<20x1xf32>
    %109 = vector.broadcast %108 : vector<20x1xf32> to vector<20x16xf32>
    %110 = arith.mulf %106, %109 : vector<20x16xf32>
    %111 = arith.addf %96, %110 : vector<20x16xf32>
    %c7 = arith.constant 7 : index
    %c0_69 = arith.constant 0 : index
    %c0_70 = arith.constant 0 : index
    %112 = vector.load %arg3[%c7, %c0_69, %c0_70] : memref<32x20x1xf32, #tpu.memory_space<vmem>>, vector<1x20x1xf32>
    %113 = vector.shape_cast %112 : vector<1x20x1xf32> to vector<20x1xf32>
    %114 = vector.broadcast %113 : vector<20x1xf32> to vector<20x16xf32>
    %115 = arith.mulf %3, %114 : vector<20x16xf32>
    %c7_71 = arith.constant 7 : index
    %c0_72 = arith.constant 0 : index
    %c0_73 = arith.constant 0 : index
    %116 = vector.load %arg4[%c7_71, %c0_72, %c0_73] : memref<32x20x1xf32, #tpu.memory_space<vmem>>, vector<1x20x1xf32>
    %117 = vector.shape_cast %116 : vector<1x20x1xf32> to vector<20x1xf32>
    %118 = vector.broadcast %117 : vector<20x1xf32> to vector<20x16xf32>
    %119 = arith.addf %115, %118 : vector<20x16xf32>
    %cst_74 = arith.constant 0.000000e+00 : f32
    %120 = vector.broadcast %cst_74 : f32 to vector<20x16xf32>
    %121 = arith.maximumf %119, %120 : vector<20x16xf32>
    %c7_75 = arith.constant 7 : index
    %c0_76 = arith.constant 0 : index
    %c0_77 = arith.constant 0 : index
    %122 = vector.load %arg5[%c7_75, %c0_76, %c0_77] : memref<32x20x1xf32, #tpu.memory_space<vmem>>, vector<1x20x1xf32>
    %123 = vector.shape_cast %122 : vector<1x20x1xf32> to vector<20x1xf32>
    %124 = vector.broadcast %123 : vector<20x1xf32> to vector<20x16xf32>
    %125 = arith.mulf %121, %124 : vector<20x16xf32>
    %126 = arith.addf %111, %125 : vector<20x16xf32>
    %c8 = arith.constant 8 : index
    %c0_78 = arith.constant 0 : index
    %c0_79 = arith.constant 0 : index
    %127 = vector.load %arg3[%c8, %c0_78, %c0_79] : memref<32x20x1xf32, #tpu.memory_space<vmem>>, vector<1x20x1xf32>
    %128 = vector.shape_cast %127 : vector<1x20x1xf32> to vector<20x1xf32>
    %129 = vector.broadcast %128 : vector<20x1xf32> to vector<20x16xf32>
    %130 = arith.mulf %3, %129 : vector<20x16xf32>
    %c8_80 = arith.constant 8 : index
    %c0_81 = arith.constant 0 : index
    %c0_82 = arith.constant 0 : index
    %131 = vector.load %arg4[%c8_80, %c0_81, %c0_82] : memref<32x20x1xf32, #tpu.memory_space<vmem>>, vector<1x20x1xf32>
    %132 = vector.shape_cast %131 : vector<1x20x1xf32> to vector<20x1xf32>
    %133 = vector.broadcast %132 : vector<20x1xf32> to vector<20x16xf32>
    %134 = arith.addf %130, %133 : vector<20x16xf32>
    %cst_83 = arith.constant 0.000000e+00 : f32
    %135 = vector.broadcast %cst_83 : f32 to vector<20x16xf32>
    %136 = arith.maximumf %134, %135 : vector<20x16xf32>
    %c8_84 = arith.constant 8 : index
    %c0_85 = arith.constant 0 : index
    %c0_86 = arith.constant 0 : index
    %137 = vector.load %arg5[%c8_84, %c0_85, %c0_86] : memref<32x20x1xf32, #tpu.memory_space<vmem>>, vector<1x20x1xf32>
    %138 = vector.shape_cast %137 : vector<1x20x1xf32> to vector<20x1xf32>
    %139 = vector.broadcast %138 : vector<20x1xf32> to vector<20x16xf32>
    %140 = arith.mulf %136, %139 : vector<20x16xf32>
    %141 = arith.addf %126, %140 : vector<20x16xf32>
    %c9 = arith.constant 9 : index
    %c0_87 = arith.constant 0 : index
    %c0_88 = arith.constant 0 : index
    %142 = vector.load %arg3[%c9, %c0_87, %c0_88] : memref<32x20x1xf32, #tpu.memory_space<vmem>>, vector<1x20x1xf32>
    %143 = vector.shape_cast %142 : vector<1x20x1xf32> to vector<20x1xf32>
    %144 = vector.broadcast %143 : vector<20x1xf32> to vector<20x16xf32>
    %145 = arith.mulf %3, %144 : vector<20x16xf32>
    %c9_89 = arith.constant 9 : index
    %c0_90 = arith.constant 0 : index
    %c0_91 = arith.constant 0 : index
    %146 = vector.load %arg4[%c9_89, %c0_90, %c0_91] : memref<32x20x1xf32, #tpu.memory_space<vmem>>, vector<1x20x1xf32>
    %147 = vector.shape_cast %146 : vector<1x20x1xf32> to vector<20x1xf32>
    %148 = vector.broadcast %147 : vector<20x1xf32> to vector<20x16xf32>
    %149 = arith.addf %145, %148 : vector<20x16xf32>
    %cst_92 = arith.constant 0.000000e+00 : f32
    %150 = vector.broadcast %cst_92 : f32 to vector<20x16xf32>
    %151 = arith.maximumf %149, %150 : vector<20x16xf32>
    %c9_93 = arith.constant 9 : index
    %c0_94 = arith.constant 0 : index
    %c0_95 = arith.constant 0 : index
    %152 = vector.load %arg5[%c9_93, %c0_94, %c0_95] : memref<32x20x1xf32, #tpu.memory_space<vmem>>, vector<1x20x1xf32>
    %153 = vector.shape_cast %152 : vector<1x20x1xf32> to vector<20x1xf32>
    %154 = vector.broadcast %153 : vector<20x1xf32> to vector<20x16xf32>
    %155 = arith.mulf %151, %154 : vector<20x16xf32>
    %156 = arith.addf %141, %155 : vector<20x16xf32>
    %c10 = arith.constant 10 : index
    %c0_96 = arith.constant 0 : index
    %c0_97 = arith.constant 0 : index
    %157 = vector.load %arg3[%c10, %c0_96, %c0_97] : memref<32x20x1xf32, #tpu.memory_space<vmem>>, vector<1x20x1xf32>
    %158 = vector.shape_cast %157 : vector<1x20x1xf32> to vector<20x1xf32>
    %159 = vector.broadcast %158 : vector<20x1xf32> to vector<20x16xf32>
    %160 = arith.mulf %3, %159 : vector<20x16xf32>
    %c10_98 = arith.constant 10 : index
    %c0_99 = arith.constant 0 : index
    %c0_100 = arith.constant 0 : index
    %161 = vector.load %arg4[%c10_98, %c0_99, %c0_100] : memref<32x20x1xf32, #tpu.memory_space<vmem>>, vector<1x20x1xf32>
    %162 = vector.shape_cast %161 : vector<1x20x1xf32> to vector<20x1xf32>
    %163 = vector.broadcast %162 : vector<20x1xf32> to vector<20x16xf32>
    %164 = arith.addf %160, %163 : vector<20x16xf32>
    %cst_101 = arith.constant 0.000000e+00 : f32
    %165 = vector.broadcast %cst_101 : f32 to vector<20x16xf32>
    %166 = arith.maximumf %164, %165 : vector<20x16xf32>
    %c10_102 = arith.constant 10 : index
    %c0_103 = arith.constant 0 : index
    %c0_104 = arith.constant 0 : index
    %167 = vector.load %arg5[%c10_102, %c0_103, %c0_104] : memref<32x20x1xf32, #tpu.memory_space<vmem>>, vector<1x20x1xf32>
    %168 = vector.shape_cast %167 : vector<1x20x1xf32> to vector<20x1xf32>
    %169 = vector.broadcast %168 : vector<20x1xf32> to vector<20x16xf32>
    %170 = arith.mulf %166, %169 : vector<20x16xf32>
    %171 = arith.addf %156, %170 : vector<20x16xf32>
    %c11 = arith.constant 11 : index
    %c0_105 = arith.constant 0 : index
    %c0_106 = arith.constant 0 : index
    %172 = vector.load %arg3[%c11, %c0_105, %c0_106] : memref<32x20x1xf32, #tpu.memory_space<vmem>>, vector<1x20x1xf32>
    %173 = vector.shape_cast %172 : vector<1x20x1xf32> to vector<20x1xf32>
    %174 = vector.broadcast %173 : vector<20x1xf32> to vector<20x16xf32>
    %175 = arith.mulf %3, %174 : vector<20x16xf32>
    %c11_107 = arith.constant 11 : index
    %c0_108 = arith.constant 0 : index
    %c0_109 = arith.constant 0 : index
    %176 = vector.load %arg4[%c11_107, %c0_108, %c0_109] : memref<32x20x1xf32, #tpu.memory_space<vmem>>, vector<1x20x1xf32>
    %177 = vector.shape_cast %176 : vector<1x20x1xf32> to vector<20x1xf32>
    %178 = vector.broadcast %177 : vector<20x1xf32> to vector<20x16xf32>
    %179 = arith.addf %175, %178 : vector<20x16xf32>
    %cst_110 = arith.constant 0.000000e+00 : f32
    %180 = vector.broadcast %cst_110 : f32 to vector<20x16xf32>
    %181 = arith.maximumf %179, %180 : vector<20x16xf32>
    %c11_111 = arith.constant 11 : index
    %c0_112 = arith.constant 0 : index
    %c0_113 = arith.constant 0 : index
    %182 = vector.load %arg5[%c11_111, %c0_112, %c0_113] : memref<32x20x1xf32, #tpu.memory_space<vmem>>, vector<1x20x1xf32>
    %183 = vector.shape_cast %182 : vector<1x20x1xf32> to vector<20x1xf32>
    %184 = vector.broadcast %183 : vector<20x1xf32> to vector<20x16xf32>
    %185 = arith.mulf %181, %184 : vector<20x16xf32>
    %186 = arith.addf %171, %185 : vector<20x16xf32>
    %c12 = arith.constant 12 : index
    %c0_114 = arith.constant 0 : index
    %c0_115 = arith.constant 0 : index
    %187 = vector.load %arg3[%c12, %c0_114, %c0_115] : memref<32x20x1xf32, #tpu.memory_space<vmem>>, vector<1x20x1xf32>
    %188 = vector.shape_cast %187 : vector<1x20x1xf32> to vector<20x1xf32>
    %189 = vector.broadcast %188 : vector<20x1xf32> to vector<20x16xf32>
    %190 = arith.mulf %3, %189 : vector<20x16xf32>
    %c12_116 = arith.constant 12 : index
    %c0_117 = arith.constant 0 : index
    %c0_118 = arith.constant 0 : index
    %191 = vector.load %arg4[%c12_116, %c0_117, %c0_118] : memref<32x20x1xf32, #tpu.memory_space<vmem>>, vector<1x20x1xf32>
    %192 = vector.shape_cast %191 : vector<1x20x1xf32> to vector<20x1xf32>
    %193 = vector.broadcast %192 : vector<20x1xf32> to vector<20x16xf32>
    %194 = arith.addf %190, %193 : vector<20x16xf32>
    %cst_119 = arith.constant 0.000000e+00 : f32
    %195 = vector.broadcast %cst_119 : f32 to vector<20x16xf32>
    %196 = arith.maximumf %194, %195 : vector<20x16xf32>
    %c12_120 = arith.constant 12 : index
    %c0_121 = arith.constant 0 : index
    %c0_122 = arith.constant 0 : index
    %197 = vector.load %arg5[%c12_120, %c0_121, %c0_122] : memref<32x20x1xf32, #tpu.memory_space<vmem>>, vector<1x20x1xf32>
    %198 = vector.shape_cast %197 : vector<1x20x1xf32> to vector<20x1xf32>
    %199 = vector.broadcast %198 : vector<20x1xf32> to vector<20x16xf32>
    %200 = arith.mulf %196, %199 : vector<20x16xf32>
    %201 = arith.addf %186, %200 : vector<20x16xf32>
    %c13 = arith.constant 13 : index
    %c0_123 = arith.constant 0 : index
    %c0_124 = arith.constant 0 : index
    %202 = vector.load %arg3[%c13, %c0_123, %c0_124] : memref<32x20x1xf32, #tpu.memory_space<vmem>>, vector<1x20x1xf32>
    %203 = vector.shape_cast %202 : vector<1x20x1xf32> to vector<20x1xf32>
    %204 = vector.broadcast %203 : vector<20x1xf32> to vector<20x16xf32>
    %205 = arith.mulf %3, %204 : vector<20x16xf32>
    %c13_125 = arith.constant 13 : index
    %c0_126 = arith.constant 0 : index
    %c0_127 = arith.constant 0 : index
    %206 = vector.load %arg4[%c13_125, %c0_126, %c0_127] : memref<32x20x1xf32, #tpu.memory_space<vmem>>, vector<1x20x1xf32>
    %207 = vector.shape_cast %206 : vector<1x20x1xf32> to vector<20x1xf32>
    %208 = vector.broadcast %207 : vector<20x1xf32> to vector<20x16xf32>
    %209 = arith.addf %205, %208 : vector<20x16xf32>
    %cst_128 = arith.constant 0.000000e+00 : f32
    %210 = vector.broadcast %cst_128 : f32 to vector<20x16xf32>
    %211 = arith.maximumf %209, %210 : vector<20x16xf32>
    %c13_129 = arith.constant 13 : index
    %c0_130 = arith.constant 0 : index
    %c0_131 = arith.constant 0 : index
    %212 = vector.load %arg5[%c13_129, %c0_130, %c0_131] : memref<32x20x1xf32, #tpu.memory_space<vmem>>, vector<1x20x1xf32>
    %213 = vector.shape_cast %212 : vector<1x20x1xf32> to vector<20x1xf32>
    %214 = vector.broadcast %213 : vector<20x1xf32> to vector<20x16xf32>
    %215 = arith.mulf %211, %214 : vector<20x16xf32>
    %216 = arith.addf %201, %215 : vector<20x16xf32>
    %c14 = arith.constant 14 : index
    %c0_132 = arith.constant 0 : index
    %c0_133 = arith.constant 0 : index
    %217 = vector.load %arg3[%c14, %c0_132, %c0_133] : memref<32x20x1xf32, #tpu.memory_space<vmem>>, vector<1x20x1xf32>
    %218 = vector.shape_cast %217 : vector<1x20x1xf32> to vector<20x1xf32>
    %219 = vector.broadcast %218 : vector<20x1xf32> to vector<20x16xf32>
    %220 = arith.mulf %3, %219 : vector<20x16xf32>
    %c14_134 = arith.constant 14 : index
    %c0_135 = arith.constant 0 : index
    %c0_136 = arith.constant 0 : index
    %221 = vector.load %arg4[%c14_134, %c0_135, %c0_136] : memref<32x20x1xf32, #tpu.memory_space<vmem>>, vector<1x20x1xf32>
    %222 = vector.shape_cast %221 : vector<1x20x1xf32> to vector<20x1xf32>
    %223 = vector.broadcast %222 : vector<20x1xf32> to vector<20x16xf32>
    %224 = arith.addf %220, %223 : vector<20x16xf32>
    %cst_137 = arith.constant 0.000000e+00 : f32
    %225 = vector.broadcast %cst_137 : f32 to vector<20x16xf32>
    %226 = arith.maximumf %224, %225 : vector<20x16xf32>
    %c14_138 = arith.constant 14 : index
    %c0_139 = arith.constant 0 : index
    %c0_140 = arith.constant 0 : index
    %227 = vector.load %arg5[%c14_138, %c0_139, %c0_140] : memref<32x20x1xf32, #tpu.memory_space<vmem>>, vector<1x20x1xf32>
    %228 = vector.shape_cast %227 : vector<1x20x1xf32> to vector<20x1xf32>
    %229 = vector.broadcast %228 : vector<20x1xf32> to vector<20x16xf32>
    %230 = arith.mulf %226, %229 : vector<20x16xf32>
    %231 = arith.addf %216, %230 : vector<20x16xf32>
    %c15 = arith.constant 15 : index
    %c0_141 = arith.constant 0 : index
    %c0_142 = arith.constant 0 : index
    %232 = vector.load %arg3[%c15, %c0_141, %c0_142] : memref<32x20x1xf32, #tpu.memory_space<vmem>>, vector<1x20x1xf32>
    %233 = vector.shape_cast %232 : vector<1x20x1xf32> to vector<20x1xf32>
    %234 = vector.broadcast %233 : vector<20x1xf32> to vector<20x16xf32>
    %235 = arith.mulf %3, %234 : vector<20x16xf32>
    %c15_143 = arith.constant 15 : index
    %c0_144 = arith.constant 0 : index
    %c0_145 = arith.constant 0 : index
    %236 = vector.load %arg4[%c15_143, %c0_144, %c0_145] : memref<32x20x1xf32, #tpu.memory_space<vmem>>, vector<1x20x1xf32>
    %237 = vector.shape_cast %236 : vector<1x20x1xf32> to vector<20x1xf32>
    %238 = vector.broadcast %237 : vector<20x1xf32> to vector<20x16xf32>
    %239 = arith.addf %235, %238 : vector<20x16xf32>
    %cst_146 = arith.constant 0.000000e+00 : f32
    %240 = vector.broadcast %cst_146 : f32 to vector<20x16xf32>
    %241 = arith.maximumf %239, %240 : vector<20x16xf32>
    %c15_147 = arith.constant 15 : index
    %c0_148 = arith.constant 0 : index
    %c0_149 = arith.constant 0 : index
    %242 = vector.load %arg5[%c15_147, %c0_148, %c0_149] : memref<32x20x1xf32, #tpu.memory_space<vmem>>, vector<1x20x1xf32>
    %243 = vector.shape_cast %242 : vector<1x20x1xf32> to vector<20x1xf32>
    %244 = vector.broadcast %243 : vector<20x1xf32> to vector<20x16xf32>
    %245 = arith.mulf %241, %244 : vector<20x16xf32>
    %246 = arith.addf %231, %245 : vector<20x16xf32>
    %c16 = arith.constant 16 : index
    %c0_150 = arith.constant 0 : index
    %c0_151 = arith.constant 0 : index
    %247 = vector.load %arg3[%c16, %c0_150, %c0_151] : memref<32x20x1xf32, #tpu.memory_space<vmem>>, vector<1x20x1xf32>
    %248 = vector.shape_cast %247 : vector<1x20x1xf32> to vector<20x1xf32>
    %249 = vector.broadcast %248 : vector<20x1xf32> to vector<20x16xf32>
    %250 = arith.mulf %3, %249 : vector<20x16xf32>
    %c16_152 = arith.constant 16 : index
    %c0_153 = arith.constant 0 : index
    %c0_154 = arith.constant 0 : index
    %251 = vector.load %arg4[%c16_152, %c0_153, %c0_154] : memref<32x20x1xf32, #tpu.memory_space<vmem>>, vector<1x20x1xf32>
    %252 = vector.shape_cast %251 : vector<1x20x1xf32> to vector<20x1xf32>
    %253 = vector.broadcast %252 : vector<20x1xf32> to vector<20x16xf32>
    %254 = arith.addf %250, %253 : vector<20x16xf32>
    %cst_155 = arith.constant 0.000000e+00 : f32
    %255 = vector.broadcast %cst_155 : f32 to vector<20x16xf32>
    %256 = arith.maximumf %254, %255 : vector<20x16xf32>
    %c16_156 = arith.constant 16 : index
    %c0_157 = arith.constant 0 : index
    %c0_158 = arith.constant 0 : index
    %257 = vector.load %arg5[%c16_156, %c0_157, %c0_158] : memref<32x20x1xf32, #tpu.memory_space<vmem>>, vector<1x20x1xf32>
    %258 = vector.shape_cast %257 : vector<1x20x1xf32> to vector<20x1xf32>
    %259 = vector.broadcast %258 : vector<20x1xf32> to vector<20x16xf32>
    %260 = arith.mulf %256, %259 : vector<20x16xf32>
    %261 = arith.addf %246, %260 : vector<20x16xf32>
    %c17 = arith.constant 17 : index
    %c0_159 = arith.constant 0 : index
    %c0_160 = arith.constant 0 : index
    %262 = vector.load %arg3[%c17, %c0_159, %c0_160] : memref<32x20x1xf32, #tpu.memory_space<vmem>>, vector<1x20x1xf32>
    %263 = vector.shape_cast %262 : vector<1x20x1xf32> to vector<20x1xf32>
    %264 = vector.broadcast %263 : vector<20x1xf32> to vector<20x16xf32>
    %265 = arith.mulf %3, %264 : vector<20x16xf32>
    %c17_161 = arith.constant 17 : index
    %c0_162 = arith.constant 0 : index
    %c0_163 = arith.constant 0 : index
    %266 = vector.load %arg4[%c17_161, %c0_162, %c0_163] : memref<32x20x1xf32, #tpu.memory_space<vmem>>, vector<1x20x1xf32>
    %267 = vector.shape_cast %266 : vector<1x20x1xf32> to vector<20x1xf32>
    %268 = vector.broadcast %267 : vector<20x1xf32> to vector<20x16xf32>
    %269 = arith.addf %265, %268 : vector<20x16xf32>
    %cst_164 = arith.constant 0.000000e+00 : f32
    %270 = vector.broadcast %cst_164 : f32 to vector<20x16xf32>
    %271 = arith.maximumf %269, %270 : vector<20x16xf32>
    %c17_165 = arith.constant 17 : index
    %c0_166 = arith.constant 0 : index
    %c0_167 = arith.constant 0 : index
    %272 = vector.load %arg5[%c17_165, %c0_166, %c0_167] : memref<32x20x1xf32, #tpu.memory_space<vmem>>, vector<1x20x1xf32>
    %273 = vector.shape_cast %272 : vector<1x20x1xf32> to vector<20x1xf32>
    %274 = vector.broadcast %273 : vector<20x1xf32> to vector<20x16xf32>
    %275 = arith.mulf %271, %274 : vector<20x16xf32>
    %276 = arith.addf %261, %275 : vector<20x16xf32>
    %c18 = arith.constant 18 : index
    %c0_168 = arith.constant 0 : index
    %c0_169 = arith.constant 0 : index
    %277 = vector.load %arg3[%c18, %c0_168, %c0_169] : memref<32x20x1xf32, #tpu.memory_space<vmem>>, vector<1x20x1xf32>
    %278 = vector.shape_cast %277 : vector<1x20x1xf32> to vector<20x1xf32>
    %279 = vector.broadcast %278 : vector<20x1xf32> to vector<20x16xf32>
    %280 = arith.mulf %3, %279 : vector<20x16xf32>
    %c18_170 = arith.constant 18 : index
    %c0_171 = arith.constant 0 : index
    %c0_172 = arith.constant 0 : index
    %281 = vector.load %arg4[%c18_170, %c0_171, %c0_172] : memref<32x20x1xf32, #tpu.memory_space<vmem>>, vector<1x20x1xf32>
    %282 = vector.shape_cast %281 : vector<1x20x1xf32> to vector<20x1xf32>
    %283 = vector.broadcast %282 : vector<20x1xf32> to vector<20x16xf32>
    %284 = arith.addf %280, %283 : vector<20x16xf32>
    %cst_173 = arith.constant 0.000000e+00 : f32
    %285 = vector.broadcast %cst_173 : f32 to vector<20x16xf32>
    %286 = arith.maximumf %284, %285 : vector<20x16xf32>
    %c18_174 = arith.constant 18 : index
    %c0_175 = arith.constant 0 : index
    %c0_176 = arith.constant 0 : index
    %287 = vector.load %arg5[%c18_174, %c0_175, %c0_176] : memref<32x20x1xf32, #tpu.memory_space<vmem>>, vector<1x20x1xf32>
    %288 = vector.shape_cast %287 : vector<1x20x1xf32> to vector<20x1xf32>
    %289 = vector.broadcast %288 : vector<20x1xf32> to vector<20x16xf32>
    %290 = arith.mulf %286, %289 : vector<20x16xf32>
    %291 = arith.addf %276, %290 : vector<20x16xf32>
    %c19 = arith.constant 19 : index
    %c0_177 = arith.constant 0 : index
    %c0_178 = arith.constant 0 : index
    %292 = vector.load %arg3[%c19, %c0_177, %c0_178] : memref<32x20x1xf32, #tpu.memory_space<vmem>>, vector<1x20x1xf32>
    %293 = vector.shape_cast %292 : vector<1x20x1xf32> to vector<20x1xf32>
    %294 = vector.broadcast %293 : vector<20x1xf32> to vector<20x16xf32>
    %295 = arith.mulf %3, %294 : vector<20x16xf32>
    %c19_179 = arith.constant 19 : index
    %c0_180 = arith.constant 0 : index
    %c0_181 = arith.constant 0 : index
    %296 = vector.load %arg4[%c19_179, %c0_180, %c0_181] : memref<32x20x1xf32, #tpu.memory_space<vmem>>, vector<1x20x1xf32>
    %297 = vector.shape_cast %296 : vector<1x20x1xf32> to vector<20x1xf32>
    %298 = vector.broadcast %297 : vector<20x1xf32> to vector<20x16xf32>
    %299 = arith.addf %295, %298 : vector<20x16xf32>
    %cst_182 = arith.constant 0.000000e+00 : f32
    %300 = vector.broadcast %cst_182 : f32 to vector<20x16xf32>
    %301 = arith.maximumf %299, %300 : vector<20x16xf32>
    %c19_183 = arith.constant 19 : index
    %c0_184 = arith.constant 0 : index
    %c0_185 = arith.constant 0 : index
    %302 = vector.load %arg5[%c19_183, %c0_184, %c0_185] : memref<32x20x1xf32, #tpu.memory_space<vmem>>, vector<1x20x1xf32>
    %303 = vector.shape_cast %302 : vector<1x20x1xf32> to vector<20x1xf32>
    %304 = vector.broadcast %303 : vector<20x1xf32> to vector<20x16xf32>
    %305 = arith.mulf %301, %304 : vector<20x16xf32>
    %306 = arith.addf %291, %305 : vector<20x16xf32>
    %c20 = arith.constant 20 : index
    %c0_186 = arith.constant 0 : index
    %c0_187 = arith.constant 0 : index
    %307 = vector.load %arg3[%c20, %c0_186, %c0_187] : memref<32x20x1xf32, #tpu.memory_space<vmem>>, vector<1x20x1xf32>
    %308 = vector.shape_cast %307 : vector<1x20x1xf32> to vector<20x1xf32>
    %309 = vector.broadcast %308 : vector<20x1xf32> to vector<20x16xf32>
    %310 = arith.mulf %3, %309 : vector<20x16xf32>
    %c20_188 = arith.constant 20 : index
    %c0_189 = arith.constant 0 : index
    %c0_190 = arith.constant 0 : index
    %311 = vector.load %arg4[%c20_188, %c0_189, %c0_190] : memref<32x20x1xf32, #tpu.memory_space<vmem>>, vector<1x20x1xf32>
    %312 = vector.shape_cast %311 : vector<1x20x1xf32> to vector<20x1xf32>
    %313 = vector.broadcast %312 : vector<20x1xf32> to vector<20x16xf32>
    %314 = arith.addf %310, %313 : vector<20x16xf32>
    %cst_191 = arith.constant 0.000000e+00 : f32
    %315 = vector.broadcast %cst_191 : f32 to vector<20x16xf32>
    %316 = arith.maximumf %314, %315 : vector<20x16xf32>
    %c20_192 = arith.constant 20 : index
    %c0_193 = arith.constant 0 : index
    %c0_194 = arith.constant 0 : index
    %317 = vector.load %arg5[%c20_192, %c0_193, %c0_194] : memref<32x20x1xf32, #tpu.memory_space<vmem>>, vector<1x20x1xf32>
    %318 = vector.shape_cast %317 : vector<1x20x1xf32> to vector<20x1xf32>
    %319 = vector.broadcast %318 : vector<20x1xf32> to vector<20x16xf32>
    %320 = arith.mulf %316, %319 : vector<20x16xf32>
    %321 = arith.addf %306, %320 : vector<20x16xf32>
    %c21 = arith.constant 21 : index
    %c0_195 = arith.constant 0 : index
    %c0_196 = arith.constant 0 : index
    %322 = vector.load %arg3[%c21, %c0_195, %c0_196] : memref<32x20x1xf32, #tpu.memory_space<vmem>>, vector<1x20x1xf32>
    %323 = vector.shape_cast %322 : vector<1x20x1xf32> to vector<20x1xf32>
    %324 = vector.broadcast %323 : vector<20x1xf32> to vector<20x16xf32>
    %325 = arith.mulf %3, %324 : vector<20x16xf32>
    %c21_197 = arith.constant 21 : index
    %c0_198 = arith.constant 0 : index
    %c0_199 = arith.constant 0 : index
    %326 = vector.load %arg4[%c21_197, %c0_198, %c0_199] : memref<32x20x1xf32, #tpu.memory_space<vmem>>, vector<1x20x1xf32>
    %327 = vector.shape_cast %326 : vector<1x20x1xf32> to vector<20x1xf32>
    %328 = vector.broadcast %327 : vector<20x1xf32> to vector<20x16xf32>
    %329 = arith.addf %325, %328 : vector<20x16xf32>
    %cst_200 = arith.constant 0.000000e+00 : f32
    %330 = vector.broadcast %cst_200 : f32 to vector<20x16xf32>
    %331 = arith.maximumf %329, %330 : vector<20x16xf32>
    %c21_201 = arith.constant 21 : index
    %c0_202 = arith.constant 0 : index
    %c0_203 = arith.constant 0 : index
    %332 = vector.load %arg5[%c21_201, %c0_202, %c0_203] : memref<32x20x1xf32, #tpu.memory_space<vmem>>, vector<1x20x1xf32>
    %333 = vector.shape_cast %332 : vector<1x20x1xf32> to vector<20x1xf32>
    %334 = vector.broadcast %333 : vector<20x1xf32> to vector<20x16xf32>
    %335 = arith.mulf %331, %334 : vector<20x16xf32>
    %336 = arith.addf %321, %335 : vector<20x16xf32>
    %c22 = arith.constant 22 : index
    %c0_204 = arith.constant 0 : index
    %c0_205 = arith.constant 0 : index
    %337 = vector.load %arg3[%c22, %c0_204, %c0_205] : memref<32x20x1xf32, #tpu.memory_space<vmem>>, vector<1x20x1xf32>
    %338 = vector.shape_cast %337 : vector<1x20x1xf32> to vector<20x1xf32>
    %339 = vector.broadcast %338 : vector<20x1xf32> to vector<20x16xf32>
    %340 = arith.mulf %3, %339 : vector<20x16xf32>
    %c22_206 = arith.constant 22 : index
    %c0_207 = arith.constant 0 : index
    %c0_208 = arith.constant 0 : index
    %341 = vector.load %arg4[%c22_206, %c0_207, %c0_208] : memref<32x20x1xf32, #tpu.memory_space<vmem>>, vector<1x20x1xf32>
    %342 = vector.shape_cast %341 : vector<1x20x1xf32> to vector<20x1xf32>
    %343 = vector.broadcast %342 : vector<20x1xf32> to vector<20x16xf32>
    %344 = arith.addf %340, %343 : vector<20x16xf32>
    %cst_209 = arith.constant 0.000000e+00 : f32
    %345 = vector.broadcast %cst_209 : f32 to vector<20x16xf32>
    %346 = arith.maximumf %344, %345 : vector<20x16xf32>
    %c22_210 = arith.constant 22 : index
    %c0_211 = arith.constant 0 : index
    %c0_212 = arith.constant 0 : index
    %347 = vector.load %arg5[%c22_210, %c0_211, %c0_212] : memref<32x20x1xf32, #tpu.memory_space<vmem>>, vector<1x20x1xf32>
    %348 = vector.shape_cast %347 : vector<1x20x1xf32> to vector<20x1xf32>
    %349 = vector.broadcast %348 : vector<20x1xf32> to vector<20x16xf32>
    %350 = arith.mulf %346, %349 : vector<20x16xf32>
    %351 = arith.addf %336, %350 : vector<20x16xf32>
    %c23 = arith.constant 23 : index
    %c0_213 = arith.constant 0 : index
    %c0_214 = arith.constant 0 : index
    %352 = vector.load %arg3[%c23, %c0_213, %c0_214] : memref<32x20x1xf32, #tpu.memory_space<vmem>>, vector<1x20x1xf32>
    %353 = vector.shape_cast %352 : vector<1x20x1xf32> to vector<20x1xf32>
    %354 = vector.broadcast %353 : vector<20x1xf32> to vector<20x16xf32>
    %355 = arith.mulf %3, %354 : vector<20x16xf32>
    %c23_215 = arith.constant 23 : index
    %c0_216 = arith.constant 0 : index
    %c0_217 = arith.constant 0 : index
    %356 = vector.load %arg4[%c23_215, %c0_216, %c0_217] : memref<32x20x1xf32, #tpu.memory_space<vmem>>, vector<1x20x1xf32>
    %357 = vector.shape_cast %356 : vector<1x20x1xf32> to vector<20x1xf32>
    %358 = vector.broadcast %357 : vector<20x1xf32> to vector<20x16xf32>
    %359 = arith.addf %355, %358 : vector<20x16xf32>
    %cst_218 = arith.constant 0.000000e+00 : f32
    %360 = vector.broadcast %cst_218 : f32 to vector<20x16xf32>
    %361 = arith.maximumf %359, %360 : vector<20x16xf32>
    %c23_219 = arith.constant 23 : index
    %c0_220 = arith.constant 0 : index
    %c0_221 = arith.constant 0 : index
    %362 = vector.load %arg5[%c23_219, %c0_220, %c0_221] : memref<32x20x1xf32, #tpu.memory_space<vmem>>, vector<1x20x1xf32>
    %363 = vector.shape_cast %362 : vector<1x20x1xf32> to vector<20x1xf32>
    %364 = vector.broadcast %363 : vector<20x1xf32> to vector<20x16xf32>
    %365 = arith.mulf %361, %364 : vector<20x16xf32>
    %366 = arith.addf %351, %365 : vector<20x16xf32>
    %c24 = arith.constant 24 : index
    %c0_222 = arith.constant 0 : index
    %c0_223 = arith.constant 0 : index
    %367 = vector.load %arg3[%c24, %c0_222, %c0_223] : memref<32x20x1xf32, #tpu.memory_space<vmem>>, vector<1x20x1xf32>
    %368 = vector.shape_cast %367 : vector<1x20x1xf32> to vector<20x1xf32>
    %369 = vector.broadcast %368 : vector<20x1xf32> to vector<20x16xf32>
    %370 = arith.mulf %3, %369 : vector<20x16xf32>
    %c24_224 = arith.constant 24 : index
    %c0_225 = arith.constant 0 : index
    %c0_226 = arith.constant 0 : index
    %371 = vector.load %arg4[%c24_224, %c0_225, %c0_226] : memref<32x20x1xf32, #tpu.memory_space<vmem>>, vector<1x20x1xf32>
    %372 = vector.shape_cast %371 : vector<1x20x1xf32> to vector<20x1xf32>
    %373 = vector.broadcast %372 : vector<20x1xf32> to vector<20x16xf32>
    %374 = arith.addf %370, %373 : vector<20x16xf32>
    %cst_227 = arith.constant 0.000000e+00 : f32
    %375 = vector.broadcast %cst_227 : f32 to vector<20x16xf32>
    %376 = arith.maximumf %374, %375 : vector<20x16xf32>
    %c24_228 = arith.constant 24 : index
    %c0_229 = arith.constant 0 : index
    %c0_230 = arith.constant 0 : index
    %377 = vector.load %arg5[%c24_228, %c0_229, %c0_230] : memref<32x20x1xf32, #tpu.memory_space<vmem>>, vector<1x20x1xf32>
    %378 = vector.shape_cast %377 : vector<1x20x1xf32> to vector<20x1xf32>
    %379 = vector.broadcast %378 : vector<20x1xf32> to vector<20x16xf32>
    %380 = arith.mulf %376, %379 : vector<20x16xf32>
    %381 = arith.addf %366, %380 : vector<20x16xf32>
    %c25 = arith.constant 25 : index
    %c0_231 = arith.constant 0 : index
    %c0_232 = arith.constant 0 : index
    %382 = vector.load %arg3[%c25, %c0_231, %c0_232] : memref<32x20x1xf32, #tpu.memory_space<vmem>>, vector<1x20x1xf32>
    %383 = vector.shape_cast %382 : vector<1x20x1xf32> to vector<20x1xf32>
    %384 = vector.broadcast %383 : vector<20x1xf32> to vector<20x16xf32>
    %385 = arith.mulf %3, %384 : vector<20x16xf32>
    %c25_233 = arith.constant 25 : index
    %c0_234 = arith.constant 0 : index
    %c0_235 = arith.constant 0 : index
    %386 = vector.load %arg4[%c25_233, %c0_234, %c0_235] : memref<32x20x1xf32, #tpu.memory_space<vmem>>, vector<1x20x1xf32>
    %387 = vector.shape_cast %386 : vector<1x20x1xf32> to vector<20x1xf32>
    %388 = vector.broadcast %387 : vector<20x1xf32> to vector<20x16xf32>
    %389 = arith.addf %385, %388 : vector<20x16xf32>
    %cst_236 = arith.constant 0.000000e+00 : f32
    %390 = vector.broadcast %cst_236 : f32 to vector<20x16xf32>
    %391 = arith.maximumf %389, %390 : vector<20x16xf32>
    %c25_237 = arith.constant 25 : index
    %c0_238 = arith.constant 0 : index
    %c0_239 = arith.constant 0 : index
    %392 = vector.load %arg5[%c25_237, %c0_238, %c0_239] : memref<32x20x1xf32, #tpu.memory_space<vmem>>, vector<1x20x1xf32>
    %393 = vector.shape_cast %392 : vector<1x20x1xf32> to vector<20x1xf32>
    %394 = vector.broadcast %393 : vector<20x1xf32> to vector<20x16xf32>
    %395 = arith.mulf %391, %394 : vector<20x16xf32>
    %396 = arith.addf %381, %395 : vector<20x16xf32>
    %c26 = arith.constant 26 : index
    %c0_240 = arith.constant 0 : index
    %c0_241 = arith.constant 0 : index
    %397 = vector.load %arg3[%c26, %c0_240, %c0_241] : memref<32x20x1xf32, #tpu.memory_space<vmem>>, vector<1x20x1xf32>
    %398 = vector.shape_cast %397 : vector<1x20x1xf32> to vector<20x1xf32>
    %399 = vector.broadcast %398 : vector<20x1xf32> to vector<20x16xf32>
    %400 = arith.mulf %3, %399 : vector<20x16xf32>
    %c26_242 = arith.constant 26 : index
    %c0_243 = arith.constant 0 : index
    %c0_244 = arith.constant 0 : index
    %401 = vector.load %arg4[%c26_242, %c0_243, %c0_244] : memref<32x20x1xf32, #tpu.memory_space<vmem>>, vector<1x20x1xf32>
    %402 = vector.shape_cast %401 : vector<1x20x1xf32> to vector<20x1xf32>
    %403 = vector.broadcast %402 : vector<20x1xf32> to vector<20x16xf32>
    %404 = arith.addf %400, %403 : vector<20x16xf32>
    %cst_245 = arith.constant 0.000000e+00 : f32
    %405 = vector.broadcast %cst_245 : f32 to vector<20x16xf32>
    %406 = arith.maximumf %404, %405 : vector<20x16xf32>
    %c26_246 = arith.constant 26 : index
    %c0_247 = arith.constant 0 : index
    %c0_248 = arith.constant 0 : index
    %407 = vector.load %arg5[%c26_246, %c0_247, %c0_248] : memref<32x20x1xf32, #tpu.memory_space<vmem>>, vector<1x20x1xf32>
    %408 = vector.shape_cast %407 : vector<1x20x1xf32> to vector<20x1xf32>
    %409 = vector.broadcast %408 : vector<20x1xf32> to vector<20x16xf32>
    %410 = arith.mulf %406, %409 : vector<20x16xf32>
    %411 = arith.addf %396, %410 : vector<20x16xf32>
    %c27 = arith.constant 27 : index
    %c0_249 = arith.constant 0 : index
    %c0_250 = arith.constant 0 : index
    %412 = vector.load %arg3[%c27, %c0_249, %c0_250] : memref<32x20x1xf32, #tpu.memory_space<vmem>>, vector<1x20x1xf32>
    %413 = vector.shape_cast %412 : vector<1x20x1xf32> to vector<20x1xf32>
    %414 = vector.broadcast %413 : vector<20x1xf32> to vector<20x16xf32>
    %415 = arith.mulf %3, %414 : vector<20x16xf32>
    %c27_251 = arith.constant 27 : index
    %c0_252 = arith.constant 0 : index
    %c0_253 = arith.constant 0 : index
    %416 = vector.load %arg4[%c27_251, %c0_252, %c0_253] : memref<32x20x1xf32, #tpu.memory_space<vmem>>, vector<1x20x1xf32>
    %417 = vector.shape_cast %416 : vector<1x20x1xf32> to vector<20x1xf32>
    %418 = vector.broadcast %417 : vector<20x1xf32> to vector<20x16xf32>
    %419 = arith.addf %415, %418 : vector<20x16xf32>
    %cst_254 = arith.constant 0.000000e+00 : f32
    %420 = vector.broadcast %cst_254 : f32 to vector<20x16xf32>
    %421 = arith.maximumf %419, %420 : vector<20x16xf32>
    %c27_255 = arith.constant 27 : index
    %c0_256 = arith.constant 0 : index
    %c0_257 = arith.constant 0 : index
    %422 = vector.load %arg5[%c27_255, %c0_256, %c0_257] : memref<32x20x1xf32, #tpu.memory_space<vmem>>, vector<1x20x1xf32>
    %423 = vector.shape_cast %422 : vector<1x20x1xf32> to vector<20x1xf32>
    %424 = vector.broadcast %423 : vector<20x1xf32> to vector<20x16xf32>
    %425 = arith.mulf %421, %424 : vector<20x16xf32>
    %426 = arith.addf %411, %425 : vector<20x16xf32>
    %c28 = arith.constant 28 : index
    %c0_258 = arith.constant 0 : index
    %c0_259 = arith.constant 0 : index
    %427 = vector.load %arg3[%c28, %c0_258, %c0_259] : memref<32x20x1xf32, #tpu.memory_space<vmem>>, vector<1x20x1xf32>
    %428 = vector.shape_cast %427 : vector<1x20x1xf32> to vector<20x1xf32>
    %429 = vector.broadcast %428 : vector<20x1xf32> to vector<20x16xf32>
    %430 = arith.mulf %3, %429 : vector<20x16xf32>
    %c28_260 = arith.constant 28 : index
    %c0_261 = arith.constant 0 : index
    %c0_262 = arith.constant 0 : index
    %431 = vector.load %arg4[%c28_260, %c0_261, %c0_262] : memref<32x20x1xf32, #tpu.memory_space<vmem>>, vector<1x20x1xf32>
    %432 = vector.shape_cast %431 : vector<1x20x1xf32> to vector<20x1xf32>
    %433 = vector.broadcast %432 : vector<20x1xf32> to vector<20x16xf32>
    %434 = arith.addf %430, %433 : vector<20x16xf32>
    %cst_263 = arith.constant 0.000000e+00 : f32
    %435 = vector.broadcast %cst_263 : f32 to vector<20x16xf32>
    %436 = arith.maximumf %434, %435 : vector<20x16xf32>
    %c28_264 = arith.constant 28 : index
    %c0_265 = arith.constant 0 : index
    %c0_266 = arith.constant 0 : index
    %437 = vector.load %arg5[%c28_264, %c0_265, %c0_266] : memref<32x20x1xf32, #tpu.memory_space<vmem>>, vector<1x20x1xf32>
    %438 = vector.shape_cast %437 : vector<1x20x1xf32> to vector<20x1xf32>
    %439 = vector.broadcast %438 : vector<20x1xf32> to vector<20x16xf32>
    %440 = arith.mulf %436, %439 : vector<20x16xf32>
    %441 = arith.addf %426, %440 : vector<20x16xf32>
    %c29 = arith.constant 29 : index
    %c0_267 = arith.constant 0 : index
    %c0_268 = arith.constant 0 : index
    %442 = vector.load %arg3[%c29, %c0_267, %c0_268] : memref<32x20x1xf32, #tpu.memory_space<vmem>>, vector<1x20x1xf32>
    %443 = vector.shape_cast %442 : vector<1x20x1xf32> to vector<20x1xf32>
    %444 = vector.broadcast %443 : vector<20x1xf32> to vector<20x16xf32>
    %445 = arith.mulf %3, %444 : vector<20x16xf32>
    %c29_269 = arith.constant 29 : index
    %c0_270 = arith.constant 0 : index
    %c0_271 = arith.constant 0 : index
    %446 = vector.load %arg4[%c29_269, %c0_270, %c0_271] : memref<32x20x1xf32, #tpu.memory_space<vmem>>, vector<1x20x1xf32>
    %447 = vector.shape_cast %446 : vector<1x20x1xf32> to vector<20x1xf32>
    %448 = vector.broadcast %447 : vector<20x1xf32> to vector<20x16xf32>
    %449 = arith.addf %445, %448 : vector<20x16xf32>
    %cst_272 = arith.constant 0.000000e+00 : f32
    %450 = vector.broadcast %cst_272 : f32 to vector<20x16xf32>
    %451 = arith.maximumf %449, %450 : vector<20x16xf32>
    %c29_273 = arith.constant 29 : index
    %c0_274 = arith.constant 0 : index
    %c0_275 = arith.constant 0 : index
    %452 = vector.load %arg5[%c29_273, %c0_274, %c0_275] : memref<32x20x1xf32, #tpu.memory_space<vmem>>, vector<1x20x1xf32>
    %453 = vector.shape_cast %452 : vector<1x20x1xf32> to vector<20x1xf32>
    %454 = vector.broadcast %453 : vector<20x1xf32> to vector<20x16xf32>
    %455 = arith.mulf %451, %454 : vector<20x16xf32>
    %456 = arith.addf %441, %455 : vector<20x16xf32>
    %c30 = arith.constant 30 : index
    %c0_276 = arith.constant 0 : index
    %c0_277 = arith.constant 0 : index
    %457 = vector.load %arg3[%c30, %c0_276, %c0_277] : memref<32x20x1xf32, #tpu.memory_space<vmem>>, vector<1x20x1xf32>
    %458 = vector.shape_cast %457 : vector<1x20x1xf32> to vector<20x1xf32>
    %459 = vector.broadcast %458 : vector<20x1xf32> to vector<20x16xf32>
    %460 = arith.mulf %3, %459 : vector<20x16xf32>
    %c30_278 = arith.constant 30 : index
    %c0_279 = arith.constant 0 : index
    %c0_280 = arith.constant 0 : index
    %461 = vector.load %arg4[%c30_278, %c0_279, %c0_280] : memref<32x20x1xf32, #tpu.memory_space<vmem>>, vector<1x20x1xf32>
    %462 = vector.shape_cast %461 : vector<1x20x1xf32> to vector<20x1xf32>
    %463 = vector.broadcast %462 : vector<20x1xf32> to vector<20x16xf32>
    %464 = arith.addf %460, %463 : vector<20x16xf32>
    %cst_281 = arith.constant 0.000000e+00 : f32
    %465 = vector.broadcast %cst_281 : f32 to vector<20x16xf32>
    %466 = arith.maximumf %464, %465 : vector<20x16xf32>
    %c30_282 = arith.constant 30 : index
    %c0_283 = arith.constant 0 : index
    %c0_284 = arith.constant 0 : index
    %467 = vector.load %arg5[%c30_282, %c0_283, %c0_284] : memref<32x20x1xf32, #tpu.memory_space<vmem>>, vector<1x20x1xf32>
    %468 = vector.shape_cast %467 : vector<1x20x1xf32> to vector<20x1xf32>
    %469 = vector.broadcast %468 : vector<20x1xf32> to vector<20x16xf32>
    %470 = arith.mulf %466, %469 : vector<20x16xf32>
    %471 = arith.addf %456, %470 : vector<20x16xf32>
    %c31 = arith.constant 31 : index
    %c0_285 = arith.constant 0 : index
    %c0_286 = arith.constant 0 : index
    %472 = vector.load %arg3[%c31, %c0_285, %c0_286] : memref<32x20x1xf32, #tpu.memory_space<vmem>>, vector<1x20x1xf32>
    %473 = vector.shape_cast %472 : vector<1x20x1xf32> to vector<20x1xf32>
    %474 = vector.broadcast %473 : vector<20x1xf32> to vector<20x16xf32>
    %475 = arith.mulf %3, %474 : vector<20x16xf32>
    %c31_287 = arith.constant 31 : index
    %c0_288 = arith.constant 0 : index
    %c0_289 = arith.constant 0 : index
    %476 = vector.load %arg4[%c31_287, %c0_288, %c0_289] : memref<32x20x1xf32, #tpu.memory_space<vmem>>, vector<1x20x1xf32>
    %477 = vector.shape_cast %476 : vector<1x20x1xf32> to vector<20x1xf32>
    %478 = vector.broadcast %477 : vector<20x1xf32> to vector<20x16xf32>
    %479 = arith.addf %475, %478 : vector<20x16xf32>
    %cst_290 = arith.constant 0.000000e+00 : f32
    %480 = vector.broadcast %cst_290 : f32 to vector<20x16xf32>
    %481 = arith.maximumf %479, %480 : vector<20x16xf32>
    %c31_291 = arith.constant 31 : index
    %c0_292 = arith.constant 0 : index
    %c0_293 = arith.constant 0 : index
    %482 = vector.load %arg5[%c31_291, %c0_292, %c0_293] : memref<32x20x1xf32, #tpu.memory_space<vmem>>, vector<1x20x1xf32>
    %483 = vector.shape_cast %482 : vector<1x20x1xf32> to vector<20x1xf32>
    %484 = vector.broadcast %483 : vector<20x1xf32> to vector<20x16xf32>
    %485 = arith.mulf %481, %484 : vector<20x16xf32>
    %486 = arith.addf %471, %485 : vector<20x16xf32>
    %c0_294 = arith.constant 0 : index
    %c0_295 = arith.constant 0 : index
    %487 = vector.load %arg7[%c0_294, %c0_295] : memref<20x16xf32, #tpu.memory_space<vmem>>, vector<20x16xf32>
    tpu.vector_store %arg7[%c0_294, %c0_295], %486 {strides = array<i32>} : memref<20x16xf32, #tpu.memory_space<vmem>>, vector<20x16xf32>,
    return
  }
  func.func @transform_0(%arg0: i32) -> (i32, i32) {
    %c0_i32 = arith.constant 0 : i32
    %c0_i32_0 = arith.constant 0 : i32
    return %arg0, %c0_i32 : i32, i32
  }
  func.func @transform_1(%arg0: i32) -> (i32, i32) {
    %c0_i32 = arith.constant 0 : i32
    %c0_i32_0 = arith.constant 0 : i32
    %c0_i32_1 = arith.constant 0 : i32
    return %c0_i32, %c0_i32_0 : i32, i32
  }
  func.func @transform_2(%arg0: i32) -> (i32, i32, i32) {
    %c0_i32 = arith.constant 0 : i32
    %c0_i32_0 = arith.constant 0 : i32
    %c0_i32_1 = arith.constant 0 : i32
    %c0_i32_2 = arith.constant 0 : i32
    return %c0_i32, %c0_i32_0, %c0_i32_1 : i32, i32, i32
  }
  func.func @transform_3(%arg0: i32) -> (i32, i32, i32) {
    %c0_i32 = arith.constant 0 : i32
    %c0_i32_0 = arith.constant 0 : i32
    %c0_i32_1 = arith.constant 0 : i32
    %c0_i32_2 = arith.constant 0 : i32
    return %c0_i32, %c0_i32_0, %c0_i32_1 : i32, i32, i32
  }
  func.func @transform_4(%arg0: i32) -> (i32, i32, i32) {
    %c0_i32 = arith.constant 0 : i32
    %c0_i32_0 = arith.constant 0 : i32
    %c0_i32_1 = arith.constant 0 : i32
    %c0_i32_2 = arith.constant 0 : i32
    return %c0_i32, %c0_i32_0, %c0_i32_1 : i32, i32, i32
  }
  func.func @transform_5(%arg0: i32) -> (i32, i32) {
    %c0_i32 = arith.constant 0 : i32
    %c0_i32_0 = arith.constant 0 : i32
    %c0_i32_1 = arith.constant 0 : i32
    return %c0_i32, %c0_i32_0 : i32, i32
  }
  func.func @transform_6(%arg0: i32) -> (i32, i32) {
    %c0_i32 = arith.constant 0 : i32
    %c0_i32_0 = arith.constant 0 : i32
    return %c0_i32, %arg0 : i32, i32
  }
}

</mosaic_0001>

<llo_original>
// kernel: tpu_custom_call.1
$region0: #{tpu_custom_call.1}
  #allocation0 [shape = 'u32[]', space=smem, size = 0x4, offset = 0x4, fixed_abs, tag = 'smem constant byte address 0x4 - core index']
  #allocation1 [shape = 'u32[144,128]{1,0:T(1,128)}', space=vmem, size = 0x12000, scoped, tag = 'internal scratch']
  %s0 = inlined_call_operand.vmem [shape: f32[16,1280], index: 0, kind: input, shape index: {}]
  %s1 = inlined_call_operand.vmem [shape: f32[1280,20], index: 1, kind: input, shape index: {}]
  %s2 = inlined_call_operand.vmem [shape: f32[32,20,1], index: 2, kind: input, shape index: {}]
  %s3 = inlined_call_operand.vmem [shape: f32[32,20,1], index: 3, kind: input, shape index: {}]
  %s4 = inlined_call_operand.vmem [shape: f32[32,20,1], index: 4, kind: input, shape index: {}]
  %s5 = inlined_call_operand.vmem [shape: f32[20,1], index: 5, kind: input, shape index: {}]
  %s6 = inlined_call_operand.vmem [shape: f32[20,16], index: 6, kind: output, shape index: {}]
  %s7 = sld [smem:[#allocation0]]
  $region34: #{tpu_custom_call.1} parent=0
    _
  %s9 = ssub.s32 1, %s7
  %s10 = scalar_select 0, %s9, %s7
  // Predicated region
  $region2: #{tpu_custom_call.1} parent=0 // pred_check
    _
  $region3: #{tpu_custom_call.1} parent=0 // pred_check_branch
    %12 = sbr.rel (0) target = $region5
  $region4: #{tpu_custom_call.1} parent=0 // pred_region
    _
  $region5: #{tpu_custom_call.1} parent=0 // pred_fallthru
    _
  // Predicated region
  $region6: #{tpu_custom_call.1} parent=0 // pred_check
    _
  $region7: #{tpu_custom_call.1} parent=0 // pred_check_branch
    %14 = sbr.rel (0) target = $region9
  $region8: #{tpu_custom_call.1} parent=0 // pred_region
    _
  $region9: #{tpu_custom_call.1} parent=0 // pred_fallthru
    _
  // Predicated region
  $region10: #{tpu_custom_call.1} parent=0 // pred_check
    _
  $region11: #{tpu_custom_call.1} parent=0 // pred_check_branch
    %16 = sbr.rel (0) target = $region13
  $region12: #{tpu_custom_call.1} parent=0 // pred_region
    _
  $region13: #{tpu_custom_call.1} parent=0 // pred_fallthru
    _
  // Predicated region
  $region14: #{tpu_custom_call.1} parent=0 // pred_check
    _
  $region15: #{tpu_custom_call.1} parent=0 // pred_check_branch
    %18 = sbr.rel (0) target = $region17
  $region16: #{tpu_custom_call.1} parent=0 // pred_region
    _
  $region17: #{tpu_custom_call.1} parent=0 // pred_fallthru
    _
  // Predicated region
  $region18: #{tpu_custom_call.1} parent=0 // pred_check
    _
  $region19: #{tpu_custom_call.1} parent=0 // pred_check_branch
    %20 = sbr.rel (0) target = $region21
  $region20: #{tpu_custom_call.1} parent=0 // pred_region
    _
  $region21: #{tpu_custom_call.1} parent=0 // pred_fallthru
    _
  // Predicated region
  $region22: #{tpu_custom_call.1} parent=0 // pred_check
    _
  $region23: #{tpu_custom_call.1} parent=0 // pred_check_branch
    %22 = sbr.rel (0) target = $region25
  $region24: #{tpu_custom_call.1} parent=0 // pred_region
    _
  $region25: #{tpu_custom_call.1} parent=0 // pred_fallthru
    _
  %v23 = vld [vmem:[%s0] sm:$0xff]
  %v24 = vld [vmem:[%s0 + $0x8] sm:$0xff]
  %v25 = vld [vmem:[%s0 + $0x10] sm:$0xff]
  %v26 = vld [vmem:[%s0 + $0x18] sm:$0xff]
  %v27 = vld [vmem:[%s0 + $0x20] sm:$0xff]
  %v28 = vld [vmem:[%s0 + $0x28] sm:$0xff]
  %v29 = vld [vmem:[%s0 + $0x30] sm:$0xff]
  %v30 = vld [vmem:[%s0 + $0x38] sm:$0xff]
  %v31 = vld [vmem:[%s0 + $0x40] sm:$0xff]
  %v32 = vld [vmem:[%s0 + $0x48] sm:$0xff]
  %v33 = vld [vmem:[%s0 + $0x50] sm:$0xff]
  %v34 = vld [vmem:[%s0 + $0x58] sm:$0xff]
  %v35 = vld [vmem:[%s0 + $0x60] sm:$0xff]
  %v36 = vld [vmem:[%s0 + $0x68] sm:$0xff]
  %v37 = vld [vmem:[%s0 + $0x70] sm:$0xff]
  %v38 = vld [vmem:[%s0 + $0x78] sm:$0xff]
  %v39 = vld [vmem:[%s0 + $0x80] sm:$0xff]
  %v40 = vld [vmem:[%s0 + $0x88] sm:$0xff]
  %v41 = vld [vmem:[%s0 + $0x90] sm:$0xff]
  %v42 = vld [vmem:[%s0 + $0x98] sm:$0xff]
  %v43 = vld [vmem:[%s1] sm:$0xff]
  %v44 = vld [vmem:[%s1 + $0x8] sm:$0xff]
  %v45 = vld [vmem:[%s1 + $0x10] sm:$0xff]
  %v46 = vld [vmem:[%s1 + $0x18] sm:$0xff]
  %v47 = vld [vmem:[%s1 + $0x20] sm:$0xff]
  %v48 = vld [vmem:[%s1 + $0x28] sm:$0xff]
  %v49 = vld [vmem:[%s1 + $0x30] sm:$0xff]
  %v50 = vld [vmem:[%s1 + $0x38] sm:$0xff]
  %v51 = vld [vmem:[%s1 + $0x40] sm:$0xff]
  %v52 = vld [vmem:[%s1 + $0x48] sm:$0xff]
  %v53 = vld [vmem:[%s1 + $0x50] sm:$0xff]
  %v54 = vld [vmem:[%s1 + $0x58] sm:$0xff]
  %v55 = vld [vmem:[%s1 + $0x60] sm:$0xff]
  %v56 = vld [vmem:[%s1 + $0x68] sm:$0xff]
  %v57 = vld [vmem:[%s1 + $0x70] sm:$0xff]
  %v58 = vld [vmem:[%s1 + $0x78] sm:$0xff]
  %v59 = vld [vmem:[%s1 + $0x80] sm:$0xff]
  %v60 = vld [vmem:[%s1 + $0x88] sm:$0xff]
  %v61 = vld [vmem:[%s1 + $0x90] sm:$0xff]
  %v62 = vld [vmem:[%s1 + $0x98] sm:$0xff]
  %v63 = vld [vmem:[%s1 + $0xa0] sm:$0xff]
  %v64 = vld [vmem:[%s1 + $0xa8] sm:$0xff]
  %v65 = vld [vmem:[%s1 + $0xb0] sm:$0xff]
  %v66 = vld [vmem:[%s1 + $0xb8] sm:$0xff]
  %v67 = vld [vmem:[%s1 + $0xc0] sm:$0xff]
  %v68 = vld [vmem:[%s1 + $0xc8] sm:$0xff]
  %v69 = vld [vmem:[%s1 + $0xd0] sm:$0xff]
  %v70 = vld [vmem:[%s1 + $0xd8] sm:$0xff]
  %v71 = vld [vmem:[%s1 + $0xe0] sm:$0xff]
  %v72 = vld [vmem:[%s1 + $0xe8] sm:$0xff]
  %v73 = vld [vmem:[%s1 + $0xf0] sm:$0xff]
  %v74 = vld [vmem:[%s1 + $0xf8] sm:$0xff]
  %v75 = vld [vmem:[%s1 + $0x100] sm:$0xff]
  %v76 = vld [vmem:[%s1 + $0x108] sm:$0xff]
  %v77 = vld [vmem:[%s1 + $0x110] sm:$0xff]
  %v78 = vld [vmem:[%s1 + $0x118] sm:$0xff]
  %v79 = vld [vmem:[%s1 + $0x120] sm:$0xff]
  %v80 = vld [vmem:[%s1 + $0x128] sm:$0xff]
  %v81 = vld [vmem:[%s1 + $0x130] sm:$0xff]
  %v82 = vld [vmem:[%s1 + $0x138] sm:$0xff]
  %v83 = vld [vmem:[%s1 + $0x140] sm:$0xff]
  %v84 = vld [vmem:[%s1 + $0x148] sm:$0xff]
  %v85 = vld [vmem:[%s1 + $0x150] sm:$0xff]
  %v86 = vld [vmem:[%s1 + $0x158] sm:$0xff]
  %v87 = vld [vmem:[%s1 + $0x160] sm:$0xff]
  %v88 = vld [vmem:[%s1 + $0x168] sm:$0xff]
  %v89 = vld [vmem:[%s1 + $0x170] sm:$0xff]
  %v90 = vld [vmem:[%s1 + $0x178] sm:$0xff]
  %v91 = vld [vmem:[%s1 + $0x180] sm:$0xff]
  %v92 = vld [vmem:[%s1 + $0x188] sm:$0xff]
  %v93 = vld [vmem:[%s1 + $0x190] sm:$0xff]
  %v94 = vld [vmem:[%s1 + $0x198] sm:$0xff]
  %v95 = vld [vmem:[%s1 + $0x1a0] sm:$0xff]
  %v96 = vld [vmem:[%s1 + $0x1a8] sm:$0xff]
  %v97 = vld [vmem:[%s1 + $0x1b0] sm:$0xff]
  %v98 = vld [vmem:[%s1 + $0x1b8] sm:$0xff]
  %v99 = vld [vmem:[%s1 + $0x1c0] sm:$0xff]
  %v100 = vld [vmem:[%s1 + $0x1c8] sm:$0xff]
  %v101 = vld [vmem:[%s1 + $0x1d0] sm:$0xff]
  %v102 = vld [vmem:[%s1 + $0x1d8] sm:$0xff]
  %v103 = vld [vmem:[%s1 + $0x1e0] sm:$0xff]
  %v104 = vld [vmem:[%s1 + $0x1e8] sm:$0xff]
  %v105 = vld [vmem:[%s1 + $0x1f0] sm:$0xff]
  %v106 = vld [vmem:[%s1 + $0x1f8] sm:$0xff]
  %v107 = vld [vmem:[%s1 + $0x200] sm:$0xff]
  %v108 = vld [vmem:[%s1 + $0x208] sm:$0xff]
  %v109 = vld [vmem:[%s1 + $0x210] sm:$0xff]
  %v110 = vld [vmem:[%s1 + $0x218] sm:$0xff]
  %v111 = vld [vmem:[%s1 + $0x220] sm:$0xff]
  %v112 = vld [vmem:[%s1 + $0x228] sm:$0xff]
  %v113 = vld [vmem:[%s1 + $0x230] sm:$0xff]
  %v114 = vld [vmem:[%s1 + $0x238] sm:$0xff]
  %v115 = vld [vmem:[%s1 + $0x240] sm:$0xff]
  %v116 = vld [vmem:[%s1 + $0x248] sm:$0xff]
  %v117 = vld [vmem:[%s1 + $0x250] sm:$0xff]
  %v118 = vld [vmem:[%s1 + $0x258] sm:$0xff]
  %v119 = vld [vmem:[%s1 + $0x260] sm:$0xff]
  %v120 = vld [vmem:[%s1 + $0x268] sm:$0xff]
  %v121 = vld [vmem:[%s1 + $0x270] sm:$0xff]
  %v122 = vld [vmem:[%s1 + $0x278] sm:$0xff]
  %v123 = vld [vmem:[%s1 + $0x280] sm:$0xff]
  %v124 = vld [vmem:[%s1 + $0x288] sm:$0xff]
  %v125 = vld [vmem:[%s1 + $0x290] sm:$0xff]
  %v126 = vld [vmem:[%s1 + $0x298] sm:$0xff]
  %v127 = vld [vmem:[%s1 + $0x2a0] sm:$0xff]
  %v128 = vld [vmem:[%s1 + $0x2a8] sm:$0xff]
  %v129 = vld [vmem:[%s1 + $0x2b0] sm:$0xff]
  %v130 = vld [vmem:[%s1 + $0x2b8] sm:$0xff]
  %v131 = vld [vmem:[%s1 + $0x2c0] sm:$0xff]
  %v132 = vld [vmem:[%s1 + $0x2c8] sm:$0xff]
  %v133 = vld [vmem:[%s1 + $0x2d0] sm:$0xff]
  %v134 = vld [vmem:[%s1 + $0x2d8] sm:$0xff]
  %v135 = vld [vmem:[%s1 + $0x2e0] sm:$0xff]
  %v136 = vld [vmem:[%s1 + $0x2e8] sm:$0xff]
  %v137 = vld [vmem:[%s1 + $0x2f0] sm:$0xff]
  %v138 = vld [vmem:[%s1 + $0x2f8] sm:$0xff]
  %v139 = vld [vmem:[%s1 + $0x300] sm:$0xff]
  %v140 = vld [vmem:[%s1 + $0x308] sm:$0xff]
  %v141 = vld [vmem:[%s1 + $0x310] sm:$0xff]
  %v142 = vld [vmem:[%s1 + $0x318] sm:$0xff]
  %v143 = vld [vmem:[%s1 + $0x320] sm:$0xff]
  %v144 = vld [vmem:[%s1 + $0x328] sm:$0xff]
  %v145 = vld [vmem:[%s1 + $0x330] sm:$0xff]
  %v146 = vld [vmem:[%s1 + $0x338] sm:$0xff]
  %v147 = vld [vmem:[%s1 + $0x340] sm:$0xff]
  %v148 = vld [vmem:[%s1 + $0x348] sm:$0xff]
  %v149 = vld [vmem:[%s1 + $0x350] sm:$0xff]
  %v150 = vld [vmem:[%s1 + $0x358] sm:$0xff]
  %v151 = vld [vmem:[%s1 + $0x360] sm:$0xff]
  %v152 = vld [vmem:[%s1 + $0x368] sm:$0xff]
  %v153 = vld [vmem:[%s1 + $0x370] sm:$0xff]
  %v154 = vld [vmem:[%s1 + $0x378] sm:$0xff]
  %v155 = vld [vmem:[%s1 + $0x380] sm:$0xff]
  %v156 = vld [vmem:[%s1 + $0x388] sm:$0xff]
  %v157 = vld [vmem:[%s1 + $0x390] sm:$0xff]
  %v158 = vld [vmem:[%s1 + $0x398] sm:$0xff]
  %v159 = vld [vmem:[%s1 + $0x3a0] sm:$0xff]
  %v160 = vld [vmem:[%s1 + $0x3a8] sm:$0xff]
  %v161 = vld [vmem:[%s1 + $0x3b0] sm:$0xff]
  %v162 = vld [vmem:[%s1 + $0x3b8] sm:$0xff]
  %v163 = vld [vmem:[%s1 + $0x3c0] sm:$0xff]
  %v164 = vld [vmem:[%s1 + $0x3c8] sm:$0xff]
  %v165 = vld [vmem:[%s1 + $0x3d0] sm:$0xff]
  %v166 = vld [vmem:[%s1 + $0x3d8] sm:$0xff]
  %v167 = vld [vmem:[%s1 + $0x3e0] sm:$0xff]
  %v168 = vld [vmem:[%s1 + $0x3e8] sm:$0xff]
  %v169 = vld [vmem:[%s1 + $0x3f0] sm:$0xff]
  %v170 = vld [vmem:[%s1 + $0x3f8] sm:$0xff]
  %v171 = vld [vmem:[%s1 + $0x400] sm:$0xff]
  %v172 = vld [vmem:[%s1 + $0x408] sm:$0xff]
  %v173 = vld [vmem:[%s1 + $0x410] sm:$0xff]
  %v174 = vld [vmem:[%s1 + $0x418] sm:$0xff]
  %v175 = vld [vmem:[%s1 + $0x420] sm:$0xff]
  %v176 = vld [vmem:[%s1 + $0x428] sm:$0xff]
  %v177 = vld [vmem:[%s1 + $0x430] sm:$0xff]
  %v178 = vld [vmem:[%s1 + $0x438] sm:$0xff]
  %v179 = vld [vmem:[%s1 + $0x440] sm:$0xff]
  %v180 = vld [vmem:[%s1 + $0x448] sm:$0xff]
  %v181 = vld [vmem:[%s1 + $0x450] sm:$0xff]
  %v182 = vld [vmem:[%s1 + $0x458] sm:$0xff]
  %v183 = vld [vmem:[%s1 + $0x460] sm:$0xff]
  %v184 = vld [vmem:[%s1 + $0x468] sm:$0xff]
  %v185 = vld [vmem:[%s1 + $0x470] sm:$0xff]
  %v186 = vld [vmem:[%s1 + $0x478] sm:$0xff]
  %v187 = vld [vmem:[%s1 + $0x480] sm:$0xff]
  %v188 = vld [vmem:[%s1 + $0x488] sm:$0xff]
  %v189 = vld [vmem:[%s1 + $0x490] sm:$0xff]
  %v190 = vld [vmem:[%s1 + $0x498] sm:$0xff]
  %v191 = vld [vmem:[%s1 + $0x4a0] sm:$0xff]
  %v192 = vld [vmem:[%s1 + $0x4a8] sm:$0xff]
  %v193 = vld [vmem:[%s1 + $0x4b0] sm:$0xff]
  %v194 = vld [vmem:[%s1 + $0x4b8] sm:$0xff]
  %v195 = vld [vmem:[%s1 + $0x4c0] sm:$0xff]
  %v196 = vld [vmem:[%s1 + $0x4c8] sm:$0xff]
  %v197 = vld [vmem:[%s1 + $0x4d0] sm:$0xff]
  %v198 = vld [vmem:[%s1 + $0x4d8] sm:$0xff]
  %v199 = vld [vmem:[%s1 + $0x4e0] sm:$0xff]
  %v200 = vld [vmem:[%s1 + $0x4e8] sm:$0xff]
  %v201 = vld [vmem:[%s1 + $0x4f0] sm:$0xff]
  %v202 = vld [vmem:[%s1 + $0x4f8] sm:$0xff]
  %203 = vmatprep.subr.mxu0 0.0
  %204 = vmatpush1.msra.mxu0 %v43
  %205 = vmatprep.subr.mxu0 0.0
  %206 = vmatpush1.msra.mxu0 %v44
  %207 = vmatprep.subr.mxu0 0.0
  %208 = vmatpush1.msra.mxu0 %v45
  %209 = vmatprep.subr.mxu0 0.0
  %210 = vmatpush1.msra.mxu0 %v46
  %211 = vmatprep.subr.mxu0 0.0
  %212 = vmatpush1.msra.mxu0 %v47
  %213 = vmatprep.subr.mxu0 0.0
  %214 = vmatpush1.msra.mxu0 %v48
  %215 = vmatprep.subr.mxu0 0.0
  %216 = vmatpush1.msra.mxu0 %v49
  %217 = vmatprep.subr.mxu0 0.0
  %218 = vmatpush1.msra.mxu0 %v50
  %219 = vmatprep.subr.mxu0 0.0
  %220 = vmatpush1.msra.mxu0 %v51
  %221 = vmatprep.subr.mxu0 0.0
  %222 = vmatpush1.msra.mxu0 %v52
  %223 = vmatprep.subr.mxu0 0.0
  %224 = vmatpush1.msra.mxu0 %v53
  %225 = vmatprep.subr.mxu0 0.0
  %226 = vmatpush1.msra.mxu0 %v54
  %227 = vmatprep.subr.mxu0 0.0
  %228 = vmatpush1.msra.mxu0 %v55
  %229 = vmatprep.subr.mxu0 0.0
  %230 = vmatpush1.msra.mxu0 %v56
  %231 = vmatprep.subr.mxu0 0.0
  %232 = vmatpush1.msra.mxu0 %v57
  %233 = vmatprep.subr.mxu0 0.0
  %234 = vmatpush1.msra.mxu0 %v58
  %235 = vmatprep.subr.mxu0 0.0
  %236 = vmatpush1.msra.mxu0 %v59
  %237 = vmatprep.subr.mxu0 0.0
  %238 = vmatpush1.msra.mxu0 %v60
  %239 = vmatprep.subr.mxu0 0.0
  %240 = vmatpush1.msra.mxu0 %v61
  %241 = vmatprep.subr.mxu0 0.0
  %242 = vmatpush1.msra.mxu0 %v62
  %243 = vmatprep.subr.mxu0 0.0
  %244 = vmatpush1.msra.mxu0 %v63
  %245 = vmatprep.subr.mxu0 0.0
  %246 = vmatpush1.msra.mxu0 %v64
  %247 = vmatprep.subr.mxu0 0.0
  %248 = vmatpush1.msra.mxu0 %v65
  %249 = vmatprep.subr.mxu0 0.0
  %250 = vmatpush1.msra.mxu0 %v66
  %251 = vmatprep.subr.mxu0 0.0
  %252 = vmatpush1.msra.mxu0 %v67
  %253 = vmatprep.subr.mxu0 0.0
  %254 = vmatpush1.msra.mxu0 %v68
  %255 = vmatprep.subr.mxu0 0.0
  %256 = vmatpush1.msra.mxu0 %v69
  %257 = vmatprep.subr.mxu0 0.0
  %258 = vmatpush1.msra.mxu0 %v70
  %259 = vmatprep.subr.mxu0 0.0
  %260 = vmatpush1.msra.mxu0 %v71
  %261 = vmatprep.subr.mxu0 0.0
  %262 = vmatpush1.msra.mxu0 %v72
  %263 = vmatprep.subr.mxu0 0.0
  %264 = vmatpush1.msra.mxu0 %v73
  %265 = vmatprep.subr.mxu0 0.0
  %266 = vmatpush1.msra.mxu0 %v74
  %267 = vmatprep.mubr.f32.mxu0 %v24
  %268 = vmatmul.mubr.f32.gmra.mrb[0].mxu0 %v23
  %v269 = vpop.f32.mrb[0].mxu0
  %v270 = vadd.f32 0.0, %v269
  %v271 = vpop.f32.mrb[0].mxu0
  %272 = vmatprep.mubr.f32.mxu0 %v34
  %273 = vmatmul.mubr.f32.gmra.mrb[0].mxu0 %v33
  %v274 = vpop.f32.mrb[0].mxu0
  %v275 = vadd.f32 0.0, %v274
  %v276 = vpop.f32.mrb[0].mxu0
  %277 = vdwg.mxu0
  %278 = vmatprep.subr.mxu0 0.0
  %279 = vmatpush1.msra.mxu0 %v75
  %280 = vmatprep.subr.mxu0 0.0
  %281 = vmatpush1.msra.mxu0 %v76
  %282 = vmatprep.subr.mxu0 0.0
  %283 = vmatpush1.msra.mxu0 %v77
  %284 = vmatprep.subr.mxu0 0.0
  %285 = vmatpush1.msra.mxu0 %v78
  %286 = vmatprep.subr.mxu0 0.0
  %287 = vmatpush1.msra.mxu0 %v79
  %288 = vmatprep.subr.mxu0 0.0
  %289 = vmatpush1.msra.mxu0 %v80
  %290 = vmatprep.subr.mxu0 0.0
  %291 = vmatpush1.msra.mxu0 %v81
  %292 = vmatprep.subr.mxu0 0.0
  %293 = vmatpush1.msra.mxu0 %v82
  %294 = vmatprep.subr.mxu0 0.0
  %295 = vmatpush1.msra.mxu0 %v83
  %296 = vmatprep.subr.mxu0 0.0
  %297 = vmatpush1.msra.mxu0 %v84
  %298 = vmatprep.subr.mxu0 0.0
  %299 = vmatpush1.msra.mxu0 %v85
  %300 = vmatprep.subr.mxu0 0.0
  %301 = vmatpush1.msra.mxu0 %v86
  %302 = vmatprep.subr.mxu0 0.0
  %303 = vmatpush1.msra.mxu0 %v87
  %304 = vmatprep.subr.mxu0 0.0
  %305 = vmatpush1.msra.mxu0 %v88
  %306 = vmatprep.subr.mxu0 0.0
  %307 = vmatpush1.msra.mxu0 %v89
  %308 = vmatprep.subr.mxu0 0.0
  %309 = vmatpush1.msra.mxu0 %v90
  %310 = vmatprep.subr.mxu0 0.0
  %311 = vmatpush1.msra.mxu0 %v91
  %312 = vmatprep.subr.mxu0 0.0
  %313 = vmatpush1.msra.mxu0 %v92
  %314 = vmatprep.subr.mxu0 0.0
  %315 = vmatpush1.msra.mxu0 %v93
  %316 = vmatprep.subr.mxu0 0.0
  %317 = vmatpush1.msra.mxu0 %v94
  %318 = vmatprep.subr.mxu0 0.0
  %319 = vmatpush1.msra.mxu0 %v95
  %320 = vmatprep.subr.mxu0 0.0
  %321 = vmatpush1.msra.mxu0 %v96
  %322 = vmatprep.subr.mxu0 0.0
  %323 = vmatpush1.msra.mxu0 %v97
  %324 = vmatprep.subr.mxu0 0.0
  %325 = vmatpush1.msra.mxu0 %v98
  %326 = vmatprep.subr.mxu0 0.0
  %327 = vmatpush1.msra.mxu0 %v99
  %328 = vmatprep.subr.mxu0 0.0
  %329 = vmatpush1.msra.mxu0 %v100
  %330 = vmatprep.subr.mxu0 0.0
  %331 = vmatpush1.msra.mxu0 %v101
  %332 = vmatprep.subr.mxu0 0.0
  %333 = vmatpush1.msra.mxu0 %v102
  %334 = vmatprep.subr.mxu0 0.0
  %335 = vmatpush1.msra.mxu0 %v103
  %336 = vmatprep.subr.mxu0 0.0
  %337 = vmatpush1.msra.mxu0 %v104
  %338 = vmatprep.subr.mxu0 0.0
  %339 = vmatpush1.msra.mxu0 %v105
  %340 = vmatprep.subr.mxu0 0.0
  %341 = vmatpush1.msra.mxu0 %v106
  %342 = vmatprep.mubr.f32.mxu0 %v26
  %343 = vmatmul.mubr.f32.gmra.mrb[0].mxu0 %v25
  %v344 = vpop.f32.mrb[0].mxu0
  %v345 = vadd.f32 %v270, %v344
  %v346 = vpop.f32.mrb[0].mxu0
  %347 = vmatprep.mubr.f32.mxu0 %v36
  %348 = vmatmul.mubr.f32.gmra.mrb[0].mxu0 %v35
  %v349 = vpop.f32.mrb[0].mxu0
  %v350 = vadd.f32 %v275, %v349
  %v351 = vpop.f32.mrb[0].mxu0
  %352 = vdwg.mxu0
  %353 = vmatprep.subr.mxu0 0.0
  %354 = vmatpush1.msra.mxu0 %v107
  %355 = vmatprep.subr.mxu0 0.0
  %356 = vmatpush1.msra.mxu0 %v108
  %357 = vmatprep.subr.mxu0 0.0
  %358 = vmatpush1.msra.mxu0 %v109
  %359 = vmatprep.subr.mxu0 0.0
  %360 = vmatpush1.msra.mxu0 %v110
  %361 = vmatprep.subr.mxu0 0.0
  %362 = vmatpush1.msra.mxu0 %v111
  %363 = vmatprep.subr.mxu0 0.0
  %364 = vmatpush1.msra.mxu0 %v112
  %365 = vmatprep.subr.mxu0 0.0
  %366 = vmatpush1.msra.mxu0 %v113
  %367 = vmatprep.subr.mxu0 0.0
  %368 = vmatpush1.msra.mxu0 %v114
  %369 = vmatprep.subr.mxu0 0.0
  %370 = vmatpush1.msra.mxu0 %v115
  %371 = vmatprep.subr.mxu0 0.0
  %372 = vmatpush1.msra.mxu0 %v116
  %373 = vmatprep.subr.mxu0 0.0
  %374 = vmatpush1.msra.mxu0 %v117
  %375 = vmatprep.subr.mxu0 0.0
  %376 = vmatpush1.msra.mxu0 %v118
  %377 = vmatprep.subr.mxu0 0.0
  %378 = vmatpush1.msra.mxu0 %v119
  %379 = vmatprep.subr.mxu0 0.0
  %380 = vmatpush1.msra.mxu0 %v120
  %381 = vmatprep.subr.mxu0 0.0
  %382 = vmatpush1.msra.mxu0 %v121
  %383 = vmatprep.subr.mxu0 0.0
  %384 = vmatpush1.msra.mxu0 %v122
  %385 = vmatprep.subr.mxu0 0.0
  %386 = vmatpush1.msra.mxu0 %v123
  %387 = vmatprep.subr.mxu0 0.0
  %388 = vmatpush1.msra.mxu0 %v124
  %389 = vmatprep.subr.mxu0 0.0
  %390 = vmatpush1.msra.mxu0 %v125
  %391 = vmatprep.subr.mxu0 0.0
  %392 = vmatpush1.msra.mxu0 %v126
  %393 = vmatprep.subr.mxu0 0.0
  %394 = vmatpush1.msra.mxu0 %v127
  %395 = vmatprep.subr.mxu0 0.0
  %396 = vmatpush1.msra.mxu0 %v128
  %397 = vmatprep.subr.mxu0 0.0
  %398 = vmatpush1.msra.mxu0 %v129
  %399 = vmatprep.subr.mxu0 0.0
  %400 = vmatpush1.msra.mxu0 %v130
  %401 = vmatprep.subr.mxu0 0.0
  %402 = vmatpush1.msra.mxu0 %v131
  %403 = vmatprep.subr.mxu0 0.0
  %404 = vmatpush1.msra.mxu0 %v132
  %405 = vmatprep.subr.mxu0 0.0
  %406 = vmatpush1.msra.mxu0 %v133
  %407 = vmatprep.subr.mxu0 0.0
  %408 = vmatpush1.msra.mxu0 %v134
  %409 = vmatprep.subr.mxu0 0.0
  %410 = vmatpush1.msra.mxu0 %v135
  %411 = vmatprep.subr.mxu0 0.0
  %412 = vmatpush1.msra.mxu0 %v136
  %413 = vmatprep.subr.mxu0 0.0
  %414 = vmatpush1.msra.mxu0 %v137
  %415 = vmatprep.subr.mxu0 0.0
  %416 = vmatpush1.msra.mxu0 %v138
  %417 = vmatprep.mubr.f32.mxu0 %v28
  %418 = vmatmul.mubr.f32.gmra.mrb[0].mxu0 %v27
  %v419 = vpop.f32.mrb[0].mxu0
  %v420 = vadd.f32 %v345, %v419
  %v421 = vpop.f32.mrb[0].mxu0
  %422 = vmatprep.mubr.f32.mxu0 %v38
  %423 = vmatmul.mubr.f32.gmra.mrb[0].mxu0 %v37
  %v424 = vpop.f32.mrb[0].mxu0
  %v425 = vadd.f32 %v350, %v424
  %v426 = vpop.f32.mrb[0].mxu0
  %427 = vdwg.mxu0
  %428 = vmatprep.subr.mxu0 0.0
  %429 = vmatpush1.msra.mxu0 %v139
  %430 = vmatprep.subr.mxu0 0.0
  %431 = vmatpush1.msra.mxu0 %v140
  %432 = vmatprep.subr.mxu0 0.0
  %433 = vmatpush1.msra.mxu0 %v141
  %434 = vmatprep.subr.mxu0 0.0
  %435 = vmatpush1.msra.mxu0 %v142
  %436 = vmatprep.subr.mxu0 0.0
  %437 = vmatpush1.msra.mxu0 %v143
  %438 = vmatprep.subr.mxu0 0.0
  %439 = vmatpush1.msra.mxu0 %v144
  %440 = vmatprep.subr.mxu0 0.0
  %441 = vmatpush1.msra.mxu0 %v145
  %442 = vmatprep.subr.mxu0 0.0
  %443 = vmatpush1.msra.mxu0 %v146
  %444 = vmatprep.subr.mxu0 0.0
  %445 = vmatpush1.msra.mxu0 %v147
  %446 = vmatprep.subr.mxu0 0.0
  %447 = vmatpush1.msra.mxu0 %v148
  %448 = vmatprep.subr.mxu0 0.0
  %449 = vmatpush1.msra.mxu0 %v149
  %450 = vmatprep.subr.mxu0 0.0
  %451 = vmatpush1.msra.mxu0 %v150
  %452 = vmatprep.subr.mxu0 0.0
  %453 = vmatpush1.msra.mxu0 %v151
  %454 = vmatprep.subr.mxu0 0.0
  %455 = vmatpush1.msra.mxu0 %v152
  %456 = vmatprep.subr.mxu0 0.0
  %457 = vmatpush1.msra.mxu0 %v153
  %458 = vmatprep.subr.mxu0 0.0
  %459 = vmatpush1.msra.mxu0 %v154
  %460 = vmatprep.subr.mxu0 0.0
  %461 = vmatpush1.msra.mxu0 %v155
  %462 = vmatprep.subr.mxu0 0.0
  %463 = vmatpush1.msra.mxu0 %v156
  %464 = vmatprep.subr.mxu0 0.0
  %465 = vmatpush1.msra.mxu0 %v157
  %466 = vmatprep.subr.mxu0 0.0
  %467 = vmatpush1.msra.mxu0 %v158
  %468 = vmatprep.subr.mxu0 0.0
  %469 = vmatpush1.msra.mxu0 %v159
  %470 = vmatprep.subr.mxu0 0.0
  %471 = vmatpush1.msra.mxu0 %v160
  %472 = vmatprep.subr.mxu0 0.0
  %473 = vmatpush1.msra.mxu0 %v161
  %474 = vmatprep.subr.mxu0 0.0
  %475 = vmatpush1.msra.mxu0 %v162
  %476 = vmatprep.subr.mxu0 0.0
  %477 = vmatpush1.msra.mxu0 %v163
  %478 = vmatprep.subr.mxu0 0.0
  %479 = vmatpush1.msra.mxu0 %v164
  %480 = vmatprep.subr.mxu0 0.0
  %481 = vmatpush1.msra.mxu0 %v165
  %482 = vmatprep.subr.mxu0 0.0
  %483 = vmatpush1.msra.mxu0 %v166
  %484 = vmatprep.subr.mxu0 0.0
  %485 = vmatpush1.msra.mxu0 %v167
  %486 = vmatprep.subr.mxu0 0.0
  %487 = vmatpush1.msra.mxu0 %v168
  %488 = vmatprep.subr.mxu0 0.0
  %489 = vmatpush1.msra.mxu0 %v169
  %490 = vmatprep.subr.mxu0 0.0
  %491 = vmatpush1.msra.mxu0 %v170
  %492 = vmatprep.mubr.f32.mxu0 %v30
  %493 = vmatmul.mubr.f32.gmra.mrb[0].mxu0 %v29
  %v494 = vpop.f32.mrb[0].mxu0
  %v495 = vadd.f32 %v420, %v494
  %v496 = vpop.f32.mrb[0].mxu0
  %497 = vmatprep.mubr.f32.mxu0 %v40
  %498 = vmatmul.mubr.f32.gmra.mrb[0].mxu0 %v39
  %v499 = vpop.f32.mrb[0].mxu0
  %v500 = vadd.f32 %v425, %v499
  %v501 = vpop.f32.mrb[0].mxu0
  %502 = vdwg.mxu0
  %503 = vmatprep.subr.mxu0 0.0
  %504 = vmatpush1.msra.mxu0 %v171
  %505 = vmatprep.subr.mxu0 0.0
  %506 = vmatpush1.msra.mxu0 %v172
  %507 = vmatprep.subr.mxu0 0.0
  %508 = vmatpush1.msra.mxu0 %v173
  %509 = vmatprep.subr.mxu0 0.0
  %510 = vmatpush1.msra.mxu0 %v174
  %511 = vmatprep.subr.mxu0 0.0
  %512 = vmatpush1.msra.mxu0 %v175
  %513 = vmatprep.subr.mxu0 0.0
  %514 = vmatpush1.msra.mxu0 %v176
  %515 = vmatprep.subr.mxu0 0.0
  %516 = vmatpush1.msra.mxu0 %v177
  %517 = vmatprep.subr.mxu0 0.0
  %518 = vmatpush1.msra.mxu0 %v178
  %519 = vmatprep.subr.mxu0 0.0
  %520 = vmatpush1.msra.mxu0 %v179
  %521 = vmatprep.subr.mxu0 0.0
  %522 = vmatpush1.msra.mxu0 %v180
  %523 = vmatprep.subr.mxu0 0.0
  %524 = vmatpush1.msra.mxu0 %v181
  %525 = vmatprep.subr.mxu0 0.0
  %526 = vmatpush1.msra.mxu0 %v182
  %527 = vmatprep.subr.mxu0 0.0
  %528 = vmatpush1.msra.mxu0 %v183
  %529 = vmatprep.subr.mxu0 0.0
  %530 = vmatpush1.msra.mxu0 %v184
  %531 = vmatprep.subr.mxu0 0.0
  %532 = vmatpush1.msra.mxu0 %v185
  %533 = vmatprep.subr.mxu0 0.0
  %534 = vmatpush1.msra.mxu0 %v186
  %535 = vmatprep.subr.mxu0 0.0
  %536 = vmatpush1.msra.mxu0 %v187
  %537 = vmatprep.subr.mxu0 0.0
  %538 = vmatpush1.msra.mxu0 %v188
  %539 = vmatprep.subr.mxu0 0.0
  %540 = vmatpush1.msra.mxu0 %v189
  %541 = vmatprep.subr.mxu0 0.0
  %542 = vmatpush1.msra.mxu0 %v190
  %543 = vmatprep.subr.mxu0 0.0
  %544 = vmatpush1.msra.mxu0 %v191
  %545 = vmatprep.subr.mxu0 0.0
  %546 = vmatpush1.msra.mxu0 %v192
  %547 = vmatprep.subr.mxu0 0.0
  %548 = vmatpush1.msra.mxu0 %v193
  %549 = vmatprep.subr.mxu0 0.0
  %550 = vmatpush1.msra.mxu0 %v194
  %551 = vmatprep.subr.mxu0 0.0
  %552 = vmatpush1.msra.mxu0 %v195
  %553 = vmatprep.subr.mxu0 0.0
  %554 = vmatpush1.msra.mxu0 %v196
  %555 = vmatprep.subr.mxu0 0.0
  %556 = vmatpush1.msra.mxu0 %v197
  %557 = vmatprep.subr.mxu0 0.0
  %558 = vmatpush1.msra.mxu0 %v198
  %559 = vmatprep.subr.mxu0 0.0
  %560 = vmatpush1.msra.mxu0 %v199
  %561 = vmatprep.subr.mxu0 0.0
  %562 = vmatpush1.msra.mxu0 %v200
  %563 = vmatprep.subr.mxu0 0.0
  %564 = vmatpush1.msra.mxu0 %v201
  %565 = vmatprep.subr.mxu0 0.0
  %566 = vmatpush1.msra.mxu0 %v202
  %567 = vmatprep.mubr.f32.mxu0 %v32
  %568 = vmatmul.mubr.f32.gmra.mrb[0].mxu0 %v31
  %v569 = vpop.f32.mrb[0].mxu0
  %v570 = vadd.f32 %v495, %v569
  %v571 = vpop.f32.mrb[0].mxu0
  %572 = vmatprep.mubr.f32.mxu0 %v42
  %573 = vmatmul.mubr.f32.gmra.mrb[0].mxu0 %v41
  %v574 = vpop.f32.mrb[0].mxu0
  %v575 = vadd.f32 %v500, %v574
  %v576 = vpop.f32.mrb[0].mxu0
  %577 = vdwg.mxu0
  %578 = vxpose.xlu0.b32.start [1/16] %v570, 128
  %579 = vxpose.xlu0.b32.cont [2/16] %v575, 128
  %580 = vxpose.xlu0.b32.cont [3/16] 0.0, 128
  %581 = vxpose.xlu0.b32.cont [4/16] 0.0, 128
  %582 = vxpose.xlu0.b32.cont [5/16] 0.0, 128
  %583 = vxpose.xlu0.b32.cont [6/16] 0.0, 128
  %584 = vxpose.xlu0.b32.cont [7/16] 0.0, 128
  %585 = vxpose.xlu0.b32.cont [8/16] 0.0, 128
  %586 = vxpose.xlu0.b32.cont [9/16] 0.0, 128
  %587 = vxpose.xlu0.b32.cont [10/16] 0.0, 128
  %588 = vxpose.xlu0.b32.cont [11/16] 0.0, 128
  %589 = vxpose.xlu0.b32.cont [12/16] 0.0, 128
  %590 = vxpose.xlu0.b32.cont [13/16] 0.0, 128
  %591 = vxpose.xlu0.b32.cont [14/16] 0.0, 128
  %592 = vxpose.xlu0.b32.cont [15/16] 0.0, 128
  %593 = vxpose.xlu0.b32.end [16/16] 0.0, 128
  %v594 = vpop.trf.xlu0
  %v595 = vpop.trf.xlu0
  %v596 = vpop.trf.xlu0
  %v597 = vpop.trf.xlu0
  %v598 = vpop.trf.xlu0
  %v599 = vpop.trf.xlu0
  %v600 = vpop.trf.xlu0
  %v601 = vpop.trf.xlu0
  %v602 = vpop.trf.xlu0
  %v603 = vpop.trf.xlu0
  %v604 = vpop.trf.xlu0
  %v605 = vpop.trf.xlu0
  %v606 = vpop.trf.xlu0
  %v607 = vpop.trf.xlu0
  %v608 = vpop.trf.xlu0
  %v609 = vpop.trf.xlu0
  %v610 = vld [vmem:[%s5] sm:$0xff]
  %v611 = vld [vmem:[%s5 + $0x8] sm:$0xff]
  %v612 = vld [vmem:[%s5 + $0x10] sm:$0xf]
  %614 = vset.pattern.permute.xlu0 0
  %615 = vperm.xlu0 %614, %v610
  %v616 = vpop.permute.xlu0 %615
  %619 = vset.pattern.permute.xlu0 0
  %620 = vperm.xlu0 %619, %v611
  %v621 = vpop.permute.xlu0 %620
  %624 = vset.pattern.permute.xlu0 0
  %625 = vperm.xlu0 %624, %v612
  %v626 = vpop.permute.xlu0 %625
  %v628 = vld [vmem:[%s2] sm:$0xff]
  %v629 = vld [vmem:[%s2 + $0x8] sm:$0xff]
  %v630 = vld [vmem:[%s2 + $0x10] sm:$0xf]
  %632 = vset.pattern.permute.xlu0 0
  %633 = vperm.xlu0 %632, %v628
  %v634 = vpop.permute.xlu0 %633
  %637 = vset.pattern.permute.xlu0 0
  %638 = vperm.xlu0 %637, %v629
  %v639 = vpop.permute.xlu0 %638
  %642 = vset.pattern.permute.xlu0 0
  %643 = vperm.xlu0 %642, %v630
  %v644 = vpop.permute.xlu0 %643
  %v646 = vmul.f32 %v594, %v634
  %v647 = vmul.f32 %v595, %v639
  %v648 = vmul.f32 %v596, %v644
  %v649 = vld [vmem:[%s3] sm:$0xff]
  %v650 = vld [vmem:[%s3 + $0x8] sm:$0xff]
  %v651 = vld [vmem:[%s3 + $0x10] sm:$0xf]
  %653 = vset.pattern.permute.xlu0 0
  %654 = vperm.xlu0 %653, %v649
  %v655 = vpop.permute.xlu0 %654
  %658 = vset.pattern.permute.xlu0 0
  %659 = vperm.xlu0 %658, %v650
  %v660 = vpop.permute.xlu0 %659
  %663 = vset.pattern.permute.xlu0 0
  %664 = vperm.xlu0 %663, %v651
  %v665 = vpop.permute.xlu0 %664
  %v667 = vadd.f32 %v646, %v655
  %v668 = vadd.f32 %v647, %v660
  %v669 = vadd.f32 %v648, %v665
  %v670 = vmax.f32 %v667, 0.0
  %v671 = vmax.f32 %v668, 0.0
  %v672 = vmax.f32 %v669, 0.0
  %v673 = vld [vmem:[%s4] sm:$0xff]
  %v674 = vld [vmem:[%s4 + $0x8] sm:$0xff]
  %v675 = vld [vmem:[%s4 + $0x10] sm:$0xf]
  %677 = vset.pattern.permute.xlu0 0
  %678 = vperm.xlu0 %677, %v673
  %v679 = vpop.permute.xlu0 %678
  %682 = vset.pattern.permute.xlu0 0
  %683 = vperm.xlu0 %682, %v674
  %v684 = vpop.permute.xlu0 %683
  %687 = vset.pattern.permute.xlu0 0
  %688 = vperm.xlu0 %687, %v675
  %v689 = vpop.permute.xlu0 %688
  %v691 = vmul.f32 %v670, %v679
  %v692 = vmul.f32 %v671, %v684
  %v693 = vmul.f32 %v672, %v689
  %v694 = vadd.f32 %v616, %v691
  %v695 = vadd.f32 %v621, %v692
  %v696 = vadd.f32 %v626, %v693
  %s697 = scalar_lea.vmem %s2, 24
  %v698 = vld [vmem:[%s697] sm:$0xff]
  %v699 = vld [vmem:[%s697 + $0x8] sm:$0xff]
  %v700 = vld [vmem:[%s697 + $0x10] sm:$0xf]
  %702 = vset.pattern.permute.xlu0 0
  %703 = vperm.xlu0 %702, %v698
  %v704 = vpop.permute.xlu0 %703
  %707 = vset.pattern.permute.xlu0 0
  %708 = vperm.xlu0 %707, %v699
  %v709 = vpop.permute.xlu0 %708
  %712 = vset.pattern.permute.xlu0 0
  %713 = vperm.xlu0 %712, %v700
  %v714 = vpop.permute.xlu0 %713
  %v716 = vmul.f32 %v594, %v704
  %v717 = vmul.f32 %v595, %v709
  %v718 = vmul.f32 %v596, %v714
  %s719 = scalar_lea.vmem %s3, 24
  %v720 = vld [vmem:[%s719] sm:$0xff]
  %v721 = vld [vmem:[%s719 + $0x8] sm:$0xff]
  %v722 = vld [vmem:[%s719 + $0x10] sm:$0xf]
  %724 = vset.pattern.permute.xlu0 0
  %725 = vperm.xlu0 %724, %v720
  %v726 = vpop.permute.xlu0 %725
  %729 = vset.pattern.permute.xlu0 0
  %730 = vperm.xlu0 %729, %v721
  %v731 = vpop.permute.xlu0 %730
  %734 = vset.pattern.permute.xlu0 0
  %735 = vperm.xlu0 %734, %v722
  %v736 = vpop.permute.xlu0 %735
  %v738 = vadd.f32 %v716, %v726
  %v739 = vadd.f32 %v717, %v731
  %v740 = vadd.f32 %v718, %v736
  %v741 = vmax.f32 %v738, 0.0
  %v742 = vmax.f32 %v739, 0.0
  %v743 = vmax.f32 %v740, 0.0
  %s744 = scalar_lea.vmem %s4, 24
  %v745 = vld [vmem:[%s744] sm:$0xff]
  %v746 = vld [vmem:[%s744 + $0x8] sm:$0xff]
  %v747 = vld [vmem:[%s744 + $0x10] sm:$0xf]
  %749 = vset.pattern.permute.xlu0 0
  %750 = vperm.xlu0 %749, %v745
  %v751 = vpop.permute.xlu0 %750
  %754 = vset.pattern.permute.xlu0 0
  %755 = vperm.xlu0 %754, %v746
  %v756 = vpop.permute.xlu0 %755
  %759 = vset.pattern.permute.xlu0 0
  %760 = vperm.xlu0 %759, %v747
  %v761 = vpop.permute.xlu0 %760
  %v763 = vmul.f32 %v741, %v751
  %v764 = vmul.f32 %v742, %v756
  %v765 = vmul.f32 %v743, %v761
  %v766 = vadd.f32 %v694, %v763
  %v767 = vadd.f32 %v695, %v764
  %v768 = vadd.f32 %v696, %v765
  %s769 = scalar_lea.vmem %s2, 48
  %v770 = vld [vmem:[%s769] sm:$0xff]
  %v771 = vld [vmem:[%s769 + $0x8] sm:$0xff]
  %v772 = vld [vmem:[%s769 + $0x10] sm:$0xf]
  %774 = vset.pattern.permute.xlu0 0
  %775 = vperm.xlu0 %774, %v770
  %v776 = vpop.permute.xlu0 %775
  %779 = vset.pattern.permute.xlu0 0
  %780 = vperm.xlu0 %779, %v771
  %v781 = vpop.permute.xlu0 %780
  %784 = vset.pattern.permute.xlu0 0
  %785 = vperm.xlu0 %784, %v772
  %v786 = vpop.permute.xlu0 %785
  %v788 = vmul.f32 %v594, %v776
  %v789 = vmul.f32 %v595, %v781
  %v790 = vmul.f32 %v596, %v786
  %s791 = scalar_lea.vmem %s3, 48
  %v792 = vld [vmem:[%s791] sm:$0xff]
  %v793 = vld [vmem:[%s791 + $0x8] sm:$0xff]
  %v794 = vld [vmem:[%s791 + $0x10] sm:$0xf]
  %796 = vset.pattern.permute.xlu0 0
  %797 = vperm.xlu0 %796, %v792
  %v798 = vpop.permute.xlu0 %797
  %801 = vset.pattern.permute.xlu0 0
  %802 = vperm.xlu0 %801, %v793
  %v803 = vpop.permute.xlu0 %802
  %806 = vset.pattern.permute.xlu0 0
  %807 = vperm.xlu0 %806, %v794
  %v808 = vpop.permute.xlu0 %807
  %v810 = vadd.f32 %v788, %v798
  %v811 = vadd.f32 %v789, %v803
  %v812 = vadd.f32 %v790, %v808
  %v813 = vmax.f32 %v810, 0.0
  %v814 = vmax.f32 %v811, 0.0
  %v815 = vmax.f32 %v812, 0.0
  %s816 = scalar_lea.vmem %s4, 48
  %v817 = vld [vmem:[%s816] sm:$0xff]
  %v818 = vld [vmem:[%s816 + $0x8] sm:$0xff]
  %v819 = vld [vmem:[%s816 + $0x10] sm:$0xf]
  %821 = vset.pattern.permute.xlu0 0
  %822 = vperm.xlu0 %821, %v817
  %v823 = vpop.permute.xlu0 %822
  %826 = vset.pattern.permute.xlu0 0
  %827 = vperm.xlu0 %826, %v818
  %v828 = vpop.permute.xlu0 %827
  %831 = vset.pattern.permute.xlu0 0
  %832 = vperm.xlu0 %831, %v819
  %v833 = vpop.permute.xlu0 %832
  %v835 = vmul.f32 %v813, %v823
  %v836 = vmul.f32 %v814, %v828
  %v837 = vmul.f32 %v815, %v833
  %v838 = vadd.f32 %v766, %v835
  %v839 = vadd.f32 %v767, %v836
  %v840 = vadd.f32 %v768, %v837
  %s841 = scalar_lea.vmem %s2, 72
  %v842 = vld [vmem:[%s841] sm:$0xff]
  %v843 = vld [vmem:[%s841 + $0x8] sm:$0xff]
  %v844 = vld [vmem:[%s841 + $0x10] sm:$0xf]
  %846 = vset.pattern.permute.xlu0 0
  %847 = vperm.xlu0 %846, %v842
  %v848 = vpop.permute.xlu0 %847
  %851 = vset.pattern.permute.xlu0 0
  %852 = vperm.xlu0 %851, %v843
  %v853 = vpop.permute.xlu0 %852
  %856 = vset.pattern.permute.xlu0 0
  %857 = vperm.xlu0 %856, %v844
  %v858 = vpop.permute.xlu0 %857
  %v860 = vmul.f32 %v594, %v848
  %v861 = vmul.f32 %v595, %v853
  %v862 = vmul.f32 %v596, %v858
  %s863 = scalar_lea.vmem %s3, 72
  %v864 = vld [vmem:[%s863] sm:$0xff]
  %v865 = vld [vmem:[%s863 + $0x8] sm:$0xff]
  %v866 = vld [vmem:[%s863 + $0x10] sm:$0xf]
  %868 = vset.pattern.permute.xlu0 0
  %869 = vperm.xlu0 %868, %v864
  %v870 = vpop.permute.xlu0 %869
  %873 = vset.pattern.permute.xlu0 0
  %874 = vperm.xlu0 %873, %v865
  %v875 = vpop.permute.xlu0 %874
  %878 = vset.pattern.permute.xlu0 0
  %879 = vperm.xlu0 %878, %v866
  %v880 = vpop.permute.xlu0 %879
  %v882 = vadd.f32 %v860, %v870
  %v883 = vadd.f32 %v861, %v875
  %v884 = vadd.f32 %v862, %v880
  %v885 = vmax.f32 %v882, 0.0
  %v886 = vmax.f32 %v883, 0.0
  %v887 = vmax.f32 %v884, 0.0
  %s888 = scalar_lea.vmem %s4, 72
  %v889 = vld [vmem:[%s888] sm:$0xff]
  %v890 = vld [vmem:[%s888 + $0x8] sm:$0xff]
  %v891 = vld [vmem:[%s888 + $0x10] sm:$0xf]
  %893 = vset.pattern.permute.xlu0 0
  %894 = vperm.xlu0 %893, %v889
  %v895 = vpop.permute.xlu0 %894
  %898 = vset.pattern.permute.xlu0 0
  %899 = vperm.xlu0 %898, %v890
  %v900 = vpop.permute.xlu0 %899
  %903 = vset.pattern.permute.xlu0 0
  %904 = vperm.xlu0 %903, %v891
  %v905 = vpop.permute.xlu0 %904
  %v907 = vmul.f32 %v885, %v895
  %v908 = vmul.f32 %v886, %v900
  %v909 = vmul.f32 %v887, %v905
  %v910 = vadd.f32 %v838, %v907
  %v911 = vadd.f32 %v839, %v908
  %v912 = vadd.f32 %v840, %v909
  %s913 = scalar_lea.vmem %s2, 96
  %v914 = vld [vmem:[%s913] sm:$0xff]
  %v915 = vld [vmem:[%s913 + $0x8] sm:$0xff]
  %v916 = vld [vmem:[%s913 + $0x10] sm:$0xf]
  %918 = vset.pattern.permute.xlu0 0
  %919 = vperm.xlu0 %918, %v914
  %v920 = vpop.permute.xlu0 %919
  %923 = vset.pattern.permute.xlu0 0
  %924 = vperm.xlu0 %923, %v915
  %v925 = vpop.permute.xlu0 %924
  %928 = vset.pattern.permute.xlu0 0
  %929 = vperm.xlu0 %928, %v916
  %v930 = vpop.permute.xlu0 %929
  %v932 = vmul.f32 %v594, %v920
  %v933 = vmul.f32 %v595, %v925
  %v934 = vmul.f32 %v596, %v930
  %s935 = scalar_lea.vmem %s3, 96
  %v936 = vld [vmem:[%s935] sm:$0xff]
  %v937 = vld [vmem:[%s935 + $0x8] sm:$0xff]
  %v938 = vld [vmem:[%s935 + $0x10] sm:$0xf]
  %940 = vset.pattern.permute.xlu0 0
  %941 = vperm.xlu0 %940, %v936
  %v942 = vpop.permute.xlu0 %941
  %945 = vset.pattern.permute.xlu0 0
  %946 = vperm.xlu0 %945, %v937
  %v947 = vpop.permute.xlu0 %946
  %950 = vset.pattern.permute.xlu0 0
  %951 = vperm.xlu0 %950, %v938
  %v952 = vpop.permute.xlu0 %951
  %v954 = vadd.f32 %v932, %v942
  %v955 = vadd.f32 %v933, %v947
  %v956 = vadd.f32 %v934, %v952
  %v957 = vmax.f32 %v954, 0.0
  %v958 = vmax.f32 %v955, 0.0
  %v959 = vmax.f32 %v956, 0.0
  %s960 = scalar_lea.vmem %s4, 96
  %v961 = vld [vmem:[%s960] sm:$0xff]
  %v962 = vld [vmem:[%s960 + $0x8] sm:$0xff]
  %v963 = vld [vmem:[%s960 + $0x10] sm:$0xf]
  %965 = vset.pattern.permute.xlu0 0
  %966 = vperm.xlu0 %965, %v961
  %v967 = vpop.permute.xlu0 %966
  %970 = vset.pattern.permute.xlu0 0
  %971 = vperm.xlu0 %970, %v962
  %v972 = vpop.permute.xlu0 %971
  %975 = vset.pattern.permute.xlu0 0
  %976 = vperm.xlu0 %975, %v963
  %v977 = vpop.permute.xlu0 %976
  %v979 = vmul.f32 %v957, %v967
  %v980 = vmul.f32 %v958, %v972
  %v981 = vmul.f32 %v959, %v977
  %v982 = vadd.f32 %v910, %v979
  %v983 = vadd.f32 %v911, %v980
  %v984 = vadd.f32 %v912, %v981
  %s985 = scalar_lea.vmem %s2, 120
  %v986 = vld [vmem:[%s985] sm:$0xff]
  %v987 = vld [vmem:[%s985 + $0x8] sm:$0xff]
  %v988 = vld [vmem:[%s985 + $0x10] sm:$0xf]
  %990 = vset.pattern.permute.xlu0 0
  %991 = vperm.xlu0 %990, %v986
  %v992 = vpop.permute.xlu0 %991
  %995 = vset.pattern.permute.xlu0 0
  %996 = vperm.xlu0 %995, %v987
  %v997 = vpop.permute.xlu0 %996
  %1000 = vset.pattern.permute.xlu0 0
  %1001 = vperm.xlu0 %1000, %v988
  %v1002 = vpop.permute.xlu0 %1001
  %v1004 = vmul.f32 %v594, %v992
  %v1005 = vmul.f32 %v595, %v997
  %v1006 = vmul.f32 %v596, %v1002
  %s1007 = scalar_lea.vmem %s3, 120
  %v1008 = vld [vmem:[%s1007] sm:$0xff]
  %v1009 = vld [vmem:[%s1007 + $0x8] sm:$0xff]
  %v1010 = vld [vmem:[%s1007 + $0x10] sm:$0xf]
  %1012 = vset.pattern.permute.xlu0 0
  %1013 = vperm.xlu0 %1012, %v1008
  %v1014 = vpop.permute.xlu0 %1013
  %1017 = vset.pattern.permute.xlu0 0
  %1018 = vperm.xlu0 %1017, %v1009
  %v1019 = vpop.permute.xlu0 %1018
  %1022 = vset.pattern.permute.xlu0 0
  %1023 = vperm.xlu0 %1022, %v1010
  %v1024 = vpop.permute.xlu0 %1023
  %v1026 = vadd.f32 %v1004, %v1014
  %v1027 = vadd.f32 %v1005, %v1019
  %v1028 = vadd.f32 %v1006, %v1024
  %v1029 = vmax.f32 %v1026, 0.0
  %v1030 = vmax.f32 %v1027, 0.0
  %v1031 = vmax.f32 %v1028, 0.0
  %s1032 = scalar_lea.vmem %s4, 120
  %v1033 = vld [vmem:[%s1032] sm:$0xff]
  %v1034 = vld [vmem:[%s1032 + $0x8] sm:$0xff]
  %v1035 = vld [vmem:[%s1032 + $0x10] sm:$0xf]
  %1037 = vset.pattern.permute.xlu0 0
  %1038 = vperm.xlu0 %1037, %v1033
  %v1039 = vpop.permute.xlu0 %1038
  %1042 = vset.pattern.permute.xlu0 0
  %1043 = vperm.xlu0 %1042, %v1034
  %v1044 = vpop.permute.xlu0 %1043
  %1047 = vset.pattern.permute.xlu0 0
  %1048 = vperm.xlu0 %1047, %v1035
  %v1049 = vpop.permute.xlu0 %1048
  %v1051 = vmul.f32 %v1029, %v1039
  %v1052 = vmul.f32 %v1030, %v1044
  %v1053 = vmul.f32 %v1031, %v1049
  %v1054 = vadd.f32 %v982, %v1051
  %v1055 = vadd.f32 %v983, %v1052
  %v1056 = vadd.f32 %v984, %v1053
  %s1057 = scalar_lea.vmem %s2, 144
  %v1058 = vld [vmem:[%s1057] sm:$0xff]
  %v1059 = vld [vmem:[%s1057 + $0x8] sm:$0xff]
  %v1060 = vld [vmem:[%s1057 + $0x10] sm:$0xf]
  %1062 = vset.pattern.permute.xlu0 0
  %1063 = vperm.xlu0 %1062, %v1058
  %v1064 = vpop.permute.xlu0 %1063
  %1067 = vset.pattern.permute.xlu0 0
  %1068 = vperm.xlu0 %1067, %v1059
  %v1069 = vpop.permute.xlu0 %1068
  %1072 = vset.pattern.permute.xlu0 0
  %1073 = vperm.xlu0 %1072, %v1060
  %v1074 = vpop.permute.xlu0 %1073
  %v1076 = vmul.f32 %v594, %v1064
  %v1077 = vmul.f32 %v595, %v1069
  %v1078 = vmul.f32 %v596, %v1074
  %s1079 = scalar_lea.vmem %s3, 144
  %v1080 = vld [vmem:[%s1079] sm:$0xff]
  %v1081 = vld [vmem:[%s1079 + $0x8] sm:$0xff]
  %v1082 = vld [vmem:[%s1079 + $0x10] sm:$0xf]
  %1084 = vset.pattern.permute.xlu0 0
  %1085 = vperm.xlu0 %1084, %v1080
  %v1086 = vpop.permute.xlu0 %1085
  %1089 = vset.pattern.permute.xlu0 0
  %1090 = vperm.xlu0 %1089, %v1081
  %v1091 = vpop.permute.xlu0 %1090
  %1094 = vset.pattern.permute.xlu0 0
  %1095 = vperm.xlu0 %1094, %v1082
  %v1096 = vpop.permute.xlu0 %1095
  %v1098 = vadd.f32 %v1076, %v1086
  %v1099 = vadd.f32 %v1077, %v1091
  %v1100 = vadd.f32 %v1078, %v1096
  %v1101 = vmax.f32 %v1098, 0.0
  %v1102 = vmax.f32 %v1099, 0.0
  %v1103 = vmax.f32 %v1100, 0.0
  %s1104 = scalar_lea.vmem %s4, 144
  %v1105 = vld [vmem:[%s1104] sm:$0xff]
  %v1106 = vld [vmem:[%s1104 + $0x8] sm:$0xff]
  %v1107 = vld [vmem:[%s1104 + $0x10] sm:$0xf]
  %1109 = vset.pattern.permute.xlu0 0
  %1110 = vperm.xlu0 %1109, %v1105
  %v1111 = vpop.permute.xlu0 %1110
  %1114 = vset.pattern.permute.xlu0 0
  %1115 = vperm.xlu0 %1114, %v1106
  %v1116 = vpop.permute.xlu0 %1115
  %1119 = vset.pattern.permute.xlu0 0
  %1120 = vperm.xlu0 %1119, %v1107
  %v1121 = vpop.permute.xlu0 %1120
  %v1123 = vmul.f32 %v1101, %v1111
  %v1124 = vmul.f32 %v1102, %v1116
  %v1125 = vmul.f32 %v1103, %v1121
  %v1126 = vadd.f32 %v1054, %v1123
  %v1127 = vadd.f32 %v1055, %v1124
  %v1128 = vadd.f32 %v1056, %v1125
  %s1129 = scalar_lea.vmem %s2, 168
  %v1130 = vld [vmem:[%s1129] sm:$0xff]
  %v1131 = vld [vmem:[%s1129 + $0x8] sm:$0xff]
  %v1132 = vld [vmem:[%s1129 + $0x10] sm:$0xf]
  %1134 = vset.pattern.permute.xlu0 0
  %1135 = vperm.xlu0 %1134, %v1130
  %v1136 = vpop.permute.xlu0 %1135
  %1139 = vset.pattern.permute.xlu0 0
  %1140 = vperm.xlu0 %1139, %v1131
  %v1141 = vpop.permute.xlu0 %1140
  %1144 = vset.pattern.permute.xlu0 0
  %1145 = vperm.xlu0 %1144, %v1132
  %v1146 = vpop.permute.xlu0 %1145
  %v1148 = vmul.f32 %v594, %v1136
  %v1149 = vmul.f32 %v595, %v1141
  %v1150 = vmul.f32 %v596, %v1146
  %s1151 = scalar_lea.vmem %s3, 168
  %v1152 = vld [vmem:[%s1151] sm:$0xff]
  %v1153 = vld [vmem:[%s1151 + $0x8] sm:$0xff]
  %v1154 = vld [vmem:[%s1151 + $0x10] sm:$0xf]
  %1156 = vset.pattern.permute.xlu0 0
  %1157 = vperm.xlu0 %1156, %v1152
  %v1158 = vpop.permute.xlu0 %1157
  %1161 = vset.pattern.permute.xlu0 0
  %1162 = vperm.xlu0 %1161, %v1153
  %v1163 = vpop.permute.xlu0 %1162
  %1166 = vset.pattern.permute.xlu0 0
  %1167 = vperm.xlu0 %1166, %v1154
  %v1168 = vpop.permute.xlu0 %1167
  %v1170 = vadd.f32 %v1148, %v1158
  %v1171 = vadd.f32 %v1149, %v1163
  %v1172 = vadd.f32 %v1150, %v1168
  %v1173 = vmax.f32 %v1170, 0.0
  %v1174 = vmax.f32 %v1171, 0.0
  %v1175 = vmax.f32 %v1172, 0.0
  %s1176 = scalar_lea.vmem %s4, 168
  %v1177 = vld [vmem:[%s1176] sm:$0xff]
  %v1178 = vld [vmem:[%s1176 + $0x8] sm:$0xff]
  %v1179 = vld [vmem:[%s1176 + $0x10] sm:$0xf]
  %1181 = vset.pattern.permute.xlu0 0
  %1182 = vperm.xlu0 %1181, %v1177
  %v1183 = vpop.permute.xlu0 %1182
  %1186 = vset.pattern.permute.xlu0 0
  %1187 = vperm.xlu0 %1186, %v1178
  %v1188 = vpop.permute.xlu0 %1187
  %1191 = vset.pattern.permute.xlu0 0
  %1192 = vperm.xlu0 %1191, %v1179
  %v1193 = vpop.permute.xlu0 %1192
  %v1195 = vmul.f32 %v1173, %v1183
  %v1196 = vmul.f32 %v1174, %v1188
  %v1197 = vmul.f32 %v1175, %v1193
  %v1198 = vadd.f32 %v1126, %v1195
  %v1199 = vadd.f32 %v1127, %v1196
  %v1200 = vadd.f32 %v1128, %v1197
  %s1201 = scalar_lea.vmem %s2, 192
  %v1202 = vld [vmem:[%s1201] sm:$0xff]
  %v1203 = vld [vmem:[%s1201 + $0x8] sm:$0xff]
  %v1204 = vld [vmem:[%s1201 + $0x10] sm:$0xf]
  %1206 = vset.pattern.permute.xlu0 0
  %1207 = vperm.xlu0 %1206, %v1202
  %v1208 = vpop.permute.xlu0 %1207
  %1211 = vset.pattern.permute.xlu0 0
  %1212 = vperm.xlu0 %1211, %v1203
  %v1213 = vpop.permute.xlu0 %1212
  %1216 = vset.pattern.permute.xlu0 0
  %1217 = vperm.xlu0 %1216, %v1204
  %v1218 = vpop.permute.xlu0 %1217
  %v1220 = vmul.f32 %v594, %v1208
  %v1221 = vmul.f32 %v595, %v1213
  %v1222 = vmul.f32 %v596, %v1218
  %s1223 = scalar_lea.vmem %s3, 192
  %v1224 = vld [vmem:[%s1223] sm:$0xff]
  %v1225 = vld [vmem:[%s1223 + $0x8] sm:$0xff]
  %v1226 = vld [vmem:[%s1223 + $0x10] sm:$0xf]
  %1228 = vset.pattern.permute.xlu0 0
  %1229 = vperm.xlu0 %1228, %v1224
  %v1230 = vpop.permute.xlu0 %1229
  %1233 = vset.pattern.permute.xlu0 0
  %1234 = vperm.xlu0 %1233, %v1225
  %v1235 = vpop.permute.xlu0 %1234
  %1238 = vset.pattern.permute.xlu0 0
  %1239 = vperm.xlu0 %1238, %v1226
  %v1240 = vpop.permute.xlu0 %1239
  %v1242 = vadd.f32 %v1220, %v1230
  %v1243 = vadd.f32 %v1221, %v1235
  %v1244 = vadd.f32 %v1222, %v1240
  %v1245 = vmax.f32 %v1242, 0.0
  %v1246 = vmax.f32 %v1243, 0.0
  %v1247 = vmax.f32 %v1244, 0.0
  %s1248 = scalar_lea.vmem %s4, 192
  %v1249 = vld [vmem:[%s1248] sm:$0xff]
  %v1250 = vld [vmem:[%s1248 + $0x8] sm:$0xff]
  %v1251 = vld [vmem:[%s1248 + $0x10] sm:$0xf]
  %1253 = vset.pattern.permute.xlu0 0
  %1254 = vperm.xlu0 %1253, %v1249
  %v1255 = vpop.permute.xlu0 %1254
  %1258 = vset.pattern.permute.xlu0 0
  %1259 = vperm.xlu0 %1258, %v1250
  %v1260 = vpop.permute.xlu0 %1259
  %1263 = vset.pattern.permute.xlu0 0
  %1264 = vperm.xlu0 %1263, %v1251
  %v1265 = vpop.permute.xlu0 %1264
  %v1267 = vmul.f32 %v1245, %v1255
  %v1268 = vmul.f32 %v1246, %v1260
  %v1269 = vmul.f32 %v1247, %v1265
  %v1270 = vadd.f32 %v1198, %v1267
  %v1271 = vadd.f32 %v1199, %v1268
  %v1272 = vadd.f32 %v1200, %v1269
  %s1273 = scalar_lea.vmem %s2, 216
  %v1274 = vld [vmem:[%s1273] sm:$0xff]
  %v1275 = vld [vmem:[%s1273 + $0x8] sm:$0xff]
  %v1276 = vld [vmem:[%s1273 + $0x10] sm:$0xf]
  %1278 = vset.pattern.permute.xlu0 0
  %1279 = vperm.xlu0 %1278, %v1274
  %v1280 = vpop.permute.xlu0 %1279
  %1283 = vset.pattern.permute.xlu0 0
  %1284 = vperm.xlu0 %1283, %v1275
  %v1285 = vpop.permute.xlu0 %1284
  %1288 = vset.pattern.permute.xlu0 0
  %1289 = vperm.xlu0 %1288, %v1276
  %v1290 = vpop.permute.xlu0 %1289
  %v1292 = vmul.f32 %v594, %v1280
  %v1293 = vmul.f32 %v595, %v1285
  %v1294 = vmul.f32 %v596, %v1290
  %s1295 = scalar_lea.vmem %s3, 216
  %v1296 = vld [vmem:[%s1295] sm:$0xff]
  %v1297 = vld [vmem:[%s1295 + $0x8] sm:$0xff]
  %v1298 = vld [vmem:[%s1295 + $0x10] sm:$0xf]
  %1300 = vset.pattern.permute.xlu0 0
  %1301 = vperm.xlu0 %1300, %v1296
  %v1302 = vpop.permute.xlu0 %1301
  %1305 = vset.pattern.permute.xlu0 0
  %1306 = vperm.xlu0 %1305, %v1297
  %v1307 = vpop.permute.xlu0 %1306
  %1310 = vset.pattern.permute.xlu0 0
  %1311 = vperm.xlu0 %1310, %v1298
  %v1312 = vpop.permute.xlu0 %1311
  %v1314 = vadd.f32 %v1292, %v1302
  %v1315 = vadd.f32 %v1293, %v1307
  %v1316 = vadd.f32 %v1294, %v1312
  %v1317 = vmax.f32 %v1314, 0.0
  %v1318 = vmax.f32 %v1315, 0.0
  %v1319 = vmax.f32 %v1316, 0.0
  %s1320 = scalar_lea.vmem %s4, 216
  %v1321 = vld [vmem:[%s1320] sm:$0xff]
  %v1322 = vld [vmem:[%s1320 + $0x8] sm:$0xff]
  %v1323 = vld [vmem:[%s1320 + $0x10] sm:$0xf]
  %1325 = vset.pattern.permute.xlu0 0
  %1326 = vperm.xlu0 %1325, %v1321
  %v1327 = vpop.permute.xlu0 %1326
  %1330 = vset.pattern.permute.xlu0 0
  %1331 = vperm.xlu0 %1330, %v1322
  %v1332 = vpop.permute.xlu0 %1331
  %1335 = vset.pattern.permute.xlu0 0
  %1336 = vperm.xlu0 %1335, %v1323
  %v1337 = vpop.permute.xlu0 %1336
  %v1339 = vmul.f32 %v1317, %v1327
  %v1340 = vmul.f32 %v1318, %v1332
  %v1341 = vmul.f32 %v1319, %v1337
  %v1342 = vadd.f32 %v1270, %v1339
  %v1343 = vadd.f32 %v1271, %v1340
  %v1344 = vadd.f32 %v1272, %v1341
  %s1345 = scalar_lea.vmem %s2, 240
  %v1346 = vld [vmem:[%s1345] sm:$0xff]
  %v1347 = vld [vmem:[%s1345 + $0x8] sm:$0xff]
  %v1348 = vld [vmem:[%s1345 + $0x10] sm:$0xf]
  %1350 = vset.pattern.permute.xlu0 0
  %1351 = vperm.xlu0 %1350, %v1346
  %v1352 = vpop.permute.xlu0 %1351
  %1355 = vset.pattern.permute.xlu0 0
  %1356 = vperm.xlu0 %1355, %v1347
  %v1357 = vpop.permute.xlu0 %1356
  %1360 = vset.pattern.permute.xlu0 0
  %1361 = vperm.xlu0 %1360, %v1348
  %v1362 = vpop.permute.xlu0 %1361
  %v1364 = vmul.f32 %v594, %v1352
  %v1365 = vmul.f32 %v595, %v1357
  %v1366 = vmul.f32 %v596, %v1362
  %s1367 = scalar_lea.vmem %s3, 240
  %v1368 = vld [vmem:[%s1367] sm:$0xff]
  %v1369 = vld [vmem:[%s1367 + $0x8] sm:$0xff]
  %v1370 = vld [vmem:[%s1367 + $0x10] sm:$0xf]
  %1372 = vset.pattern.permute.xlu0 0
  %1373 = vperm.xlu0 %1372, %v1368
  %v1374 = vpop.permute.xlu0 %1373
  %1377 = vset.pattern.permute.xlu0 0
  %1378 = vperm.xlu0 %1377, %v1369
  %v1379 = vpop.permute.xlu0 %1378
  %1382 = vset.pattern.permute.xlu0 0
  %1383 = vperm.xlu0 %1382, %v1370
  %v1384 = vpop.permute.xlu0 %1383
  %v1386 = vadd.f32 %v1364, %v1374
  %v1387 = vadd.f32 %v1365, %v1379
  %v1388 = vadd.f32 %v1366, %v1384
  %v1389 = vmax.f32 %v1386, 0.0
  %v1390 = vmax.f32 %v1387, 0.0
  %v1391 = vmax.f32 %v1388, 0.0
  %s1392 = scalar_lea.vmem %s4, 240
  %v1393 = vld [vmem:[%s1392] sm:$0xff]
  %v1394 = vld [vmem:[%s1392 + $0x8] sm:$0xff]
  %v1395 = vld [vmem:[%s1392 + $0x10] sm:$0xf]
  %1397 = vset.pattern.permute.xlu0 0
  %1398 = vperm.xlu0 %1397, %v1393
  %v1399 = vpop.permute.xlu0 %1398
  %1402 = vset.pattern.permute.xlu0 0
  %1403 = vperm.xlu0 %1402, %v1394
  %v1404 = vpop.permute.xlu0 %1403
  %1407 = vset.pattern.permute.xlu0 0
  %1408 = vperm.xlu0 %1407, %v1395
  %v1409 = vpop.permute.xlu0 %1408
  %v1411 = vmul.f32 %v1389, %v1399
  %v1412 = vmul.f32 %v1390, %v1404
  %v1413 = vmul.f32 %v1391, %v1409
  %v1414 = vadd.f32 %v1342, %v1411
  %v1415 = vadd.f32 %v1343, %v1412
  %v1416 = vadd.f32 %v1344, %v1413
  %s1417 = scalar_lea.vmem %s2, 264
  %v1418 = vld [vmem:[%s1417] sm:$0xff]
  %v1419 = vld [vmem:[%s1417 + $0x8] sm:$0xff]
  %v1420 = vld [vmem:[%s1417 + $0x10] sm:$0xf]
  %1422 = vset.pattern.permute.xlu0 0
  %1423 = vperm.xlu0 %1422, %v1418
  %v1424 = vpop.permute.xlu0 %1423
  %1427 = vset.pattern.permute.xlu0 0
  %1428 = vperm.xlu0 %1427, %v1419
  %v1429 = vpop.permute.xlu0 %1428
  %1432 = vset.pattern.permute.xlu0 0
  %1433 = vperm.xlu0 %1432, %v1420
  %v1434 = vpop.permute.xlu0 %1433
  %v1436 = vmul.f32 %v594, %v1424
  %v1437 = vmul.f32 %v595, %v1429
  %v1438 = vmul.f32 %v596, %v1434
  %s1439 = scalar_lea.vmem %s3, 264
  %v1440 = vld [vmem:[%s1439] sm:$0xff]
  %v1441 = vld [vmem:[%s1439 + $0x8] sm:$0xff]
  %v1442 = vld [vmem:[%s1439 + $0x10] sm:$0xf]
  %1444 = vset.pattern.permute.xlu0 0
  %1445 = vperm.xlu0 %1444, %v1440
  %v1446 = vpop.permute.xlu0 %1445
  %1449 = vset.pattern.permute.xlu0 0
  %1450 = vperm.xlu0 %1449, %v1441
  %v1451 = vpop.permute.xlu0 %1450
  %1454 = vset.pattern.permute.xlu0 0
  %1455 = vperm.xlu0 %1454, %v1442
  %v1456 = vpop.permute.xlu0 %1455
  %v1458 = vadd.f32 %v1436, %v1446
  %v1459 = vadd.f32 %v1437, %v1451
  %v1460 = vadd.f32 %v1438, %v1456
  %v1461 = vmax.f32 %v1458, 0.0
  %v1462 = vmax.f32 %v1459, 0.0
  %v1463 = vmax.f32 %v1460, 0.0
  %s1464 = scalar_lea.vmem %s4, 264
  %v1465 = vld [vmem:[%s1464] sm:$0xff]
  %v1466 = vld [vmem:[%s1464 + $0x8] sm:$0xff]
  %v1467 = vld [vmem:[%s1464 + $0x10] sm:$0xf]
  %1469 = vset.pattern.permute.xlu0 0
  %1470 = vperm.xlu0 %1469, %v1465
  %v1471 = vpop.permute.xlu0 %1470
  %1474 = vset.pattern.permute.xlu0 0
  %1475 = vperm.xlu0 %1474, %v1466
  %v1476 = vpop.permute.xlu0 %1475
  %1479 = vset.pattern.permute.xlu0 0
  %1480 = vperm.xlu0 %1479, %v1467
  %v1481 = vpop.permute.xlu0 %1480
  %v1483 = vmul.f32 %v1461, %v1471
  %v1484 = vmul.f32 %v1462, %v1476
  %v1485 = vmul.f32 %v1463, %v1481
  %v1486 = vadd.f32 %v1414, %v1483
  %v1487 = vadd.f32 %v1415, %v1484
  %v1488 = vadd.f32 %v1416, %v1485
  %s1489 = scalar_lea.vmem %s2, 288
  %v1490 = vld [vmem:[%s1489] sm:$0xff]
  %v1491 = vld [vmem:[%s1489 + $0x8] sm:$0xff]
  %v1492 = vld [vmem:[%s1489 + $0x10] sm:$0xf]
  %1494 = vset.pattern.permute.xlu0 0
  %1495 = vperm.xlu0 %1494, %v1490
  %v1496 = vpop.permute.xlu0 %1495
  %1499 = vset.pattern.permute.xlu0 0
  %1500 = vperm.xlu0 %1499, %v1491
  %v1501 = vpop.permute.xlu0 %1500
  %1504 = vset.pattern.permute.xlu0 0
  %1505 = vperm.xlu0 %1504, %v1492
  %v1506 = vpop.permute.xlu0 %1505
  %v1508 = vmul.f32 %v594, %v1496
  %v1509 = vmul.f32 %v595, %v1501
  %v1510 = vmul.f32 %v596, %v1506
  %s1511 = scalar_lea.vmem %s3, 288
  %v1512 = vld [vmem:[%s1511] sm:$0xff]
  %v1513 = vld [vmem:[%s1511 + $0x8] sm:$0xff]
  %v1514 = vld [vmem:[%s1511 + $0x10] sm:$0xf]
  %1516 = vset.pattern.permute.xlu0 0
  %1517 = vperm.xlu0 %1516, %v1512
  %v1518 = vpop.permute.xlu0 %1517
  %1521 = vset.pattern.permute.xlu0 0
  %1522 = vperm.xlu0 %1521, %v1513
  %v1523 = vpop.permute.xlu0 %1522
  %1526 = vset.pattern.permute.xlu0 0
  %1527 = vperm.xlu0 %1526, %v1514
  %v1528 = vpop.permute.xlu0 %1527
  %v1530 = vadd.f32 %v1508, %v1518
  %v1531 = vadd.f32 %v1509, %v1523
  %v1532 = vadd.f32 %v1510, %v1528
  %v1533 = vmax.f32 %v1530, 0.0
  %v1534 = vmax.f32 %v1531, 0.0
  %v1535 = vmax.f32 %v1532, 0.0
  %s1536 = scalar_lea.vmem %s4, 288
  %v1537 = vld [vmem:[%s1536] sm:$0xff]
  %v1538 = vld [vmem:[%s1536 + $0x8] sm:$0xff]
  %v1539 = vld [vmem:[%s1536 + $0x10] sm:$0xf]
  %1541 = vset.pattern.permute.xlu0 0
  %1542 = vperm.xlu0 %1541, %v1537
  %v1543 = vpop.permute.xlu0 %1542
  %1546 = vset.pattern.permute.xlu0 0
  %1547 = vperm.xlu0 %1546, %v1538
  %v1548 = vpop.permute.xlu0 %1547
  %1551 = vset.pattern.permute.xlu0 0
  %1552 = vperm.xlu0 %1551, %v1539
  %v1553 = vpop.permute.xlu0 %1552
  %v1555 = vmul.f32 %v1533, %v1543
  %v1556 = vmul.f32 %v1534, %v1548
  %v1557 = vmul.f32 %v1535, %v1553
  %v1558 = vadd.f32 %v1486, %v1555
  %v1559 = vadd.f32 %v1487, %v1556
  %v1560 = vadd.f32 %v1488, %v1557
  %s1561 = scalar_lea.vmem %s2, 312
  %v1562 = vld [vmem:[%s1561] sm:$0xff]
  %v1563 = vld [vmem:[%s1561 + $0x8] sm:$0xff]
  %v1564 = vld [vmem:[%s1561 + $0x10] sm:$0xf]
  %1566 = vset.pattern.permute.xlu0 0
  %1567 = vperm.xlu0 %1566, %v1562
  %v1568 = vpop.permute.xlu0 %1567
  %1571 = vset.pattern.permute.xlu0 0
  %1572 = vperm.xlu0 %1571, %v1563
  %v1573 = vpop.permute.xlu0 %1572
  %1576 = vset.pattern.permute.xlu0 0
  %1577 = vperm.xlu0 %1576, %v1564
  %v1578 = vpop.permute.xlu0 %1577
  %v1580 = vmul.f32 %v594, %v1568
  %v1581 = vmul.f32 %v595, %v1573
  %v1582 = vmul.f32 %v596, %v1578
  %s1583 = scalar_lea.vmem %s3, 312
  %v1584 = vld [vmem:[%s1583] sm:$0xff]
  %v1585 = vld [vmem:[%s1583 + $0x8] sm:$0xff]
  %v1586 = vld [vmem:[%s1583 + $0x10] sm:$0xf]
  %1588 = vset.pattern.permute.xlu0 0
  %1589 = vperm.xlu0 %1588, %v1584
  %v1590 = vpop.permute.xlu0 %1589
  %1593 = vset.pattern.permute.xlu0 0
  %1594 = vperm.xlu0 %1593, %v1585
  %v1595 = vpop.permute.xlu0 %1594
  %1598 = vset.pattern.permute.xlu0 0
  %1599 = vperm.xlu0 %1598, %v1586
  %v1600 = vpop.permute.xlu0 %1599
  %v1602 = vadd.f32 %v1580, %v1590
  %v1603 = vadd.f32 %v1581, %v1595
  %v1604 = vadd.f32 %v1582, %v1600
  %v1605 = vmax.f32 %v1602, 0.0
  %v1606 = vmax.f32 %v1603, 0.0
  %v1607 = vmax.f32 %v1604, 0.0
  %s1608 = scalar_lea.vmem %s4, 312
  %v1609 = vld [vmem:[%s1608] sm:$0xff]
  %v1610 = vld [vmem:[%s1608 + $0x8] sm:$0xff]
  %v1611 = vld [vmem:[%s1608 + $0x10] sm:$0xf]
  %1613 = vset.pattern.permute.xlu0 0
  %1614 = vperm.xlu0 %1613, %v1609
  %v1615 = vpop.permute.xlu0 %1614
  %1618 = vset.pattern.permute.xlu0 0
  %1619 = vperm.xlu0 %1618, %v1610
  %v1620 = vpop.permute.xlu0 %1619
  %1623 = vset.pattern.permute.xlu0 0
  %1624 = vperm.xlu0 %1623, %v1611
  %v1625 = vpop.permute.xlu0 %1624
  %v1627 = vmul.f32 %v1605, %v1615
  %v1628 = vmul.f32 %v1606, %v1620
  %v1629 = vmul.f32 %v1607, %v1625
  %v1630 = vadd.f32 %v1558, %v1627
  %v1631 = vadd.f32 %v1559, %v1628
  %v1632 = vadd.f32 %v1560, %v1629
  %s1633 = scalar_lea.vmem %s2, 336
  %v1634 = vld [vmem:[%s1633] sm:$0xff]
  %v1635 = vld [vmem:[%s1633 + $0x8] sm:$0xff]
  %v1636 = vld [vmem:[%s1633 + $0x10] sm:$0xf]
  %1638 = vset.pattern.permute.xlu0 0
  %1639 = vperm.xlu0 %1638, %v1634
  %v1640 = vpop.permute.xlu0 %1639
  %1643 = vset.pattern.permute.xlu0 0
  %1644 = vperm.xlu0 %1643, %v1635
  %v1645 = vpop.permute.xlu0 %1644
  %1648 = vset.pattern.permute.xlu0 0
  %1649 = vperm.xlu0 %1648, %v1636
  %v1650 = vpop.permute.xlu0 %1649
  %v1652 = vmul.f32 %v594, %v1640
  %v1653 = vmul.f32 %v595, %v1645
  %v1654 = vmul.f32 %v596, %v1650
  %s1655 = scalar_lea.vmem %s3, 336
  %v1656 = vld [vmem:[%s1655] sm:$0xff]
  %v1657 = vld [vmem:[%s1655 + $0x8] sm:$0xff]
  %v1658 = vld [vmem:[%s1655 + $0x10] sm:$0xf]
  %1660 = vset.pattern.permute.xlu0 0
  %1661 = vperm.xlu0 %1660, %v1656
  %v1662 = vpop.permute.xlu0 %1661
  %1665 = vset.pattern.permute.xlu0 0
  %1666 = vperm.xlu0 %1665, %v1657
  %v1667 = vpop.permute.xlu0 %1666
  %1670 = vset.pattern.permute.xlu0 0
  %1671 = vperm.xlu0 %1670, %v1658
  %v1672 = vpop.permute.xlu0 %1671
  %v1674 = vadd.f32 %v1652, %v1662
  %v1675 = vadd.f32 %v1653, %v1667
  %v1676 = vadd.f32 %v1654, %v1672
  %v1677 = vmax.f32 %v1674, 0.0
  %v1678 = vmax.f32 %v1675, 0.0
  %v1679 = vmax.f32 %v1676, 0.0
  %s1680 = scalar_lea.vmem %s4, 336
  %v1681 = vld [vmem:[%s1680] sm:$0xff]
  %v1682 = vld [vmem:[%s1680 + $0x8] sm:$0xff]
  %v1683 = vld [vmem:[%s1680 + $0x10] sm:$0xf]
  %1685 = vset.pattern.permute.xlu0 0
  %1686 = vperm.xlu0 %1685, %v1681
  %v1687 = vpop.permute.xlu0 %1686
  %1690 = vset.pattern.permute.xlu0 0
  %1691 = vperm.xlu0 %1690, %v1682
  %v1692 = vpop.permute.xlu0 %1691
  %1695 = vset.pattern.permute.xlu0 0
  %1696 = vperm.xlu0 %1695, %v1683
  %v1697 = vpop.permute.xlu0 %1696
  %v1699 = vmul.f32 %v1677, %v1687
  %v1700 = vmul.f32 %v1678, %v1692
  %v1701 = vmul.f32 %v1679, %v1697
  %v1702 = vadd.f32 %v1630, %v1699
  %v1703 = vadd.f32 %v1631, %v1700
  %v1704 = vadd.f32 %v1632, %v1701
  %s1705 = scalar_lea.vmem %s2, 360
  %v1706 = vld [vmem:[%s1705] sm:$0xff]
  %v1707 = vld [vmem:[%s1705 + $0x8] sm:$0xff]
  %v1708 = vld [vmem:[%s1705 + $0x10] sm:$0xf]
  %1710 = vset.pattern.permute.xlu0 0
  %1711 = vperm.xlu0 %1710, %v1706
  %v1712 = vpop.permute.xlu0 %1711
  %1715 = vset.pattern.permute.xlu0 0
  %1716 = vperm.xlu0 %1715, %v1707
  %v1717 = vpop.permute.xlu0 %1716
  %1720 = vset.pattern.permute.xlu0 0
  %1721 = vperm.xlu0 %1720, %v1708
  %v1722 = vpop.permute.xlu0 %1721
  %v1724 = vmul.f32 %v594, %v1712
  %v1725 = vmul.f32 %v595, %v1717
  %v1726 = vmul.f32 %v596, %v1722
  %s1727 = scalar_lea.vmem %s3, 360
  %v1728 = vld [vmem:[%s1727] sm:$0xff]
  %v1729 = vld [vmem:[%s1727 + $0x8] sm:$0xff]
  %v1730 = vld [vmem:[%s1727 + $0x10] sm:$0xf]
  %1732 = vset.pattern.permute.xlu0 0
  %1733 = vperm.xlu0 %1732, %v1728
  %v1734 = vpop.permute.xlu0 %1733
  %1737 = vset.pattern.permute.xlu0 0
  %1738 = vperm.xlu0 %1737, %v1729
  %v1739 = vpop.permute.xlu0 %1738
  %1742 = vset.pattern.permute.xlu0 0
  %1743 = vperm.xlu0 %1742, %v1730
  %v1744 = vpop.permute.xlu0 %1743
  %v1746 = vadd.f32 %v1724, %v1734
  %v1747 = vadd.f32 %v1725, %v1739
  %v1748 = vadd.f32 %v1726, %v1744
  %v1749 = vmax.f32 %v1746, 0.0
  %v1750 = vmax.f32 %v1747, 0.0
  %v1751 = vmax.f32 %v1748, 0.0
  %s1752 = scalar_lea.vmem %s4, 360
  %v1753 = vld [vmem:[%s1752] sm:$0xff]
  %v1754 = vld [vmem:[%s1752 + $0x8] sm:$0xff]
  %v1755 = vld [vmem:[%s1752 + $0x10] sm:$0xf]
  %1757 = vset.pattern.permute.xlu0 0
  %1758 = vperm.xlu0 %1757, %v1753
  %v1759 = vpop.permute.xlu0 %1758
  %1762 = vset.pattern.permute.xlu0 0
  %1763 = vperm.xlu0 %1762, %v1754
  %v1764 = vpop.permute.xlu0 %1763
  %1767 = vset.pattern.permute.xlu0 0
  %1768 = vperm.xlu0 %1767, %v1755
  %v1769 = vpop.permute.xlu0 %1768
  %v1771 = vmul.f32 %v1749, %v1759
  %v1772 = vmul.f32 %v1750, %v1764
  %v1773 = vmul.f32 %v1751, %v1769
  %v1774 = vadd.f32 %v1702, %v1771
  %v1775 = vadd.f32 %v1703, %v1772
  %v1776 = vadd.f32 %v1704, %v1773
  %s1777 = scalar_lea.vmem %s2, 384
  %v1778 = vld [vmem:[%s1777] sm:$0xff]
  %v1779 = vld [vmem:[%s1777 + $0x8] sm:$0xff]
  %v1780 = vld [vmem:[%s1777 + $0x10] sm:$0xf]
  %1782 = vset.pattern.permute.xlu0 0
  %1783 = vperm.xlu0 %1782, %v1778
  %v1784 = vpop.permute.xlu0 %1783
  %1787 = vset.pattern.permute.xlu0 0
  %1788 = vperm.xlu0 %1787, %v1779
  %v1789 = vpop.permute.xlu0 %1788
  %1792 = vset.pattern.permute.xlu0 0
  %1793 = vperm.xlu0 %1792, %v1780
  %v1794 = vpop.permute.xlu0 %1793
  %v1796 = vmul.f32 %v594, %v1784
  %v1797 = vmul.f32 %v595, %v1789
  %v1798 = vmul.f32 %v596, %v1794
  %s1799 = scalar_lea.vmem %s3, 384
  %v1800 = vld [vmem:[%s1799] sm:$0xff]
  %v1801 = vld [vmem:[%s1799 + $0x8] sm:$0xff]
  %v1802 = vld [vmem:[%s1799 + $0x10] sm:$0xf]
  %1804 = vset.pattern.permute.xlu0 0
  %1805 = vperm.xlu0 %1804, %v1800
  %v1806 = vpop.permute.xlu0 %1805
  %1809 = vset.pattern.permute.xlu0 0
  %1810 = vperm.xlu0 %1809, %v1801
  %v1811 = vpop.permute.xlu0 %1810
  %1814 = vset.pattern.permute.xlu0 0
  %1815 = vperm.xlu0 %1814, %v1802
  %v1816 = vpop.permute.xlu0 %1815
  %v1818 = vadd.f32 %v1796, %v1806
  %v1819 = vadd.f32 %v1797, %v1811
  %v1820 = vadd.f32 %v1798, %v1816
  %v1821 = vmax.f32 %v1818, 0.0
  %v1822 = vmax.f32 %v1819, 0.0
  %v1823 = vmax.f32 %v1820, 0.0
  %s1824 = scalar_lea.vmem %s4, 384
  %v1825 = vld [vmem:[%s1824] sm:$0xff]
  %v1826 = vld [vmem:[%s1824 + $0x8] sm:$0xff]
  %v1827 = vld [vmem:[%s1824 + $0x10] sm:$0xf]
  %1829 = vset.pattern.permute.xlu0 0
  %1830 = vperm.xlu0 %1829, %v1825
  %v1831 = vpop.permute.xlu0 %1830
  %1834 = vset.pattern.permute.xlu0 0
  %1835 = vperm.xlu0 %1834, %v1826
  %v1836 = vpop.permute.xlu0 %1835
  %1839 = vset.pattern.permute.xlu0 0
  %1840 = vperm.xlu0 %1839, %v1827
  %v1841 = vpop.permute.xlu0 %1840
  %v1843 = vmul.f32 %v1821, %v1831
  %v1844 = vmul.f32 %v1822, %v1836
  %v1845 = vmul.f32 %v1823, %v1841
  %v1846 = vadd.f32 %v1774, %v1843
  %v1847 = vadd.f32 %v1775, %v1844
  %v1848 = vadd.f32 %v1776, %v1845
  %s1849 = scalar_lea.vmem %s2, 408
  %v1850 = vld [vmem:[%s1849] sm:$0xff]
  %v1851 = vld [vmem:[%s1849 + $0x8] sm:$0xff]
  %v1852 = vld [vmem:[%s1849 + $0x10] sm:$0xf]
  %1854 = vset.pattern.permute.xlu0 0
  %1855 = vperm.xlu0 %1854, %v1850
  %v1856 = vpop.permute.xlu0 %1855
  %1859 = vset.pattern.permute.xlu0 0
  %1860 = vperm.xlu0 %1859, %v1851
  %v1861 = vpop.permute.xlu0 %1860
  %1864 = vset.pattern.permute.xlu0 0
  %1865 = vperm.xlu0 %1864, %v1852
  %v1866 = vpop.permute.xlu0 %1865
  %v1868 = vmul.f32 %v594, %v1856
  %v1869 = vmul.f32 %v595, %v1861
  %v1870 = vmul.f32 %v596, %v1866
  %s1871 = scalar_lea.vmem %s3, 408
  %v1872 = vld [vmem:[%s1871] sm:$0xff]
  %v1873 = vld [vmem:[%s1871 + $0x8] sm:$0xff]
  %v1874 = vld [vmem:[%s1871 + $0x10] sm:$0xf]
  %1876 = vset.pattern.permute.xlu0 0
  %1877 = vperm.xlu0 %1876, %v1872
  %v1878 = vpop.permute.xlu0 %1877
  %1881 = vset.pattern.permute.xlu0 0
  %1882 = vperm.xlu0 %1881, %v1873
  %v1883 = vpop.permute.xlu0 %1882
  %1886 = vset.pattern.permute.xlu0 0
  %1887 = vperm.xlu0 %1886, %v1874
  %v1888 = vpop.permute.xlu0 %1887
  %v1890 = vadd.f32 %v1868, %v1878
  %v1891 = vadd.f32 %v1869, %v1883
  %v1892 = vadd.f32 %v1870, %v1888
  %v1893 = vmax.f32 %v1890, 0.0
  %v1894 = vmax.f32 %v1891, 0.0
  %v1895 = vmax.f32 %v1892, 0.0
  %s1896 = scalar_lea.vmem %s4, 408
  %v1897 = vld [vmem:[%s1896] sm:$0xff]
  %v1898 = vld [vmem:[%s1896 + $0x8] sm:$0xff]
  %v1899 = vld [vmem:[%s1896 + $0x10] sm:$0xf]
  %1901 = vset.pattern.permute.xlu0 0
  %1902 = vperm.xlu0 %1901, %v1897
  %v1903 = vpop.permute.xlu0 %1902
  %1906 = vset.pattern.permute.xlu0 0
  %1907 = vperm.xlu0 %1906, %v1898
  %v1908 = vpop.permute.xlu0 %1907
  %1911 = vset.pattern.permute.xlu0 0
  %1912 = vperm.xlu0 %1911, %v1899
  %v1913 = vpop.permute.xlu0 %1912
  %v1915 = vmul.f32 %v1893, %v1903
  %v1916 = vmul.f32 %v1894, %v1908
  %v1917 = vmul.f32 %v1895, %v1913
  %v1918 = vadd.f32 %v1846, %v1915
  %v1919 = vadd.f32 %v1847, %v1916
  %v1920 = vadd.f32 %v1848, %v1917
  %s1921 = scalar_lea.vmem %s2, 432
  %v1922 = vld [vmem:[%s1921] sm:$0xff]
  %v1923 = vld [vmem:[%s1921 + $0x8] sm:$0xff]
  %v1924 = vld [vmem:[%s1921 + $0x10] sm:$0xf]
  %1926 = vset.pattern.permute.xlu0 0
  %1927 = vperm.xlu0 %1926, %v1922
  %v1928 = vpop.permute.xlu0 %1927
  %1931 = vset.pattern.permute.xlu0 0
  %1932 = vperm.xlu0 %1931, %v1923
  %v1933 = vpop.permute.xlu0 %1932
  %1936 = vset.pattern.permute.xlu0 0
  %1937 = vperm.xlu0 %1936, %v1924
  %v1938 = vpop.permute.xlu0 %1937
  %v1940 = vmul.f32 %v594, %v1928
  %v1941 = vmul.f32 %v595, %v1933
  %v1942 = vmul.f32 %v596, %v1938
  %s1943 = scalar_lea.vmem %s3, 432
  %v1944 = vld [vmem:[%s1943] sm:$0xff]
  %v1945 = vld [vmem:[%s1943 + $0x8] sm:$0xff]
  %v1946 = vld [vmem:[%s1943 + $0x10] sm:$0xf]
  %1948 = vset.pattern.permute.xlu0 0
  %1949 = vperm.xlu0 %1948, %v1944
  %v1950 = vpop.permute.xlu0 %1949
  %1953 = vset.pattern.permute.xlu0 0
  %1954 = vperm.xlu0 %1953, %v1945
  %v1955 = vpop.permute.xlu0 %1954
  %1958 = vset.pattern.permute.xlu0 0
  %1959 = vperm.xlu0 %1958, %v1946
  %v1960 = vpop.permute.xlu0 %1959
  %v1962 = vadd.f32 %v1940, %v1950
  %v1963 = vadd.f32 %v1941, %v1955
  %v1964 = vadd.f32 %v1942, %v1960
  %v1965 = vmax.f32 %v1962, 0.0
  %v1966 = vmax.f32 %v1963, 0.0
  %v1967 = vmax.f32 %v1964, 0.0
  %s1968 = scalar_lea.vmem %s4, 432
  %v1969 = vld [vmem:[%s1968] sm:$0xff]
  %v1970 = vld [vmem:[%s1968 + $0x8] sm:$0xff]
  %v1971 = vld [vmem:[%s1968 + $0x10] sm:$0xf]
  %1973 = vset.pattern.permute.xlu0 0
  %1974 = vperm.xlu0 %1973, %v1969
  %v1975 = vpop.permute.xlu0 %1974
  %1978 = vset.pattern.permute.xlu0 0
  %1979 = vperm.xlu0 %1978, %v1970
  %v1980 = vpop.permute.xlu0 %1979
  %1983 = vset.pattern.permute.xlu0 0
  %1984 = vperm.xlu0 %1983, %v1971
  %v1985 = vpop.permute.xlu0 %1984
  %v1987 = vmul.f32 %v1965, %v1975
  %v1988 = vmul.f32 %v1966, %v1980
  %v1989 = vmul.f32 %v1967, %v1985
  %v1990 = vadd.f32 %v1918, %v1987
  %v1991 = vadd.f32 %v1919, %v1988
  %v1992 = vadd.f32 %v1920, %v1989
  %s1993 = scalar_lea.vmem %s2, 456
  %v1994 = vld [vmem:[%s1993] sm:$0xff]
  %v1995 = vld [vmem:[%s1993 + $0x8] sm:$0xff]
  %v1996 = vld [vmem:[%s1993 + $0x10] sm:$0xf]
  %1998 = vset.pattern.permute.xlu0 0
  %1999 = vperm.xlu0 %1998, %v1994
  %v2000 = vpop.permute.xlu0 %1999
  %2003 = vset.pattern.permute.xlu0 0
  %2004 = vperm.xlu0 %2003, %v1995
  %v2005 = vpop.permute.xlu0 %2004
  %2008 = vset.pattern.permute.xlu0 0
  %2009 = vperm.xlu0 %2008, %v1996
  %v2010 = vpop.permute.xlu0 %2009
  %v2012 = vmul.f32 %v594, %v2000
  %v2013 = vmul.f32 %v595, %v2005
  %v2014 = vmul.f32 %v596, %v2010
  %s2015 = scalar_lea.vmem %s3, 456
  %v2016 = vld [vmem:[%s2015] sm:$0xff]
  %v2017 = vld [vmem:[%s2015 + $0x8] sm:$0xff]
  %v2018 = vld [vmem:[%s2015 + $0x10] sm:$0xf]
  %2020 = vset.pattern.permute.xlu0 0
  %2021 = vperm.xlu0 %2020, %v2016
  %v2022 = vpop.permute.xlu0 %2021
  %2025 = vset.pattern.permute.xlu0 0
  %2026 = vperm.xlu0 %2025, %v2017
  %v2027 = vpop.permute.xlu0 %2026
  %2030 = vset.pattern.permute.xlu0 0
  %2031 = vperm.xlu0 %2030, %v2018
  %v2032 = vpop.permute.xlu0 %2031
  %v2034 = vadd.f32 %v2012, %v2022
  %v2035 = vadd.f32 %v2013, %v2027
  %v2036 = vadd.f32 %v2014, %v2032
  %v2037 = vmax.f32 %v2034, 0.0
  %v2038 = vmax.f32 %v2035, 0.0
  %v2039 = vmax.f32 %v2036, 0.0
  %s2040 = scalar_lea.vmem %s4, 456
  %v2041 = vld [vmem:[%s2040] sm:$0xff]
  %v2042 = vld [vmem:[%s2040 + $0x8] sm:$0xff]
  %v2043 = vld [vmem:[%s2040 + $0x10] sm:$0xf]
  %2045 = vset.pattern.permute.xlu0 0
  %2046 = vperm.xlu0 %2045, %v2041
  %v2047 = vpop.permute.xlu0 %2046
  %2050 = vset.pattern.permute.xlu0 0
  %2051 = vperm.xlu0 %2050, %v2042
  %v2052 = vpop.permute.xlu0 %2051
  %2055 = vset.pattern.permute.xlu0 0
  %2056 = vperm.xlu0 %2055, %v2043
  %v2057 = vpop.permute.xlu0 %2056
  %v2059 = vmul.f32 %v2037, %v2047
  %v2060 = vmul.f32 %v2038, %v2052
  %v2061 = vmul.f32 %v2039, %v2057
  %v2062 = vadd.f32 %v1990, %v2059
  %v2063 = vadd.f32 %v1991, %v2060
  %v2064 = vadd.f32 %v1992, %v2061
  %s2065 = scalar_lea.vmem %s2, 480
  %v2066 = vld [vmem:[%s2065] sm:$0xff]
  %v2067 = vld [vmem:[%s2065 + $0x8] sm:$0xff]
  %v2068 = vld [vmem:[%s2065 + $0x10] sm:$0xf]
  %2070 = vset.pattern.permute.xlu0 0
  %2071 = vperm.xlu0 %2070, %v2066
  %v2072 = vpop.permute.xlu0 %2071
  %2075 = vset.pattern.permute.xlu0 0
  %2076 = vperm.xlu0 %2075, %v2067
  %v2077 = vpop.permute.xlu0 %2076
  %2080 = vset.pattern.permute.xlu0 0
  %2081 = vperm.xlu0 %2080, %v2068
  %v2082 = vpop.permute.xlu0 %2081
  %v2084 = vmul.f32 %v594, %v2072
  %v2085 = vmul.f32 %v595, %v2077
  %v2086 = vmul.f32 %v596, %v2082
  %s2087 = scalar_lea.vmem %s3, 480
  %v2088 = vld [vmem:[%s2087] sm:$0xff]
  %v2089 = vld [vmem:[%s2087 + $0x8] sm:$0xff]
  %v2090 = vld [vmem:[%s2087 + $0x10] sm:$0xf]
  %2092 = vset.pattern.permute.xlu0 0
  %2093 = vperm.xlu0 %2092, %v2088
  %v2094 = vpop.permute.xlu0 %2093
  %2097 = vset.pattern.permute.xlu0 0
  %2098 = vperm.xlu0 %2097, %v2089
  %v2099 = vpop.permute.xlu0 %2098
  %2102 = vset.pattern.permute.xlu0 0
  %2103 = vperm.xlu0 %2102, %v2090
  %v2104 = vpop.permute.xlu0 %2103
  %v2106 = vadd.f32 %v2084, %v2094
  %v2107 = vadd.f32 %v2085, %v2099
  %v2108 = vadd.f32 %v2086, %v2104
  %v2109 = vmax.f32 %v2106, 0.0
  %v2110 = vmax.f32 %v2107, 0.0
  %v2111 = vmax.f32 %v2108, 0.0
  %s2112 = scalar_lea.vmem %s4, 480
  %v2113 = vld [vmem:[%s2112] sm:$0xff]
  %v2114 = vld [vmem:[%s2112 + $0x8] sm:$0xff]
  %v2115 = vld [vmem:[%s2112 + $0x10] sm:$0xf]
  %2117 = vset.pattern.permute.xlu0 0
  %2118 = vperm.xlu0 %2117, %v2113
  %v2119 = vpop.permute.xlu0 %2118
  %2122 = vset.pattern.permute.xlu0 0
  %2123 = vperm.xlu0 %2122, %v2114
  %v2124 = vpop.permute.xlu0 %2123
  %2127 = vset.pattern.permute.xlu0 0
  %2128 = vperm.xlu0 %2127, %v2115
  %v2129 = vpop.permute.xlu0 %2128
  %v2131 = vmul.f32 %v2109, %v2119
  %v2132 = vmul.f32 %v2110, %v2124
  %v2133 = vmul.f32 %v2111, %v2129
  %v2134 = vadd.f32 %v2062, %v2131
  %v2135 = vadd.f32 %v2063, %v2132
  %v2136 = vadd.f32 %v2064, %v2133
  %s2137 = scalar_lea.vmem %s2, 504
  %v2138 = vld [vmem:[%s2137] sm:$0xff]
  %v2139 = vld [vmem:[%s2137 + $0x8] sm:$0xff]
  %v2140 = vld [vmem:[%s2137 + $0x10] sm:$0xf]
  %2142 = vset.pattern.permute.xlu0 0
  %2143 = vperm.xlu0 %2142, %v2138
  %v2144 = vpop.permute.xlu0 %2143
  %2147 = vset.pattern.permute.xlu0 0
  %2148 = vperm.xlu0 %2147, %v2139
  %v2149 = vpop.permute.xlu0 %2148
  %2152 = vset.pattern.permute.xlu0 0
  %2153 = vperm.xlu0 %2152, %v2140
  %v2154 = vpop.permute.xlu0 %2153
  %v2156 = vmul.f32 %v594, %v2144
  %v2157 = vmul.f32 %v595, %v2149
  %v2158 = vmul.f32 %v596, %v2154
  %s2159 = scalar_lea.vmem %s3, 504
  %v2160 = vld [vmem:[%s2159] sm:$0xff]
  %v2161 = vld [vmem:[%s2159 + $0x8] sm:$0xff]
  %v2162 = vld [vmem:[%s2159 + $0x10] sm:$0xf]
  %2164 = vset.pattern.permute.xlu0 0
  %2165 = vperm.xlu0 %2164, %v2160
  %v2166 = vpop.permute.xlu0 %2165
  %2169 = vset.pattern.permute.xlu0 0
  %2170 = vperm.xlu0 %2169, %v2161
  %v2171 = vpop.permute.xlu0 %2170
  %2174 = vset.pattern.permute.xlu0 0
  %2175 = vperm.xlu0 %2174, %v2162
  %v2176 = vpop.permute.xlu0 %2175
  %v2178 = vadd.f32 %v2156, %v2166
  %v2179 = vadd.f32 %v2157, %v2171
  %v2180 = vadd.f32 %v2158, %v2176
  %v2181 = vmax.f32 %v2178, 0.0
  %v2182 = vmax.f32 %v2179, 0.0
  %v2183 = vmax.f32 %v2180, 0.0
  %s2184 = scalar_lea.vmem %s4, 504
  %v2185 = vld [vmem:[%s2184] sm:$0xff]
  %v2186 = vld [vmem:[%s2184 + $0x8] sm:$0xff]
  %v2187 = vld [vmem:[%s2184 + $0x10] sm:$0xf]
  %2189 = vset.pattern.permute.xlu0 0
  %2190 = vperm.xlu0 %2189, %v2185
  %v2191 = vpop.permute.xlu0 %2190
  %2194 = vset.pattern.permute.xlu0 0
  %2195 = vperm.xlu0 %2194, %v2186
  %v2196 = vpop.permute.xlu0 %2195
  %2199 = vset.pattern.permute.xlu0 0
  %2200 = vperm.xlu0 %2199, %v2187
  %v2201 = vpop.permute.xlu0 %2200
  %v2203 = vmul.f32 %v2181, %v2191
  %v2204 = vmul.f32 %v2182, %v2196
  %v2205 = vmul.f32 %v2183, %v2201
  %v2206 = vadd.f32 %v2134, %v2203
  %v2207 = vadd.f32 %v2135, %v2204
  %v2208 = vadd.f32 %v2136, %v2205
  %s2209 = scalar_lea.vmem %s2, 528
  %v2210 = vld [vmem:[%s2209] sm:$0xff]
  %v2211 = vld [vmem:[%s2209 + $0x8] sm:$0xff]
  %v2212 = vld [vmem:[%s2209 + $0x10] sm:$0xf]
  %2214 = vset.pattern.permute.xlu0 0
  %2215 = vperm.xlu0 %2214, %v2210
  %v2216 = vpop.permute.xlu0 %2215
  %2219 = vset.pattern.permute.xlu0 0
  %2220 = vperm.xlu0 %2219, %v2211
  %v2221 = vpop.permute.xlu0 %2220
  %2224 = vset.pattern.permute.xlu0 0
  %2225 = vperm.xlu0 %2224, %v2212
  %v2226 = vpop.permute.xlu0 %2225
  %v2228 = vmul.f32 %v594, %v2216
  %v2229 = vmul.f32 %v595, %v2221
  %v2230 = vmul.f32 %v596, %v2226
  %s2231 = scalar_lea.vmem %s3, 528
  %v2232 = vld [vmem:[%s2231] sm:$0xff]
  %v2233 = vld [vmem:[%s2231 + $0x8] sm:$0xff]
  %v2234 = vld [vmem:[%s2231 + $0x10] sm:$0xf]
  %2236 = vset.pattern.permute.xlu0 0
  %2237 = vperm.xlu0 %2236, %v2232
  %v2238 = vpop.permute.xlu0 %2237
  %2241 = vset.pattern.permute.xlu0 0
  %2242 = vperm.xlu0 %2241, %v2233
  %v2243 = vpop.permute.xlu0 %2242
  %2246 = vset.pattern.permute.xlu0 0
  %2247 = vperm.xlu0 %2246, %v2234
  %v2248 = vpop.permute.xlu0 %2247
  %v2250 = vadd.f32 %v2228, %v2238
  %v2251 = vadd.f32 %v2229, %v2243
  %v2252 = vadd.f32 %v2230, %v2248
  %v2253 = vmax.f32 %v2250, 0.0
  %v2254 = vmax.f32 %v2251, 0.0
  %v2255 = vmax.f32 %v2252, 0.0
  %s2256 = scalar_lea.vmem %s4, 528
  %v2257 = vld [vmem:[%s2256] sm:$0xff]
  %v2258 = vld [vmem:[%s2256 + $0x8] sm:$0xff]
  %v2259 = vld [vmem:[%s2256 + $0x10] sm:$0xf]
  %2261 = vset.pattern.permute.xlu0 0
  %2262 = vperm.xlu0 %2261, %v2257
  %v2263 = vpop.permute.xlu0 %2262
  %2266 = vset.pattern.permute.xlu0 0
  %2267 = vperm.xlu0 %2266, %v2258
  %v2268 = vpop.permute.xlu0 %2267
  %2271 = vset.pattern.permute.xlu0 0
  %2272 = vperm.xlu0 %2271, %v2259
  %v2273 = vpop.permute.xlu0 %2272
  %v2275 = vmul.f32 %v2253, %v2263
  %v2276 = vmul.f32 %v2254, %v2268
  %v2277 = vmul.f32 %v2255, %v2273
  %v2278 = vadd.f32 %v2206, %v2275
  %v2279 = vadd.f32 %v2207, %v2276
  %v2280 = vadd.f32 %v2208, %v2277
  %s2281 = scalar_lea.vmem %s2, 552
  %v2282 = vld [vmem:[%s2281] sm:$0xff]
  %v2283 = vld [vmem:[%s2281 + $0x8] sm:$0xff]
  %v2284 = vld [vmem:[%s2281 + $0x10] sm:$0xf]
  %2286 = vset.pattern.permute.xlu0 0
  %2287 = vperm.xlu0 %2286, %v2282
  %v2288 = vpop.permute.xlu0 %2287
  %2291 = vset.pattern.permute.xlu0 0
  %2292 = vperm.xlu0 %2291, %v2283
  %v2293 = vpop.permute.xlu0 %2292
  %2296 = vset.pattern.permute.xlu0 0
  %2297 = vperm.xlu0 %2296, %v2284
  %v2298 = vpop.permute.xlu0 %2297
  %v2300 = vmul.f32 %v594, %v2288
  %v2301 = vmul.f32 %v595, %v2293
  %v2302 = vmul.f32 %v596, %v2298
  %s2303 = scalar_lea.vmem %s3, 552
  %v2304 = vld [vmem:[%s2303] sm:$0xff]
  %v2305 = vld [vmem:[%s2303 + $0x8] sm:$0xff]
  %v2306 = vld [vmem:[%s2303 + $0x10] sm:$0xf]
  %2308 = vset.pattern.permute.xlu0 0
  %2309 = vperm.xlu0 %2308, %v2304
  %v2310 = vpop.permute.xlu0 %2309
  %2313 = vset.pattern.permute.xlu0 0
  %2314 = vperm.xlu0 %2313, %v2305
  %v2315 = vpop.permute.xlu0 %2314
  %2318 = vset.pattern.permute.xlu0 0
  %2319 = vperm.xlu0 %2318, %v2306
  %v2320 = vpop.permute.xlu0 %2319
  %v2322 = vadd.f32 %v2300, %v2310
  %v2323 = vadd.f32 %v2301, %v2315
  %v2324 = vadd.f32 %v2302, %v2320
  %v2325 = vmax.f32 %v2322, 0.0
  %v2326 = vmax.f32 %v2323, 0.0
  %v2327 = vmax.f32 %v2324, 0.0
  %s2328 = scalar_lea.vmem %s4, 552
  %v2329 = vld [vmem:[%s2328] sm:$0xff]
  %v2330 = vld [vmem:[%s2328 + $0x8] sm:$0xff]
  %v2331 = vld [vmem:[%s2328 + $0x10] sm:$0xf]
  %2333 = vset.pattern.permute.xlu0 0
  %2334 = vperm.xlu0 %2333, %v2329
  %v2335 = vpop.permute.xlu0 %2334
  %2338 = vset.pattern.permute.xlu0 0
  %2339 = vperm.xlu0 %2338, %v2330
  %v2340 = vpop.permute.xlu0 %2339
  %2343 = vset.pattern.permute.xlu0 0
  %2344 = vperm.xlu0 %2343, %v2331
  %v2345 = vpop.permute.xlu0 %2344
  %v2347 = vmul.f32 %v2325, %v2335
  %v2348 = vmul.f32 %v2326, %v2340
  %v2349 = vmul.f32 %v2327, %v2345
  %v2350 = vadd.f32 %v2278, %v2347
  %v2351 = vadd.f32 %v2279, %v2348
  %v2352 = vadd.f32 %v2280, %v2349
  %s2353 = scalar_lea.vmem %s2, 576
  %v2354 = vld [vmem:[%s2353] sm:$0xff]
  %v2355 = vld [vmem:[%s2353 + $0x8] sm:$0xff]
  %v2356 = vld [vmem:[%s2353 + $0x10] sm:$0xf]
  %2358 = vset.pattern.permute.xlu0 0
  %2359 = vperm.xlu0 %2358, %v2354
  %v2360 = vpop.permute.xlu0 %2359
  %2363 = vset.pattern.permute.xlu0 0
  %2364 = vperm.xlu0 %2363, %v2355
  %v2365 = vpop.permute.xlu0 %2364
  %2368 = vset.pattern.permute.xlu0 0
  %2369 = vperm.xlu0 %2368, %v2356
  %v2370 = vpop.permute.xlu0 %2369
  %v2372 = vmul.f32 %v594, %v2360
  %v2373 = vmul.f32 %v595, %v2365
  %v2374 = vmul.f32 %v596, %v2370
  %s2375 = scalar_lea.vmem %s3, 576
  %v2376 = vld [vmem:[%s2375] sm:$0xff]
  %v2377 = vld [vmem:[%s2375 + $0x8] sm:$0xff]
  %v2378 = vld [vmem:[%s2375 + $0x10] sm:$0xf]
  %2380 = vset.pattern.permute.xlu0 0
  %2381 = vperm.xlu0 %2380, %v2376
  %v2382 = vpop.permute.xlu0 %2381
  %2385 = vset.pattern.permute.xlu0 0
  %2386 = vperm.xlu0 %2385, %v2377
  %v2387 = vpop.permute.xlu0 %2386
  %2390 = vset.pattern.permute.xlu0 0
  %2391 = vperm.xlu0 %2390, %v2378
  %v2392 = vpop.permute.xlu0 %2391
  %v2394 = vadd.f32 %v2372, %v2382
  %v2395 = vadd.f32 %v2373, %v2387
  %v2396 = vadd.f32 %v2374, %v2392
  %v2397 = vmax.f32 %v2394, 0.0
  %v2398 = vmax.f32 %v2395, 0.0
  %v2399 = vmax.f32 %v2396, 0.0
  %s2400 = scalar_lea.vmem %s4, 576
  %v2401 = vld [vmem:[%s2400] sm:$0xff]
  %v2402 = vld [vmem:[%s2400 + $0x8] sm:$0xff]
  %v2403 = vld [vmem:[%s2400 + $0x10] sm:$0xf]
  %2405 = vset.pattern.permute.xlu0 0
  %2406 = vperm.xlu0 %2405, %v2401
  %v2407 = vpop.permute.xlu0 %2406
  %2410 = vset.pattern.permute.xlu0 0
  %2411 = vperm.xlu0 %2410, %v2402
  %v2412 = vpop.permute.xlu0 %2411
  %2415 = vset.pattern.permute.xlu0 0
  %2416 = vperm.xlu0 %2415, %v2403
  %v2417 = vpop.permute.xlu0 %2416
  %v2419 = vmul.f32 %v2397, %v2407
  %v2420 = vmul.f32 %v2398, %v2412
  %v2421 = vmul.f32 %v2399, %v2417
  %v2422 = vadd.f32 %v2350, %v2419
  %v2423 = vadd.f32 %v2351, %v2420
  %v2424 = vadd.f32 %v2352, %v2421
  %s2425 = scalar_lea.vmem %s2, 600
  %v2426 = vld [vmem:[%s2425] sm:$0xff]
  %v2427 = vld [vmem:[%s2425 + $0x8] sm:$0xff]
  %v2428 = vld [vmem:[%s2425 + $0x10] sm:$0xf]
  %2430 = vset.pattern.permute.xlu0 0
  %2431 = vperm.xlu0 %2430, %v2426
  %v2432 = vpop.permute.xlu0 %2431
  %2435 = vset.pattern.permute.xlu0 0
  %2436 = vperm.xlu0 %2435, %v2427
  %v2437 = vpop.permute.xlu0 %2436
  %2440 = vset.pattern.permute.xlu0 0
  %2441 = vperm.xlu0 %2440, %v2428
  %v2442 = vpop.permute.xlu0 %2441
  %v2444 = vmul.f32 %v594, %v2432
  %v2445 = vmul.f32 %v595, %v2437
  %v2446 = vmul.f32 %v596, %v2442
  %s2447 = scalar_lea.vmem %s3, 600
  %v2448 = vld [vmem:[%s2447] sm:$0xff]
  %v2449 = vld [vmem:[%s2447 + $0x8] sm:$0xff]
  %v2450 = vld [vmem:[%s2447 + $0x10] sm:$0xf]
  %2452 = vset.pattern.permute.xlu0 0
  %2453 = vperm.xlu0 %2452, %v2448
  %v2454 = vpop.permute.xlu0 %2453
  %2457 = vset.pattern.permute.xlu0 0
  %2458 = vperm.xlu0 %2457, %v2449
  %v2459 = vpop.permute.xlu0 %2458
  %2462 = vset.pattern.permute.xlu0 0
  %2463 = vperm.xlu0 %2462, %v2450
  %v2464 = vpop.permute.xlu0 %2463
  %v2466 = vadd.f32 %v2444, %v2454
  %v2467 = vadd.f32 %v2445, %v2459
  %v2468 = vadd.f32 %v2446, %v2464
  %v2469 = vmax.f32 %v2466, 0.0
  %v2470 = vmax.f32 %v2467, 0.0
  %v2471 = vmax.f32 %v2468, 0.0
  %s2472 = scalar_lea.vmem %s4, 600
  %v2473 = vld [vmem:[%s2472] sm:$0xff]
  %v2474 = vld [vmem:[%s2472 + $0x8] sm:$0xff]
  %v2475 = vld [vmem:[%s2472 + $0x10] sm:$0xf]
  %2477 = vset.pattern.permute.xlu0 0
  %2478 = vperm.xlu0 %2477, %v2473
  %v2479 = vpop.permute.xlu0 %2478
  %2482 = vset.pattern.permute.xlu0 0
  %2483 = vperm.xlu0 %2482, %v2474
  %v2484 = vpop.permute.xlu0 %2483
  %2487 = vset.pattern.permute.xlu0 0
  %2488 = vperm.xlu0 %2487, %v2475
  %v2489 = vpop.permute.xlu0 %2488
  %v2491 = vmul.f32 %v2469, %v2479
  %v2492 = vmul.f32 %v2470, %v2484
  %v2493 = vmul.f32 %v2471, %v2489
  %v2494 = vadd.f32 %v2422, %v2491
  %v2495 = vadd.f32 %v2423, %v2492
  %v2496 = vadd.f32 %v2424, %v2493
  %s2497 = scalar_lea.vmem %s2, 624
  %v2498 = vld [vmem:[%s2497] sm:$0xff]
  %v2499 = vld [vmem:[%s2497 + $0x8] sm:$0xff]
  %v2500 = vld [vmem:[%s2497 + $0x10] sm:$0xf]
  %2502 = vset.pattern.permute.xlu0 0
  %2503 = vperm.xlu0 %2502, %v2498
  %v2504 = vpop.permute.xlu0 %2503
  %2507 = vset.pattern.permute.xlu0 0
  %2508 = vperm.xlu0 %2507, %v2499
  %v2509 = vpop.permute.xlu0 %2508
  %2512 = vset.pattern.permute.xlu0 0
  %2513 = vperm.xlu0 %2512, %v2500
  %v2514 = vpop.permute.xlu0 %2513
  %v2516 = vmul.f32 %v594, %v2504
  %v2517 = vmul.f32 %v595, %v2509
  %v2518 = vmul.f32 %v596, %v2514
  %s2519 = scalar_lea.vmem %s3, 624
  %v2520 = vld [vmem:[%s2519] sm:$0xff]
  %v2521 = vld [vmem:[%s2519 + $0x8] sm:$0xff]
  %v2522 = vld [vmem:[%s2519 + $0x10] sm:$0xf]
  %2524 = vset.pattern.permute.xlu0 0
  %2525 = vperm.xlu0 %2524, %v2520
  %v2526 = vpop.permute.xlu0 %2525
  %2529 = vset.pattern.permute.xlu0 0
  %2530 = vperm.xlu0 %2529, %v2521
  %v2531 = vpop.permute.xlu0 %2530
  %2534 = vset.pattern.permute.xlu0 0
  %2535 = vperm.xlu0 %2534, %v2522
  %v2536 = vpop.permute.xlu0 %2535
  %v2538 = vadd.f32 %v2516, %v2526
  %v2539 = vadd.f32 %v2517, %v2531
  %v2540 = vadd.f32 %v2518, %v2536
  %v2541 = vmax.f32 %v2538, 0.0
  %v2542 = vmax.f32 %v2539, 0.0
  %v2543 = vmax.f32 %v2540, 0.0
  %s2544 = scalar_lea.vmem %s4, 624
  %v2545 = vld [vmem:[%s2544] sm:$0xff]
  %v2546 = vld [vmem:[%s2544 + $0x8] sm:$0xff]
  %v2547 = vld [vmem:[%s2544 + $0x10] sm:$0xf]
  %2549 = vset.pattern.permute.xlu0 0
  %2550 = vperm.xlu0 %2549, %v2545
  %v2551 = vpop.permute.xlu0 %2550
  %2554 = vset.pattern.permute.xlu0 0
  %2555 = vperm.xlu0 %2554, %v2546
  %v2556 = vpop.permute.xlu0 %2555
  %2559 = vset.pattern.permute.xlu0 0
  %2560 = vperm.xlu0 %2559, %v2547
  %v2561 = vpop.permute.xlu0 %2560
  %v2563 = vmul.f32 %v2541, %v2551
  %v2564 = vmul.f32 %v2542, %v2556
  %v2565 = vmul.f32 %v2543, %v2561
  %v2566 = vadd.f32 %v2494, %v2563
  %v2567 = vadd.f32 %v2495, %v2564
  %v2568 = vadd.f32 %v2496, %v2565
  %s2569 = scalar_lea.vmem %s2, 648
  %v2570 = vld [vmem:[%s2569] sm:$0xff]
  %v2571 = vld [vmem:[%s2569 + $0x8] sm:$0xff]
  %v2572 = vld [vmem:[%s2569 + $0x10] sm:$0xf]
  %2574 = vset.pattern.permute.xlu0 0
  %2575 = vperm.xlu0 %2574, %v2570
  %v2576 = vpop.permute.xlu0 %2575
  %2579 = vset.pattern.permute.xlu0 0
  %2580 = vperm.xlu0 %2579, %v2571
  %v2581 = vpop.permute.xlu0 %2580
  %2584 = vset.pattern.permute.xlu0 0
  %2585 = vperm.xlu0 %2584, %v2572
  %v2586 = vpop.permute.xlu0 %2585
  %v2588 = vmul.f32 %v594, %v2576
  %v2589 = vmul.f32 %v595, %v2581
  %v2590 = vmul.f32 %v596, %v2586
  %s2591 = scalar_lea.vmem %s3, 648
  %v2592 = vld [vmem:[%s2591] sm:$0xff]
  %v2593 = vld [vmem:[%s2591 + $0x8] sm:$0xff]
  %v2594 = vld [vmem:[%s2591 + $0x10] sm:$0xf]
  %2596 = vset.pattern.permute.xlu0 0
  %2597 = vperm.xlu0 %2596, %v2592
  %v2598 = vpop.permute.xlu0 %2597
  %2601 = vset.pattern.permute.xlu0 0
  %2602 = vperm.xlu0 %2601, %v2593
  %v2603 = vpop.permute.xlu0 %2602
  %2606 = vset.pattern.permute.xlu0 0
  %2607 = vperm.xlu0 %2606, %v2594
  %v2608 = vpop.permute.xlu0 %2607
  %v2610 = vadd.f32 %v2588, %v2598
  %v2611 = vadd.f32 %v2589, %v2603
  %v2612 = vadd.f32 %v2590, %v2608
  %v2613 = vmax.f32 %v2610, 0.0
  %v2614 = vmax.f32 %v2611, 0.0
  %v2615 = vmax.f32 %v2612, 0.0
  %s2616 = scalar_lea.vmem %s4, 648
  %v2617 = vld [vmem:[%s2616] sm:$0xff]
  %v2618 = vld [vmem:[%s2616 + $0x8] sm:$0xff]
  %v2619 = vld [vmem:[%s2616 + $0x10] sm:$0xf]
  %2621 = vset.pattern.permute.xlu0 0
  %2622 = vperm.xlu0 %2621, %v2617
  %v2623 = vpop.permute.xlu0 %2622
  %2626 = vset.pattern.permute.xlu0 0
  %2627 = vperm.xlu0 %2626, %v2618
  %v2628 = vpop.permute.xlu0 %2627
  %2631 = vset.pattern.permute.xlu0 0
  %2632 = vperm.xlu0 %2631, %v2619
  %v2633 = vpop.permute.xlu0 %2632
  %v2635 = vmul.f32 %v2613, %v2623
  %v2636 = vmul.f32 %v2614, %v2628
  %v2637 = vmul.f32 %v2615, %v2633
  %v2638 = vadd.f32 %v2566, %v2635
  %v2639 = vadd.f32 %v2567, %v2636
  %v2640 = vadd.f32 %v2568, %v2637
  %s2641 = scalar_lea.vmem %s2, 672
  %v2642 = vld [vmem:[%s2641] sm:$0xff]
  %v2643 = vld [vmem:[%s2641 + $0x8] sm:$0xff]
  %v2644 = vld [vmem:[%s2641 + $0x10] sm:$0xf]
  %2646 = vset.pattern.permute.xlu0 0
  %2647 = vperm.xlu0 %2646, %v2642
  %v2648 = vpop.permute.xlu0 %2647
  %2651 = vset.pattern.permute.xlu0 0
  %2652 = vperm.xlu0 %2651, %v2643
  %v2653 = vpop.permute.xlu0 %2652
  %2656 = vset.pattern.permute.xlu0 0
  %2657 = vperm.xlu0 %2656, %v2644
  %v2658 = vpop.permute.xlu0 %2657
  %v2660 = vmul.f32 %v594, %v2648
  %v2661 = vmul.f32 %v595, %v2653
  %v2662 = vmul.f32 %v596, %v2658
  %s2663 = scalar_lea.vmem %s3, 672
  %v2664 = vld [vmem:[%s2663] sm:$0xff]
  %v2665 = vld [vmem:[%s2663 + $0x8] sm:$0xff]
  %v2666 = vld [vmem:[%s2663 + $0x10] sm:$0xf]
  %2668 = vset.pattern.permute.xlu0 0
  %2669 = vperm.xlu0 %2668, %v2664
  %v2670 = vpop.permute.xlu0 %2669
  %2673 = vset.pattern.permute.xlu0 0
  %2674 = vperm.xlu0 %2673, %v2665
  %v2675 = vpop.permute.xlu0 %2674
  %2678 = vset.pattern.permute.xlu0 0
  %2679 = vperm.xlu0 %2678, %v2666
  %v2680 = vpop.permute.xlu0 %2679
  %v2682 = vadd.f32 %v2660, %v2670
  %v2683 = vadd.f32 %v2661, %v2675
  %v2684 = vadd.f32 %v2662, %v2680
  %v2685 = vmax.f32 %v2682, 0.0
  %v2686 = vmax.f32 %v2683, 0.0
  %v2687 = vmax.f32 %v2684, 0.0
  %s2688 = scalar_lea.vmem %s4, 672
  %v2689 = vld [vmem:[%s2688] sm:$0xff]
  %v2690 = vld [vmem:[%s2688 + $0x8] sm:$0xff]
  %v2691 = vld [vmem:[%s2688 + $0x10] sm:$0xf]
  %2693 = vset.pattern.permute.xlu0 0
  %2694 = vperm.xlu0 %2693, %v2689
  %v2695 = vpop.permute.xlu0 %2694
  %2698 = vset.pattern.permute.xlu0 0
  %2699 = vperm.xlu0 %2698, %v2690
  %v2700 = vpop.permute.xlu0 %2699
  %2703 = vset.pattern.permute.xlu0 0
  %2704 = vperm.xlu0 %2703, %v2691
  %v2705 = vpop.permute.xlu0 %2704
  %v2707 = vmul.f32 %v2685, %v2695
  %v2708 = vmul.f32 %v2686, %v2700
  %v2709 = vmul.f32 %v2687, %v2705
  %v2710 = vadd.f32 %v2638, %v2707
  %v2711 = vadd.f32 %v2639, %v2708
  %v2712 = vadd.f32 %v2640, %v2709
  %s2713 = scalar_lea.vmem %s2, 696
  %v2714 = vld [vmem:[%s2713] sm:$0xff]
  %v2715 = vld [vmem:[%s2713 + $0x8] sm:$0xff]
  %v2716 = vld [vmem:[%s2713 + $0x10] sm:$0xf]
  %2718 = vset.pattern.permute.xlu0 0
  %2719 = vperm.xlu0 %2718, %v2714
  %v2720 = vpop.permute.xlu0 %2719
  %2723 = vset.pattern.permute.xlu0 0
  %2724 = vperm.xlu0 %2723, %v2715
  %v2725 = vpop.permute.xlu0 %2724
  %2728 = vset.pattern.permute.xlu0 0
  %2729 = vperm.xlu0 %2728, %v2716
  %v2730 = vpop.permute.xlu0 %2729
  %v2732 = vmul.f32 %v594, %v2720
  %v2733 = vmul.f32 %v595, %v2725
  %v2734 = vmul.f32 %v596, %v2730
  %s2735 = scalar_lea.vmem %s3, 696
  %v2736 = vld [vmem:[%s2735] sm:$0xff]
  %v2737 = vld [vmem:[%s2735 + $0x8] sm:$0xff]
  %v2738 = vld [vmem:[%s2735 + $0x10] sm:$0xf]
  %2740 = vset.pattern.permute.xlu0 0
  %2741 = vperm.xlu0 %2740, %v2736
  %v2742 = vpop.permute.xlu0 %2741
  %2745 = vset.pattern.permute.xlu0 0
  %2746 = vperm.xlu0 %2745, %v2737
  %v2747 = vpop.permute.xlu0 %2746
  %2750 = vset.pattern.permute.xlu0 0
  %2751 = vperm.xlu0 %2750, %v2738
  %v2752 = vpop.permute.xlu0 %2751
  %v2754 = vadd.f32 %v2732, %v2742
  %v2755 = vadd.f32 %v2733, %v2747
  %v2756 = vadd.f32 %v2734, %v2752
  %v2757 = vmax.f32 %v2754, 0.0
  %v2758 = vmax.f32 %v2755, 0.0
  %v2759 = vmax.f32 %v2756, 0.0
  %s2760 = scalar_lea.vmem %s4, 696
  %v2761 = vld [vmem:[%s2760] sm:$0xff]
  %v2762 = vld [vmem:[%s2760 + $0x8] sm:$0xff]
  %v2763 = vld [vmem:[%s2760 + $0x10] sm:$0xf]
  %2765 = vset.pattern.permute.xlu0 0
  %2766 = vperm.xlu0 %2765, %v2761
  %v2767 = vpop.permute.xlu0 %2766
  %2770 = vset.pattern.permute.xlu0 0
  %2771 = vperm.xlu0 %2770, %v2762
  %v2772 = vpop.permute.xlu0 %2771
  %2775 = vset.pattern.permute.xlu0 0
  %2776 = vperm.xlu0 %2775, %v2763
  %v2777 = vpop.permute.xlu0 %2776
  %v2779 = vmul.f32 %v2757, %v2767
  %v2780 = vmul.f32 %v2758, %v2772
  %v2781 = vmul.f32 %v2759, %v2777
  %v2782 = vadd.f32 %v2710, %v2779
  %v2783 = vadd.f32 %v2711, %v2780
  %v2784 = vadd.f32 %v2712, %v2781
  %s2785 = scalar_lea.vmem %s2, 720
  %v2786 = vld [vmem:[%s2785] sm:$0xff]
  %v2787 = vld [vmem:[%s2785 + $0x8] sm:$0xff]
  %v2788 = vld [vmem:[%s2785 + $0x10] sm:$0xf]
  %2790 = vset.pattern.permute.xlu0 0
  %2791 = vperm.xlu0 %2790, %v2786
  %v2792 = vpop.permute.xlu0 %2791
  %2795 = vset.pattern.permute.xlu0 0
  %2796 = vperm.xlu0 %2795, %v2787
  %v2797 = vpop.permute.xlu0 %2796
  %2800 = vset.pattern.permute.xlu0 0
  %2801 = vperm.xlu0 %2800, %v2788
  %v2802 = vpop.permute.xlu0 %2801
  %v2804 = vmul.f32 %v594, %v2792
  %v2805 = vmul.f32 %v595, %v2797
  %v2806 = vmul.f32 %v596, %v2802
  %s2807 = scalar_lea.vmem %s3, 720
  %v2808 = vld [vmem:[%s2807] sm:$0xff]
  %v2809 = vld [vmem:[%s2807 + $0x8] sm:$0xff]
  %v2810 = vld [vmem:[%s2807 + $0x10] sm:$0xf]
  %2812 = vset.pattern.permute.xlu0 0
  %2813 = vperm.xlu0 %2812, %v2808
  %v2814 = vpop.permute.xlu0 %2813
  %2817 = vset.pattern.permute.xlu0 0
  %2818 = vperm.xlu0 %2817, %v2809
  %v2819 = vpop.permute.xlu0 %2818
  %2822 = vset.pattern.permute.xlu0 0
  %2823 = vperm.xlu0 %2822, %v2810
  %v2824 = vpop.permute.xlu0 %2823
  %v2826 = vadd.f32 %v2804, %v2814
  %v2827 = vadd.f32 %v2805, %v2819
  %v2828 = vadd.f32 %v2806, %v2824
  %v2829 = vmax.f32 %v2826, 0.0
  %v2830 = vmax.f32 %v2827, 0.0
  %v2831 = vmax.f32 %v2828, 0.0
  %s2832 = scalar_lea.vmem %s4, 720
  %v2833 = vld [vmem:[%s2832] sm:$0xff]
  %v2834 = vld [vmem:[%s2832 + $0x8] sm:$0xff]
  %v2835 = vld [vmem:[%s2832 + $0x10] sm:$0xf]
  %2837 = vset.pattern.permute.xlu0 0
  %2838 = vperm.xlu0 %2837, %v2833
  %v2839 = vpop.permute.xlu0 %2838
  %2842 = vset.pattern.permute.xlu0 0
  %2843 = vperm.xlu0 %2842, %v2834
  %v2844 = vpop.permute.xlu0 %2843
  %2847 = vset.pattern.permute.xlu0 0
  %2848 = vperm.xlu0 %2847, %v2835
  %v2849 = vpop.permute.xlu0 %2848
  %v2851 = vmul.f32 %v2829, %v2839
  %v2852 = vmul.f32 %v2830, %v2844
  %v2853 = vmul.f32 %v2831, %v2849
  %v2854 = vadd.f32 %v2782, %v2851
  %v2855 = vadd.f32 %v2783, %v2852
  %v2856 = vadd.f32 %v2784, %v2853
  %s2857 = scalar_lea.vmem %s2, 744
  %v2858 = vld [vmem:[%s2857] sm:$0xff]
  %v2859 = vld [vmem:[%s2857 + $0x8] sm:$0xff]
  %v2860 = vld [vmem:[%s2857 + $0x10] sm:$0xf]
  %2862 = vset.pattern.permute.xlu0 0
  %2863 = vperm.xlu0 %2862, %v2858
  %v2864 = vpop.permute.xlu0 %2863
  %2867 = vset.pattern.permute.xlu0 0
  %2868 = vperm.xlu0 %2867, %v2859
  %v2869 = vpop.permute.xlu0 %2868
  %2872 = vset.pattern.permute.xlu0 0
  %2873 = vperm.xlu0 %2872, %v2860
  %v2874 = vpop.permute.xlu0 %2873
  %v2876 = vmul.f32 %v594, %v2864
  %v2877 = vmul.f32 %v595, %v2869
  %v2878 = vmul.f32 %v596, %v2874
  %s2879 = scalar_lea.vmem %s3, 744
  %v2880 = vld [vmem:[%s2879] sm:$0xff]
  %v2881 = vld [vmem:[%s2879 + $0x8] sm:$0xff]
  %v2882 = vld [vmem:[%s2879 + $0x10] sm:$0xf]
  %2884 = vset.pattern.permute.xlu0 0
  %2885 = vperm.xlu0 %2884, %v2880
  %v2886 = vpop.permute.xlu0 %2885
  %2889 = vset.pattern.permute.xlu0 0
  %2890 = vperm.xlu0 %2889, %v2881
  %v2891 = vpop.permute.xlu0 %2890
  %2894 = vset.pattern.permute.xlu0 0
  %2895 = vperm.xlu0 %2894, %v2882
  %v2896 = vpop.permute.xlu0 %2895
  %v2898 = vadd.f32 %v2876, %v2886
  %v2899 = vadd.f32 %v2877, %v2891
  %v2900 = vadd.f32 %v2878, %v2896
  %v2901 = vmax.f32 %v2898, 0.0
  %v2902 = vmax.f32 %v2899, 0.0
  %v2903 = vmax.f32 %v2900, 0.0
  %s2904 = scalar_lea.vmem %s4, 744
  %v2905 = vld [vmem:[%s2904] sm:$0xff]
  %v2906 = vld [vmem:[%s2904 + $0x8] sm:$0xff]
  %v2907 = vld [vmem:[%s2904 + $0x10] sm:$0xf]
  %2909 = vset.pattern.permute.xlu0 0
  %2910 = vperm.xlu0 %2909, %v2905
  %v2911 = vpop.permute.xlu0 %2910
  %2914 = vset.pattern.permute.xlu0 0
  %2915 = vperm.xlu0 %2914, %v2906
  %v2916 = vpop.permute.xlu0 %2915
  %2919 = vset.pattern.permute.xlu0 0
  %2920 = vperm.xlu0 %2919, %v2907
  %v2921 = vpop.permute.xlu0 %2920
  %v2923 = vmul.f32 %v2901, %v2911
  %v2924 = vmul.f32 %v2902, %v2916
  %v2925 = vmul.f32 %v2903, %v2921
  %v2926 = vadd.f32 %v2854, %v2923
  %v2927 = vadd.f32 %v2855, %v2924
  %v2928 = vadd.f32 %v2856, %v2925
  %vm2929 = vcmask 130048
  %2930 = vst.msk [vmem:[%s6] sm:$0xff] %vm2929, %v2926
  %2931 = vst.msk [vmem:[%s6 + $0x8] sm:$0xff] %vm2929, %v2927
  %vm2932 = vcmask 125952
  %2933 = vst.msk [vmem:[%s6 + $0x10] sm:$0xf] %vm2932, %v2928
  // Predicated region
  $region26: #{tpu_custom_call.1} parent=0 // pred_check
    _
  $region27: #{tpu_custom_call.1} parent=0 // pred_check_branch
    %2935 = sbr.rel (0) target = $region29
  $region28: #{tpu_custom_call.1} parent=0 // pred_region
    _
  $region29: #{tpu_custom_call.1} parent=0 // pred_fallthru
    _
  // Predicated region
  $region30: #{tpu_custom_call.1} parent=0 // pred_check
    _
  $region31: #{tpu_custom_call.1} parent=0 // pred_check_branch
    %2937 = sbr.rel (0) target = $region33
  $region32: #{tpu_custom_call.1} parent=0 // pred_region
    _
  $region33: #{tpu_custom_call.1} parent=0 // pred_fallthru
    _

</llo_original>
